<compile_context>
chip_gen: v6e
topology: v6e:2x2x1
jax: 0.10.0
libtpu: 0.0.40
codegen_flags: <defaults>
</compile_context>

<pallas_src>
import jax
import jax.numpy as jnp
import numpy as np
from jax import lax
from jax.experimental import pallas as pl
from jax.experimental.pallas import tpu as pltpu


# -----------------------------------------------------------------------------
# Pallas kernel: full forward pass (wavefront LSTM stack + FC head + softmax)
# -----------------------------------------------------------------------------
def lstm_q_kernel(
    x_ref,      # (B, T)      input sequence (input_size=1, squeezed)
    wbig_ref,   # (4H, 16H)   fused recurrent + inter-layer weights (block structure)
    wih0_ref,   # (1, 16H)    layer-0 input weights scattered into layer-0 gate cols
    bias_ref,   # (1, 16H)    b_ih + b_hh for all layers, gate-major layout
    w1_ref,     # (T*H, 128)  fc1 weight (W1^T)
    b1_ref,     # (1, 128)
    w2_ref,     # (128, 128)
    b2_ref,     # (1, 128)
    w3_ref,     # (128, 64)
    b3_ref,     # (1, 64)
    w4_ref,     # (64, A)
    b4_ref,     # (1, A)
    out_ref,    # (B, A)
):
    B, T = x_ref.shape
    FOURH = wbig_ref.shape[0]          # 4*H == 128 (one vreg lane width)
    H = FOURH // 4
    L = 4                              # number of stacked LSTM layers

    # Hoist all VMEM->vreg loads used inside the unrolled wave loop: one vld
    # each instead of one per wave (Ref loads are effects, not CSE'd).
    x = x_ref[...]                     # (B, T)
    w_big = wbig_ref[...]              # (4H, 16H)
    wih0 = wih0_ref[...]               # (1, 16H)
    bias = bias_ref[...]               # (1, 16H)

    # Column block [l*H, (l+1)*H) of h_stack / c_stack holds layer l's state.
    h_stack = jnp.zeros((B, FOURH), jnp.float32)
    c_stack = jnp.zeros((B, FOURH), jnp.float32)
    col = lax.broadcasted_iota(jnp.int32, (B, FOURH), 1)

    seq = []                           # top-layer outputs h^{(L-1)}_t, t = 0..T-1
    # Wavefront: at wave w, cell (t = w - l, layer l) is computed for every
    # layer; all four cells are independent and fused into one matmul.
    for w in range(T + L - 1):
        t0 = min(w, T - 1)             # static; only layer 0 (while active) uses x
        x_col = x[:, t0:t0 + 1]        # (B, 1)

        # One MXU matmul for all 4 layers' gates:  (B,128) @ (128,512)
        gates = (
            jnp.dot(h_stack, w_big, preferred_element_type=jnp.float32)
            + x_col * wih0             # layer-0 input projection (VPU broadcast)
            + bias
        )                              # (B, 16H) = [i | f | o | g], each (B, 4H) layer-stacked

        i_s = jax.nn.sigmoid(gates[:, 0 * FOURH:1 * FOURH])
        f_s = jax.nn.sigmoid(gates[:, 1 * FOURH:2 * FOURH])
        o_s = jax.nn.sigmoid(gates[:, 2 * FOURH:3 * FOURH])
        g_s = jnp.tanh(gates[:, 3 * FOURH:4 * FOURH])

        c_new = f_s * c_stack + i_s * g_s
        h_new = o_s * jnp.tanh(c_new)

        if w < L - 1:
            # Boundary waves: layers l > w have not started -> keep their zeros.
            started = col < (w + 1) * H
            h_stack = jnp.where(started, h_new, h_stack)
            c_stack = jnp.where(started, c_new, c_stack)
        else:
            # All layers started.  Updates of already-finished layers are never
            # consumed by valid cells (each wave reads the previous wave's state),
            # so a wholesale commit is safe.
            h_stack = h_new
            c_stack = c_new
            seq.append(h_new[:, (L - 1) * H:])   # layer-3 output at t = w - (L-1)

    # FC head: flat == lstm_out.contiguous().view(B, T*H)
    flat = jnp.concatenate(seq, axis=1)          # (B, T*H)
    h1 = jnp.tanh(jnp.dot(flat, w1_ref[...], preferred_element_type=jnp.float32)
                  + b1_ref[...])
    h2 = jnp.tanh(jnp.dot(h1, w2_ref[...], preferred_element_type=jnp.float32)
                  + b2_ref[...])
    h3 = jnp.tanh(jnp.dot(h2, w3_ref[...], preferred_element_type=jnp.float32)
                  + b3_ref[...])
    logits = jnp.dot(h3, w4_ref[...], preferred_element_type=jnp.float32) + b4_ref[...]

    # softmax over dim=1
    m = jnp.max(logits, axis=1, keepdims=True)
    e = jnp.exp(logits - m)
    out_ref[...] = e / jnp.sum(e, axis=1, keepdims=True)


# -----------------------------------------------------------------------------
# Wrapper: pallas_call (gridless, whole arrays resident in VMEM)
# -----------------------------------------------------------------------------
@jax.jit
def lstm_q_forward(x, params):
    B, T, _ = x.shape
    A = params["w4_t"].shape[1]
    x2d = x[..., 0].astype(jnp.float32)          # (B, T); input_size == 1

    vmem = pl.BlockSpec(memory_space=pltpu.MemorySpace.VMEM)
    return pl.pallas_call(
        lstm_q_kernel,
        out_shape=jax.ShapeDtypeStruct((B, A), jnp.float32),
        in_specs=[vmem] * 12,
        out_specs=vmem,
    )(
        x2d,
        params["w_big"], params["wih0_big"], params["bias_big"],
        params["w1_t"], params["b1"],
        params["w2_t"], params["b2"],
        params["w3_t"], params["b3"],
        params["w4_t"], params["b4"],
    )


# -----------------------------------------------------------------------------
# Parameter construction + packing
# -----------------------------------------------------------------------------
def _pack_params(raw, H, T):
    """Pack PyTorch-shaped params into the fused wavefront layout."""
    L = 4

    def reorder(w):
        # PyTorch gate row order is [i, f, g, o]; we use [i, f, o, g].
        w = np.asarray(w, np.float32)
        return np.concatenate([w[0:H], w[H:2 * H], w[3 * H:4 * H], w[2 * H:3 * H]],
                              axis=0)

    # Fused weight: rows indexed by stacked hidden state (layer-major),
    # columns laid out gate-major then layer:  col(G, l) = G*4H + l*H.
    #   row block l  -> Whh_l^T into layer-l columns
    #   row block l  -> Wih_{l+1}^T into layer-(l+1) columns (inter-layer input)
    Wb = np.zeros((L * H, 4 * L * H), np.float32)
    w0b = np.zeros((1, 4 * L * H), np.float32)
    bb = np.zeros((1, 4 * L * H), np.float32)

    for l in range(L):
        whh_rT = reorder(raw["whh"][l]).T                        # (H, 4H)
        b_r = reorder(np.asarray(raw["bih"][l]) + np.asarray(raw["bhh"][l]))
        for G in range(4):
            Wb[l * H:(l + 1) * H,
               G * L * H + l * H: G * L * H + (l + 1) * H] = whh_rT[:, G * H:(G + 1) * H]
            bb[0, G * L * H + l * H: G * L * H + (l + 1) * H] = b_r[G * H:(G + 1) * H]
        if l == 0:
            wih0_rT = reorder(raw["wih"][0]).T                   # (1, 4H)
            for G in range(4):
                w0b[0, G * L * H: G * L * H + H] = wih0_rT[0, G * H:(G + 1) * H]
        else:
            wih_rT = reorder(raw["wih"][l]).T                    # (H, 4H)
            for G in range(4):
                Wb[(l - 1) * H:l * H,
                   G * L * H + l * H: G * L * H + (l + 1) * H] = wih_rT[:, G * H:(G + 1) * H]

    return dict(
        w_big=jnp.asarray(Wb),                                   # (4H, 16H)
        wih0_big=jnp.asarray(w0b),                               # (1, 16H)
        bias_big=jnp.asarray(bb),                                # (1, 16H)
        w1_t=jnp.asarray(np.asarray(raw["w1"]).T),               # (T*H, 128)
        b1=jnp.asarray(raw["b1"])[None, :],
        w2_t=jnp.asarray(np.asarray(raw["w2"]).T),
        b2=jnp.asarray(raw["b2"])[None, :],
        w3_t=jnp.asarray(np.asarray(raw["w3"]).T),
        b3=jnp.asarray(raw["b3"])[None, :],
        w4_t=jnp.asarray(np.asarray(raw["w4"]).T),
        b4=jnp.asarray(raw["b4"])[None, :],
    )


def init_params(key, seq_len, hidden, n_actions):
    H = hidden
    kit = iter(list(jax.random.split(key, 32)))

    def u(shape, scale):
        return jax.random.uniform(next(kit), shape, jnp.float32, -scale, scale)

    k_lstm = 1.0 / np.sqrt(H)
    wih = [u((4 * H, 1), k_lstm)] + [u((4 * H, H), k_lstm) for _ in range(3)]
    whh = [u((4 * H, H), k_lstm) for _ in range(4)]
    bih = [u((4 * H,), k_lstm) for _ in range(4)]
    bhh = [u((4 * H,), k_lstm) for _ in range(4)]

    w1 = u((128, H * seq_len), 1.0 / np.sqrt(H * seq_len)); b1 = u((128,), 0.1)
    w2 = u((128, 128), 1.0 / np.sqrt(128));                 b2 = u((128,), 0.1)
    w3 = u((64, 128), 1.0 / np.sqrt(128));                  b3 = u((64,), 0.1)
    w4 = u((n_actions, 64), 1.0 / np.sqrt(64));             b4 = u((n_actions,), 0.1)

    raw = dict(wih=wih, whh=whh, bih=bih, bhh=bhh,
               w1=w1, b1=b1, w2=w2, b2=b2, w3=w3, b3=b3, w4=w4, b4=b4)
    packed = _pack_params(raw, H, seq_len)
    return raw, packed


# -----------------------------------------------------------------------------
# Pure-JAX reference (mirrors PyTorch LSTM / Linear / softmax semantics)
# -----------------------------------------------------------------------------
def ref_forward(x, raw, hidden):
    H = hidden
    B, T, _ = x.shape
    layer_in = x
    for l in range(4):
        Wih, Whh = raw["wih"][l], raw["whh"][l]
        b = raw["bih"][l] + raw["bhh"][l]
        h = jnp.zeros((B, H), jnp.float32)
        c = jnp.zeros((B, H), jnp.float32)
        outs = []
        for t in range(T):
            gates = layer_in[:, t, :] @ Wih.T + h @ Whh.T + b
            i = jax.nn.sigmoid(gates[:, 0:H])
            f = jax.nn.sigmoid(gates[:, H:2 * H])
            g = jnp.tanh(gates[:, 2 * H:3 * H])
            o = jax.nn.sigmoid(gates[:, 3 * H:4 * H])
            c = f * c + i * g
            h = o * jnp.tanh(c)
            outs.append(h)
        layer_in = jnp.stack(outs, axis=1)                     # (B, T, H)
    flat = layer_in.reshape(B, T * H)
    h1 = jnp.tanh(flat @ raw["w1"].T + raw["b1"])
    h2 = jnp.tanh(h1 @ raw["w2"].T + raw["b2"])
    h3 = jnp.tanh(h2 @ raw["w3"].T + raw["b3"])
    logits = h3 @ raw["w4"].T + raw["b4"]
    return jax.nn.softmax(logits, axis=1)


if __name__ == "__main__":
    BATCH, SEQ, HIDDEN, N_ACTIONS = 8, 8, 32, 4

    key = jax.random.PRNGKey(0)
    kx, kp = jax.random.split(key)
    x = jax.random.normal(kx, (BATCH, SEQ, 1), jnp.float32)

    raw, packed = init_params(kp, SEQ, HIDDEN, N_ACTIONS)

    out = lstm_q_forward(x, packed)
    out = jax.block_until_ready(out)

    ref = ref_forward(x, raw, HIDDEN)
    np.testing.assert_allclose(np.asarray(out), np.asarray(ref),
                               rtol=2e-4, atol=2e-5)
    assert out.shape == (BATCH, N_ACTIONS)
    np.testing.assert_allclose(np.asarray(out).sum(axis=1),
                               np.ones(BATCH), rtol=1e-5, atol=1e-5)

    print("KERNEL_OK")
</pallas_src>

<mosaic_0001>
module attributes {stable_mosaic.version = 11 : i64} {
  func.func @lstm_q_kernel(%arg0: memref<8x8xf32, #tpu.memory_space<vmem>>, %arg1: memref<128x512xf32, #tpu.memory_space<vmem>>, %arg2: memref<1x512xf32, #tpu.memory_space<vmem>>, %arg3: memref<1x512xf32, #tpu.memory_space<vmem>>, %arg4: memref<256x128xf32, #tpu.memory_space<vmem>>, %arg5: memref<1x128xf32, #tpu.memory_space<vmem>>, %arg6: memref<128x128xf32, #tpu.memory_space<vmem>>, %arg7: memref<1x128xf32, #tpu.memory_space<vmem>>, %arg8: memref<128x64xf32, #tpu.memory_space<vmem>>, %arg9: memref<1x64xf32, #tpu.memory_space<vmem>>, %arg10: memref<64x4xf32, #tpu.memory_space<vmem>>, %arg11: memref<1x4xf32, #tpu.memory_space<vmem>>, %arg12: memref<8x4xf32, #tpu.memory_space<vmem>>) attributes {dimension_semantics = [], scalar_prefetch = 0 : i64, scratch_operands = 0 : i64, tpu.core_type = #tpu.core_type<tc>} {
    %c0 = arith.constant 0 : index
    %c0_0 = arith.constant 0 : index
    %0 = vector.load %arg0[%c0, %c0_0] : memref<8x8xf32, #tpu.memory_space<vmem>>, vector<8x8xf32>
    %c0_1 = arith.constant 0 : index
    %c0_2 = arith.constant 0 : index
    %1 = vector.load %arg1[%c0_1, %c0_2] : memref<128x512xf32, #tpu.memory_space<vmem>>, vector<128x512xf32>
    %c0_3 = arith.constant 0 : index
    %c0_4 = arith.constant 0 : index
    %2 = vector.load %arg2[%c0_3, %c0_4] : memref<1x512xf32, #tpu.memory_space<vmem>>, vector<1x512xf32>
    %c0_5 = arith.constant 0 : index
    %c0_6 = arith.constant 0 : index
    %3 = vector.load %arg3[%c0_5, %c0_6] : memref<1x512xf32, #tpu.memory_space<vmem>>, vector<1x512xf32>
    %cst = arith.constant 0.000000e+00 : f32
    %4 = vector.broadcast %cst : f32 to vector<8x128xf32>
    %cst_7 = arith.constant 0.000000e+00 : f32
    %5 = vector.broadcast %cst_7 : f32 to vector<8x128xf32>
    %6 = tpu.iota {dimensions = array<i32: 1>} : vector<8x128xi32>
    %7 = vector.extract_strided_slice %0 {offsets = [0, 0], sizes = [8, 1], strides = [1, 1]} : vector<8x8xf32> to vector<8x1xf32>
    %cst_8 = arith.constant dense<0.000000e+00> : vector<8x512xf32>
    %8 = tpu.matmul %4, %1, %cst_8 {dimension_numbers = #tpu.dot_dimension_numbers<[1], [0], [0], [1], [0, 0, 1, 1], [], []>} : vector<8x128xf32>, vector<128x512xf32>, vector<8x512xf32> -> vector<8x512xf32>
    %9 = vector.broadcast %7 : vector<8x1xf32> to vector<8x512xf32>
    %10 = vector.broadcast %2 : vector<1x512xf32> to vector<8x512xf32>
    %11 = arith.mulf %9, %10 : vector<8x512xf32>
    %12 = arith.addf %8, %11 : vector<8x512xf32>
    %13 = vector.broadcast %3 : vector<1x512xf32> to vector<8x512xf32>
    %14 = arith.addf %12, %13 : vector<8x512xf32>
    %15 = vector.extract_strided_slice %14 {offsets = [0, 0], sizes = [8, 128], strides = [1, 1]} : vector<8x512xf32> to vector<8x128xf32>
    %16 = arith.negf %15 : vector<8x128xf32>
    %17 = math.exp %16 : vector<8x128xf32>
    %cst_9 = arith.constant 1.000000e+00 : f32
    %18 = vector.broadcast %cst_9 : f32 to vector<8x128xf32>
    %19 = arith.addf %18, %17 : vector<8x128xf32>
    %20 = arith.divf %18, %19 : vector<8x128xf32>
    %21 = vector.extract_strided_slice %14 {offsets = [0, 128], sizes = [8, 128], strides = [1, 1]} : vector<8x512xf32> to vector<8x128xf32>
    %22 = arith.negf %21 : vector<8x128xf32>
    %23 = math.exp %22 : vector<8x128xf32>
    %cst_10 = arith.constant 1.000000e+00 : f32
    %24 = vector.broadcast %cst_10 : f32 to vector<8x128xf32>
    %25 = arith.addf %24, %23 : vector<8x128xf32>
    %26 = arith.divf %24, %25 : vector<8x128xf32>
    %27 = vector.extract_strided_slice %14 {offsets = [0, 256], sizes = [8, 128], strides = [1, 1]} : vector<8x512xf32> to vector<8x128xf32>
    %28 = arith.negf %27 : vector<8x128xf32>
    %29 = math.exp %28 : vector<8x128xf32>
    %cst_11 = arith.constant 1.000000e+00 : f32
    %30 = vector.broadcast %cst_11 : f32 to vector<8x128xf32>
    %31 = arith.addf %30, %29 : vector<8x128xf32>
    %32 = arith.divf %30, %31 : vector<8x128xf32>
    %33 = vector.extract_strided_slice %14 {offsets = [0, 384], sizes = [8, 128], strides = [1, 1]} : vector<8x512xf32> to vector<8x128xf32>
    %34 = math.tanh %33 : vector<8x128xf32>
    %35 = arith.mulf %26, %5 : vector<8x128xf32>
    %36 = arith.mulf %20, %34 : vector<8x128xf32>
    %37 = arith.addf %35, %36 : vector<8x128xf32>
    %38 = math.tanh %37 : vector<8x128xf32>
    %39 = arith.mulf %32, %38 : vector<8x128xf32>
    %c32_i32 = arith.constant 32 : i32
    %40 = vector.broadcast %c32_i32 : i32 to vector<8x128xi32>
    %41 = arith.cmpi slt, %6, %40 : vector<8x128xi32>
    %42 = arith.select %41, %39, %4 : vector<8x128xi1>, vector<8x128xf32>
    %43 = arith.select %41, %37, %5 : vector<8x128xi1>, vector<8x128xf32>
    %44 = vector.extract_strided_slice %0 {offsets = [0, 1], sizes = [8, 1], strides = [1, 1]} : vector<8x8xf32> to vector<8x1xf32>
    %cst_12 = arith.constant dense<0.000000e+00> : vector<8x512xf32>
    %45 = tpu.matmul %42, %1, %cst_12 {dimension_numbers = #tpu.dot_dimension_numbers<[1], [0], [0], [1], [0, 0, 1, 1], [], []>} : vector<8x128xf32>, vector<128x512xf32>, vector<8x512xf32> -> vector<8x512xf32>
    %46 = vector.broadcast %44 : vector<8x1xf32> to vector<8x512xf32>
    %47 = vector.broadcast %2 : vector<1x512xf32> to vector<8x512xf32>
    %48 = arith.mulf %46, %47 : vector<8x512xf32>
    %49 = arith.addf %45, %48 : vector<8x512xf32>
    %50 = vector.broadcast %3 : vector<1x512xf32> to vector<8x512xf32>
    %51 = arith.addf %49, %50 : vector<8x512xf32>
    %52 = vector.extract_strided_slice %51 {offsets = [0, 0], sizes = [8, 128], strides = [1, 1]} : vector<8x512xf32> to vector<8x128xf32>
    %53 = arith.negf %52 : vector<8x128xf32>
    %54 = math.exp %53 : vector<8x128xf32>
    %cst_13 = arith.constant 1.000000e+00 : f32
    %55 = vector.broadcast %cst_13 : f32 to vector<8x128xf32>
    %56 = arith.addf %55, %54 : vector<8x128xf32>
    %57 = arith.divf %55, %56 : vector<8x128xf32>
    %58 = vector.extract_strided_slice %51 {offsets = [0, 128], sizes = [8, 128], strides = [1, 1]} : vector<8x512xf32> to vector<8x128xf32>
    %59 = arith.negf %58 : vector<8x128xf32>
    %60 = math.exp %59 : vector<8x128xf32>
    %cst_14 = arith.constant 1.000000e+00 : f32
    %61 = vector.broadcast %cst_14 : f32 to vector<8x128xf32>
    %62 = arith.addf %61, %60 : vector<8x128xf32>
    %63 = arith.divf %61, %62 : vector<8x128xf32>
    %64 = vector.extract_strided_slice %51 {offsets = [0, 256], sizes = [8, 128], strides = [1, 1]} : vector<8x512xf32> to vector<8x128xf32>
    %65 = arith.negf %64 : vector<8x128xf32>
    %66 = math.exp %65 : vector<8x128xf32>
    %cst_15 = arith.constant 1.000000e+00 : f32
    %67 = vector.broadcast %cst_15 : f32 to vector<8x128xf32>
    %68 = arith.addf %67, %66 : vector<8x128xf32>
    %69 = arith.divf %67, %68 : vector<8x128xf32>
    %70 = vector.extract_strided_slice %51 {offsets = [0, 384], sizes = [8, 128], strides = [1, 1]} : vector<8x512xf32> to vector<8x128xf32>
    %71 = math.tanh %70 : vector<8x128xf32>
    %72 = arith.mulf %63, %43 : vector<8x128xf32>
    %73 = arith.mulf %57, %71 : vector<8x128xf32>
    %74 = arith.addf %72, %73 : vector<8x128xf32>
    %75 = math.tanh %74 : vector<8x128xf32>
    %76 = arith.mulf %69, %75 : vector<8x128xf32>
    %c64_i32 = arith.constant 64 : i32
    %77 = vector.broadcast %c64_i32 : i32 to vector<8x128xi32>
    %78 = arith.cmpi slt, %6, %77 : vector<8x128xi32>
    %79 = arith.select %78, %76, %42 : vector<8x128xi1>, vector<8x128xf32>
    %80 = arith.select %78, %74, %43 : vector<8x128xi1>, vector<8x128xf32>
    %81 = vector.extract_strided_slice %0 {offsets = [0, 2], sizes = [8, 1], strides = [1, 1]} : vector<8x8xf32> to vector<8x1xf32>
    %cst_16 = arith.constant dense<0.000000e+00> : vector<8x512xf32>
    %82 = tpu.matmul %79, %1, %cst_16 {dimension_numbers = #tpu.dot_dimension_numbers<[1], [0], [0], [1], [0, 0, 1, 1], [], []>} : vector<8x128xf32>, vector<128x512xf32>, vector<8x512xf32> -> vector<8x512xf32>
    %83 = vector.broadcast %81 : vector<8x1xf32> to vector<8x512xf32>
    %84 = vector.broadcast %2 : vector<1x512xf32> to vector<8x512xf32>
    %85 = arith.mulf %83, %84 : vector<8x512xf32>
    %86 = arith.addf %82, %85 : vector<8x512xf32>
    %87 = vector.broadcast %3 : vector<1x512xf32> to vector<8x512xf32>
    %88 = arith.addf %86, %87 : vector<8x512xf32>
    %89 = vector.extract_strided_slice %88 {offsets = [0, 0], sizes = [8, 128], strides = [1, 1]} : vector<8x512xf32> to vector<8x128xf32>
    %90 = arith.negf %89 : vector<8x128xf32>
    %91 = math.exp %90 : vector<8x128xf32>
    %cst_17 = arith.constant 1.000000e+00 : f32
    %92 = vector.broadcast %cst_17 : f32 to vector<8x128xf32>
    %93 = arith.addf %92, %91 : vector<8x128xf32>
    %94 = arith.divf %92, %93 : vector<8x128xf32>
    %95 = vector.extract_strided_slice %88 {offsets = [0, 128], sizes = [8, 128], strides = [1, 1]} : vector<8x512xf32> to vector<8x128xf32>
    %96 = arith.negf %95 : vector<8x128xf32>
    %97 = math.exp %96 : vector<8x128xf32>
    %cst_18 = arith.constant 1.000000e+00 : f32
    %98 = vector.broadcast %cst_18 : f32 to vector<8x128xf32>
    %99 = arith.addf %98, %97 : vector<8x128xf32>
    %100 = arith.divf %98, %99 : vector<8x128xf32>
    %101 = vector.extract_strided_slice %88 {offsets = [0, 256], sizes = [8, 128], strides = [1, 1]} : vector<8x512xf32> to vector<8x128xf32>
    %102 = arith.negf %101 : vector<8x128xf32>
    %103 = math.exp %102 : vector<8x128xf32>
    %cst_19 = arith.constant 1.000000e+00 : f32
    %104 = vector.broadcast %cst_19 : f32 to vector<8x128xf32>
    %105 = arith.addf %104, %103 : vector<8x128xf32>
    %106 = arith.divf %104, %105 : vector<8x128xf32>
    %107 = vector.extract_strided_slice %88 {offsets = [0, 384], sizes = [8, 128], strides = [1, 1]} : vector<8x512xf32> to vector<8x128xf32>
    %108 = math.tanh %107 : vector<8x128xf32>
    %109 = arith.mulf %100, %80 : vector<8x128xf32>
    %110 = arith.mulf %94, %108 : vector<8x128xf32>
    %111 = arith.addf %109, %110 : vector<8x128xf32>
    %112 = math.tanh %111 : vector<8x128xf32>
    %113 = arith.mulf %106, %112 : vector<8x128xf32>
    %c96_i32 = arith.constant 96 : i32
    %114 = vector.broadcast %c96_i32 : i32 to vector<8x128xi32>
    %115 = arith.cmpi slt, %6, %114 : vector<8x128xi32>
    %116 = arith.select %115, %113, %79 : vector<8x128xi1>, vector<8x128xf32>
    %117 = arith.select %115, %111, %80 : vector<8x128xi1>, vector<8x128xf32>
    %118 = vector.extract_strided_slice %0 {offsets = [0, 3], sizes = [8, 1], strides = [1, 1]} : vector<8x8xf32> to vector<8x1xf32>
    %cst_20 = arith.constant dense<0.000000e+00> : vector<8x512xf32>
    %119 = tpu.matmul %116, %1, %cst_20 {dimension_numbers = #tpu.dot_dimension_numbers<[1], [0], [0], [1], [0, 0, 1, 1], [], []>} : vector<8x128xf32>, vector<128x512xf32>, vector<8x512xf32> -> vector<8x512xf32>
    %120 = vector.broadcast %118 : vector<8x1xf32> to vector<8x512xf32>
    %121 = vector.broadcast %2 : vector<1x512xf32> to vector<8x512xf32>
    %122 = arith.mulf %120, %121 : vector<8x512xf32>
    %123 = arith.addf %119, %122 : vector<8x512xf32>
    %124 = vector.broadcast %3 : vector<1x512xf32> to vector<8x512xf32>
    %125 = arith.addf %123, %124 : vector<8x512xf32>
    %126 = vector.extract_strided_slice %125 {offsets = [0, 0], sizes = [8, 128], strides = [1, 1]} : vector<8x512xf32> to vector<8x128xf32>
    %127 = arith.negf %126 : vector<8x128xf32>
    %128 = math.exp %127 : vector<8x128xf32>
    %cst_21 = arith.constant 1.000000e+00 : f32
    %129 = vector.broadcast %cst_21 : f32 to vector<8x128xf32>
    %130 = arith.addf %129, %128 : vector<8x128xf32>
    %131 = arith.divf %129, %130 : vector<8x128xf32>
    %132 = vector.extract_strided_slice %125 {offsets = [0, 128], sizes = [8, 128], strides = [1, 1]} : vector<8x512xf32> to vector<8x128xf32>
    %133 = arith.negf %132 : vector<8x128xf32>
    %134 = math.exp %133 : vector<8x128xf32>
    %cst_22 = arith.constant 1.000000e+00 : f32
    %135 = vector.broadcast %cst_22 : f32 to vector<8x128xf32>
    %136 = arith.addf %135, %134 : vector<8x128xf32>
    %137 = arith.divf %135, %136 : vector<8x128xf32>
    %138 = vector.extract_strided_slice %125 {offsets = [0, 256], sizes = [8, 128], strides = [1, 1]} : vector<8x512xf32> to vector<8x128xf32>
    %139 = arith.negf %138 : vector<8x128xf32>
    %140 = math.exp %139 : vector<8x128xf32>
    %cst_23 = arith.constant 1.000000e+00 : f32
    %141 = vector.broadcast %cst_23 : f32 to vector<8x128xf32>
    %142 = arith.addf %141, %140 : vector<8x128xf32>
    %143 = arith.divf %141, %142 : vector<8x128xf32>
    %144 = vector.extract_strided_slice %125 {offsets = [0, 384], sizes = [8, 128], strides = [1, 1]} : vector<8x512xf32> to vector<8x128xf32>
    %145 = math.tanh %144 : vector<8x128xf32>
    %146 = arith.mulf %137, %117 : vector<8x128xf32>
    %147 = arith.mulf %131, %145 : vector<8x128xf32>
    %148 = arith.addf %146, %147 : vector<8x128xf32>
    %149 = math.tanh %148 : vector<8x128xf32>
    %150 = arith.mulf %143, %149 : vector<8x128xf32>
    %151 = vector.extract_strided_slice %150 {offsets = [0, 96], sizes = [8, 32], strides = [1, 1]} : vector<8x128xf32> to vector<8x32xf32>
    %152 = vector.extract_strided_slice %0 {offsets = [0, 4], sizes = [8, 1], strides = [1, 1]} : vector<8x8xf32> to vector<8x1xf32>
    %cst_24 = arith.constant dense<0.000000e+00> : vector<8x512xf32>
    %153 = tpu.matmul %150, %1, %cst_24 {dimension_numbers = #tpu.dot_dimension_numbers<[1], [0], [0], [1], [0, 0, 1, 1], [], []>} : vector<8x128xf32>, vector<128x512xf32>, vector<8x512xf32> -> vector<8x512xf32>
    %154 = vector.broadcast %152 : vector<8x1xf32> to vector<8x512xf32>
    %155 = vector.broadcast %2 : vector<1x512xf32> to vector<8x512xf32>
    %156 = arith.mulf %154, %155 : vector<8x512xf32>
    %157 = arith.addf %153, %156 : vector<8x512xf32>
    %158 = vector.broadcast %3 : vector<1x512xf32> to vector<8x512xf32>
    %159 = arith.addf %157, %158 : vector<8x512xf32>
    %160 = vector.extract_strided_slice %159 {offsets = [0, 0], sizes = [8, 128], strides = [1, 1]} : vector<8x512xf32> to vector<8x128xf32>
    %161 = arith.negf %160 : vector<8x128xf32>
    %162 = math.exp %161 : vector<8x128xf32>
    %cst_25 = arith.constant 1.000000e+00 : f32
    %163 = vector.broadcast %cst_25 : f32 to vector<8x128xf32>
    %164 = arith.addf %163, %162 : vector<8x128xf32>
    %165 = arith.divf %163, %164 : vector<8x128xf32>
    %166 = vector.extract_strided_slice %159 {offsets = [0, 128], sizes = [8, 128], strides = [1, 1]} : vector<8x512xf32> to vector<8x128xf32>
    %167 = arith.negf %166 : vector<8x128xf32>
    %168 = math.exp %167 : vector<8x128xf32>
    %cst_26 = arith.constant 1.000000e+00 : f32
    %169 = vector.broadcast %cst_26 : f32 to vector<8x128xf32>
    %170 = arith.addf %169, %168 : vector<8x128xf32>
    %171 = arith.divf %169, %170 : vector<8x128xf32>
    %172 = vector.extract_strided_slice %159 {offsets = [0, 256], sizes = [8, 128], strides = [1, 1]} : vector<8x512xf32> to vector<8x128xf32>
    %173 = arith.negf %172 : vector<8x128xf32>
    %174 = math.exp %173 : vector<8x128xf32>
    %cst_27 = arith.constant 1.000000e+00 : f32
    %175 = vector.broadcast %cst_27 : f32 to vector<8x128xf32>
    %176 = arith.addf %175, %174 : vector<8x128xf32>
    %177 = arith.divf %175, %176 : vector<8x128xf32>
    %178 = vector.extract_strided_slice %159 {offsets = [0, 384], sizes = [8, 128], strides = [1, 1]} : vector<8x512xf32> to vector<8x128xf32>
    %179 = math.tanh %178 : vector<8x128xf32>
    %180 = arith.mulf %171, %148 : vector<8x128xf32>
    %181 = arith.mulf %165, %179 : vector<8x128xf32>
    %182 = arith.addf %180, %181 : vector<8x128xf32>
    %183 = math.tanh %182 : vector<8x128xf32>
    %184 = arith.mulf %177, %183 : vector<8x128xf32>
    %185 = vector.extract_strided_slice %184 {offsets = [0, 96], sizes = [8, 32], strides = [1, 1]} : vector<8x128xf32> to vector<8x32xf32>
    %186 = vector.extract_strided_slice %0 {offsets = [0, 5], sizes = [8, 1], strides = [1, 1]} : vector<8x8xf32> to vector<8x1xf32>
    %cst_28 = arith.constant dense<0.000000e+00> : vector<8x512xf32>
    %187 = tpu.matmul %184, %1, %cst_28 {dimension_numbers = #tpu.dot_dimension_numbers<[1], [0], [0], [1], [0, 0, 1, 1], [], []>} : vector<8x128xf32>, vector<128x512xf32>, vector<8x512xf32> -> vector<8x512xf32>
    %188 = vector.broadcast %186 : vector<8x1xf32> to vector<8x512xf32>
    %189 = vector.broadcast %2 : vector<1x512xf32> to vector<8x512xf32>
    %190 = arith.mulf %188, %189 : vector<8x512xf32>
    %191 = arith.addf %187, %190 : vector<8x512xf32>
    %192 = vector.broadcast %3 : vector<1x512xf32> to vector<8x512xf32>
    %193 = arith.addf %191, %192 : vector<8x512xf32>
    %194 = vector.extract_strided_slice %193 {offsets = [0, 0], sizes = [8, 128], strides = [1, 1]} : vector<8x512xf32> to vector<8x128xf32>
    %195 = arith.negf %194 : vector<8x128xf32>
    %196 = math.exp %195 : vector<8x128xf32>
    %cst_29 = arith.constant 1.000000e+00 : f32
    %197 = vector.broadcast %cst_29 : f32 to vector<8x128xf32>
    %198 = arith.addf %197, %196 : vector<8x128xf32>
    %199 = arith.divf %197, %198 : vector<8x128xf32>
    %200 = vector.extract_strided_slice %193 {offsets = [0, 128], sizes = [8, 128], strides = [1, 1]} : vector<8x512xf32> to vector<8x128xf32>
    %201 = arith.negf %200 : vector<8x128xf32>
    %202 = math.exp %201 : vector<8x128xf32>
    %cst_30 = arith.constant 1.000000e+00 : f32
    %203 = vector.broadcast %cst_30 : f32 to vector<8x128xf32>
    %204 = arith.addf %203, %202 : vector<8x128xf32>
    %205 = arith.divf %203, %204 : vector<8x128xf32>
    %206 = vector.extract_strided_slice %193 {offsets = [0, 256], sizes = [8, 128], strides = [1, 1]} : vector<8x512xf32> to vector<8x128xf32>
    %207 = arith.negf %206 : vector<8x128xf32>
    %208 = math.exp %207 : vector<8x128xf32>
    %cst_31 = arith.constant 1.000000e+00 : f32
    %209 = vector.broadcast %cst_31 : f32 to vector<8x128xf32>
    %210 = arith.addf %209, %208 : vector<8x128xf32>
    %211 = arith.divf %209, %210 : vector<8x128xf32>
    %212 = vector.extract_strided_slice %193 {offsets = [0, 384], sizes = [8, 128], strides = [1, 1]} : vector<8x512xf32> to vector<8x128xf32>
    %213 = math.tanh %212 : vector<8x128xf32>
    %214 = arith.mulf %205, %182 : vector<8x128xf32>
    %215 = arith.mulf %199, %213 : vector<8x128xf32>
    %216 = arith.addf %214, %215 : vector<8x128xf32>
    %217 = math.tanh %216 : vector<8x128xf32>
    %218 = arith.mulf %211, %217 : vector<8x128xf32>
    %219 = vector.extract_strided_slice %218 {offsets = [0, 96], sizes = [8, 32], strides = [1, 1]} : vector<8x128xf32> to vector<8x32xf32>
    %220 = vector.extract_strided_slice %0 {offsets = [0, 6], sizes = [8, 1], strides = [1, 1]} : vector<8x8xf32> to vector<8x1xf32>
    %cst_32 = arith.constant dense<0.000000e+00> : vector<8x512xf32>
    %221 = tpu.matmul %218, %1, %cst_32 {dimension_numbers = #tpu.dot_dimension_numbers<[1], [0], [0], [1], [0, 0, 1, 1], [], []>} : vector<8x128xf32>, vector<128x512xf32>, vector<8x512xf32> -> vector<8x512xf32>
    %222 = vector.broadcast %220 : vector<8x1xf32> to vector<8x512xf32>
    %223 = vector.broadcast %2 : vector<1x512xf32> to vector<8x512xf32>
    %224 = arith.mulf %222, %223 : vector<8x512xf32>
    %225 = arith.addf %221, %224 : vector<8x512xf32>
    %226 = vector.broadcast %3 : vector<1x512xf32> to vector<8x512xf32>
    %227 = arith.addf %225, %226 : vector<8x512xf32>
    %228 = vector.extract_strided_slice %227 {offsets = [0, 0], sizes = [8, 128], strides = [1, 1]} : vector<8x512xf32> to vector<8x128xf32>
    %229 = arith.negf %228 : vector<8x128xf32>
    %230 = math.exp %229 : vector<8x128xf32>
    %cst_33 = arith.constant 1.000000e+00 : f32
    %231 = vector.broadcast %cst_33 : f32 to vector<8x128xf32>
    %232 = arith.addf %231, %230 : vector<8x128xf32>
    %233 = arith.divf %231, %232 : vector<8x128xf32>
    %234 = vector.extract_strided_slice %227 {offsets = [0, 128], sizes = [8, 128], strides = [1, 1]} : vector<8x512xf32> to vector<8x128xf32>
    %235 = arith.negf %234 : vector<8x128xf32>
    %236 = math.exp %235 : vector<8x128xf32>
    %cst_34 = arith.constant 1.000000e+00 : f32
    %237 = vector.broadcast %cst_34 : f32 to vector<8x128xf32>
    %238 = arith.addf %237, %236 : vector<8x128xf32>
    %239 = arith.divf %237, %238 : vector<8x128xf32>
    %240 = vector.extract_strided_slice %227 {offsets = [0, 256], sizes = [8, 128], strides = [1, 1]} : vector<8x512xf32> to vector<8x128xf32>
    %241 = arith.negf %240 : vector<8x128xf32>
    %242 = math.exp %241 : vector<8x128xf32>
    %cst_35 = arith.constant 1.000000e+00 : f32
    %243 = vector.broadcast %cst_35 : f32 to vector<8x128xf32>
    %244 = arith.addf %243, %242 : vector<8x128xf32>
    %245 = arith.divf %243, %244 : vector<8x128xf32>
    %246 = vector.extract_strided_slice %227 {offsets = [0, 384], sizes = [8, 128], strides = [1, 1]} : vector<8x512xf32> to vector<8x128xf32>
    %247 = math.tanh %246 : vector<8x128xf32>
    %248 = arith.mulf %239, %216 : vector<8x128xf32>
    %249 = arith.mulf %233, %247 : vector<8x128xf32>
    %250 = arith.addf %248, %249 : vector<8x128xf32>
    %251 = math.tanh %250 : vector<8x128xf32>
    %252 = arith.mulf %245, %251 : vector<8x128xf32>
    %253 = vector.extract_strided_slice %252 {offsets = [0, 96], sizes = [8, 32], strides = [1, 1]} : vector<8x128xf32> to vector<8x32xf32>
    %254 = vector.extract_strided_slice %0 {offsets = [0, 7], sizes = [8, 1], strides = [1, 1]} : vector<8x8xf32> to vector<8x1xf32>
    %cst_36 = arith.constant dense<0.000000e+00> : vector<8x512xf32>
    %255 = tpu.matmul %252, %1, %cst_36 {dimension_numbers = #tpu.dot_dimension_numbers<[1], [0], [0], [1], [0, 0, 1, 1], [], []>} : vector<8x128xf32>, vector<128x512xf32>, vector<8x512xf32> -> vector<8x512xf32>
    %256 = vector.broadcast %254 : vector<8x1xf32> to vector<8x512xf32>
    %257 = vector.broadcast %2 : vector<1x512xf32> to vector<8x512xf32>
    %258 = arith.mulf %256, %257 : vector<8x512xf32>
    %259 = arith.addf %255, %258 : vector<8x512xf32>
    %260 = vector.broadcast %3 : vector<1x512xf32> to vector<8x512xf32>
    %261 = arith.addf %259, %260 : vector<8x512xf32>
    %262 = vector.extract_strided_slice %261 {offsets = [0, 0], sizes = [8, 128], strides = [1, 1]} : vector<8x512xf32> to vector<8x128xf32>
    %263 = arith.negf %262 : vector<8x128xf32>
    %264 = math.exp %263 : vector<8x128xf32>
    %cst_37 = arith.constant 1.000000e+00 : f32
    %265 = vector.broadcast %cst_37 : f32 to vector<8x128xf32>
    %266 = arith.addf %265, %264 : vector<8x128xf32>
    %267 = arith.divf %265, %266 : vector<8x128xf32>
    %268 = vector.extract_strided_slice %261 {offsets = [0, 128], sizes = [8, 128], strides = [1, 1]} : vector<8x512xf32> to vector<8x128xf32>
    %269 = arith.negf %268 : vector<8x128xf32>
    %270 = math.exp %269 : vector<8x128xf32>
    %cst_38 = arith.constant 1.000000e+00 : f32
    %271 = vector.broadcast %cst_38 : f32 to vector<8x128xf32>
    %272 = arith.addf %271, %270 : vector<8x128xf32>
    %273 = arith.divf %271, %272 : vector<8x128xf32>
    %274 = vector.extract_strided_slice %261 {offsets = [0, 256], sizes = [8, 128], strides = [1, 1]} : vector<8x512xf32> to vector<8x128xf32>
    %275 = arith.negf %274 : vector<8x128xf32>
    %276 = math.exp %275 : vector<8x128xf32>
    %cst_39 = arith.constant 1.000000e+00 : f32
    %277 = vector.broadcast %cst_39 : f32 to vector<8x128xf32>
    %278 = arith.addf %277, %276 : vector<8x128xf32>
    %279 = arith.divf %277, %278 : vector<8x128xf32>
    %280 = vector.extract_strided_slice %261 {offsets = [0, 384], sizes = [8, 128], strides = [1, 1]} : vector<8x512xf32> to vector<8x128xf32>
    %281 = math.tanh %280 : vector<8x128xf32>
    %282 = arith.mulf %273, %250 : vector<8x128xf32>
    %283 = arith.mulf %267, %281 : vector<8x128xf32>
    %284 = arith.addf %282, %283 : vector<8x128xf32>
    %285 = math.tanh %284 : vector<8x128xf32>
    %286 = arith.mulf %279, %285 : vector<8x128xf32>
    %287 = vector.extract_strided_slice %286 {offsets = [0, 96], sizes = [8, 32], strides = [1, 1]} : vector<8x128xf32> to vector<8x32xf32>
    %288 = vector.extract_strided_slice %0 {offsets = [0, 7], sizes = [8, 1], strides = [1, 1]} : vector<8x8xf32> to vector<8x1xf32>
    %cst_40 = arith.constant dense<0.000000e+00> : vector<8x512xf32>
    %289 = tpu.matmul %286, %1, %cst_40 {dimension_numbers = #tpu.dot_dimension_numbers<[1], [0], [0], [1], [0, 0, 1, 1], [], []>} : vector<8x128xf32>, vector<128x512xf32>, vector<8x512xf32> -> vector<8x512xf32>
    %290 = vector.broadcast %288 : vector<8x1xf32> to vector<8x512xf32>
    %291 = vector.broadcast %2 : vector<1x512xf32> to vector<8x512xf32>
    %292 = arith.mulf %290, %291 : vector<8x512xf32>
    %293 = arith.addf %289, %292 : vector<8x512xf32>
    %294 = vector.broadcast %3 : vector<1x512xf32> to vector<8x512xf32>
    %295 = arith.addf %293, %294 : vector<8x512xf32>
    %296 = vector.extract_strided_slice %295 {offsets = [0, 0], sizes = [8, 128], strides = [1, 1]} : vector<8x512xf32> to vector<8x128xf32>
    %297 = arith.negf %296 : vector<8x128xf32>
    %298 = math.exp %297 : vector<8x128xf32>
    %cst_41 = arith.constant 1.000000e+00 : f32
    %299 = vector.broadcast %cst_41 : f32 to vector<8x128xf32>
    %300 = arith.addf %299, %298 : vector<8x128xf32>
    %301 = arith.divf %299, %300 : vector<8x128xf32>
    %302 = vector.extract_strided_slice %295 {offsets = [0, 128], sizes = [8, 128], strides = [1, 1]} : vector<8x512xf32> to vector<8x128xf32>
    %303 = arith.negf %302 : vector<8x128xf32>
    %304 = math.exp %303 : vector<8x128xf32>
    %cst_42 = arith.constant 1.000000e+00 : f32
    %305 = vector.broadcast %cst_42 : f32 to vector<8x128xf32>
    %306 = arith.addf %305, %304 : vector<8x128xf32>
    %307 = arith.divf %305, %306 : vector<8x128xf32>
    %308 = vector.extract_strided_slice %295 {offsets = [0, 256], sizes = [8, 128], strides = [1, 1]} : vector<8x512xf32> to vector<8x128xf32>
    %309 = arith.negf %308 : vector<8x128xf32>
    %310 = math.exp %309 : vector<8x128xf32>
    %cst_43 = arith.constant 1.000000e+00 : f32
    %311 = vector.broadcast %cst_43 : f32 to vector<8x128xf32>
    %312 = arith.addf %311, %310 : vector<8x128xf32>
    %313 = arith.divf %311, %312 : vector<8x128xf32>
    %314 = vector.extract_strided_slice %295 {offsets = [0, 384], sizes = [8, 128], strides = [1, 1]} : vector<8x512xf32> to vector<8x128xf32>
    %315 = math.tanh %314 : vector<8x128xf32>
    %316 = arith.mulf %307, %284 : vector<8x128xf32>
    %317 = arith.mulf %301, %315 : vector<8x128xf32>
    %318 = arith.addf %316, %317 : vector<8x128xf32>
    %319 = math.tanh %318 : vector<8x128xf32>
    %320 = arith.mulf %313, %319 : vector<8x128xf32>
    %321 = vector.extract_strided_slice %320 {offsets = [0, 96], sizes = [8, 32], strides = [1, 1]} : vector<8x128xf32> to vector<8x32xf32>
    %322 = vector.extract_strided_slice %0 {offsets = [0, 7], sizes = [8, 1], strides = [1, 1]} : vector<8x8xf32> to vector<8x1xf32>
    %cst_44 = arith.constant dense<0.000000e+00> : vector<8x512xf32>
    %323 = tpu.matmul %320, %1, %cst_44 {dimension_numbers = #tpu.dot_dimension_numbers<[1], [0], [0], [1], [0, 0, 1, 1], [], []>} : vector<8x128xf32>, vector<128x512xf32>, vector<8x512xf32> -> vector<8x512xf32>
    %324 = vector.broadcast %322 : vector<8x1xf32> to vector<8x512xf32>
    %325 = vector.broadcast %2 : vector<1x512xf32> to vector<8x512xf32>
    %326 = arith.mulf %324, %325 : vector<8x512xf32>
    %327 = arith.addf %323, %326 : vector<8x512xf32>
    %328 = vector.broadcast %3 : vector<1x512xf32> to vector<8x512xf32>
    %329 = arith.addf %327, %328 : vector<8x512xf32>
    %330 = vector.extract_strided_slice %329 {offsets = [0, 0], sizes = [8, 128], strides = [1, 1]} : vector<8x512xf32> to vector<8x128xf32>
    %331 = arith.negf %330 : vector<8x128xf32>
    %332 = math.exp %331 : vector<8x128xf32>
    %cst_45 = arith.constant 1.000000e+00 : f32
    %333 = vector.broadcast %cst_45 : f32 to vector<8x128xf32>
    %334 = arith.addf %333, %332 : vector<8x128xf32>
    %335 = arith.divf %333, %334 : vector<8x128xf32>
    %336 = vector.extract_strided_slice %329 {offsets = [0, 128], sizes = [8, 128], strides = [1, 1]} : vector<8x512xf32> to vector<8x128xf32>
    %337 = arith.negf %336 : vector<8x128xf32>
    %338 = math.exp %337 : vector<8x128xf32>
    %cst_46 = arith.constant 1.000000e+00 : f32
    %339 = vector.broadcast %cst_46 : f32 to vector<8x128xf32>
    %340 = arith.addf %339, %338 : vector<8x128xf32>
    %341 = arith.divf %339, %340 : vector<8x128xf32>
    %342 = vector.extract_strided_slice %329 {offsets = [0, 256], sizes = [8, 128], strides = [1, 1]} : vector<8x512xf32> to vector<8x128xf32>
    %343 = arith.negf %342 : vector<8x128xf32>
    %344 = math.exp %343 : vector<8x128xf32>
    %cst_47 = arith.constant 1.000000e+00 : f32
    %345 = vector.broadcast %cst_47 : f32 to vector<8x128xf32>
    %346 = arith.addf %345, %344 : vector<8x128xf32>
    %347 = arith.divf %345, %346 : vector<8x128xf32>
    %348 = vector.extract_strided_slice %329 {offsets = [0, 384], sizes = [8, 128], strides = [1, 1]} : vector<8x512xf32> to vector<8x128xf32>
    %349 = math.tanh %348 : vector<8x128xf32>
    %350 = arith.mulf %341, %318 : vector<8x128xf32>
    %351 = arith.mulf %335, %349 : vector<8x128xf32>
    %352 = arith.addf %350, %351 : vector<8x128xf32>
    %353 = math.tanh %352 : vector<8x128xf32>
    %354 = arith.mulf %347, %353 : vector<8x128xf32>
    %355 = vector.extract_strided_slice %354 {offsets = [0, 96], sizes = [8, 32], strides = [1, 1]} : vector<8x128xf32> to vector<8x32xf32>
    %356 = vector.extract_strided_slice %0 {offsets = [0, 7], sizes = [8, 1], strides = [1, 1]} : vector<8x8xf32> to vector<8x1xf32>
    %cst_48 = arith.constant dense<0.000000e+00> : vector<8x512xf32>
    %357 = tpu.matmul %354, %1, %cst_48 {dimension_numbers = #tpu.dot_dimension_numbers<[1], [0], [0], [1], [0, 0, 1, 1], [], []>} : vector<8x128xf32>, vector<128x512xf32>, vector<8x512xf32> -> vector<8x512xf32>
    %358 = vector.broadcast %356 : vector<8x1xf32> to vector<8x512xf32>
    %359 = vector.broadcast %2 : vector<1x512xf32> to vector<8x512xf32>
    %360 = arith.mulf %358, %359 : vector<8x512xf32>
    %361 = arith.addf %357, %360 : vector<8x512xf32>
    %362 = vector.broadcast %3 : vector<1x512xf32> to vector<8x512xf32>
    %363 = arith.addf %361, %362 : vector<8x512xf32>
    %364 = vector.extract_strided_slice %363 {offsets = [0, 0], sizes = [8, 128], strides = [1, 1]} : vector<8x512xf32> to vector<8x128xf32>
    %365 = arith.negf %364 : vector<8x128xf32>
    %366 = math.exp %365 : vector<8x128xf32>
    %cst_49 = arith.constant 1.000000e+00 : f32
    %367 = vector.broadcast %cst_49 : f32 to vector<8x128xf32>
    %368 = arith.addf %367, %366 : vector<8x128xf32>
    %369 = arith.divf %367, %368 : vector<8x128xf32>
    %370 = vector.extract_strided_slice %363 {offsets = [0, 128], sizes = [8, 128], strides = [1, 1]} : vector<8x512xf32> to vector<8x128xf32>
    %371 = arith.negf %370 : vector<8x128xf32>
    %372 = math.exp %371 : vector<8x128xf32>
    %cst_50 = arith.constant 1.000000e+00 : f32
    %373 = vector.broadcast %cst_50 : f32 to vector<8x128xf32>
    %374 = arith.addf %373, %372 : vector<8x128xf32>
    %375 = arith.divf %373, %374 : vector<8x128xf32>
    %376 = vector.extract_strided_slice %363 {offsets = [0, 256], sizes = [8, 128], strides = [1, 1]} : vector<8x512xf32> to vector<8x128xf32>
    %377 = arith.negf %376 : vector<8x128xf32>
    %378 = math.exp %377 : vector<8x128xf32>
    %cst_51 = arith.constant 1.000000e+00 : f32
    %379 = vector.broadcast %cst_51 : f32 to vector<8x128xf32>
    %380 = arith.addf %379, %378 : vector<8x128xf32>
    %381 = arith.divf %379, %380 : vector<8x128xf32>
    %382 = vector.extract_strided_slice %363 {offsets = [0, 384], sizes = [8, 128], strides = [1, 1]} : vector<8x512xf32> to vector<8x128xf32>
    %383 = math.tanh %382 : vector<8x128xf32>
    %384 = arith.mulf %375, %352 : vector<8x128xf32>
    %385 = arith.mulf %369, %383 : vector<8x128xf32>
    %386 = arith.addf %384, %385 : vector<8x128xf32>
    %387 = math.tanh %386 : vector<8x128xf32>
    %388 = arith.mulf %381, %387 : vector<8x128xf32>
    %389 = vector.extract_strided_slice %388 {offsets = [0, 96], sizes = [8, 32], strides = [1, 1]} : vector<8x128xf32> to vector<8x32xf32>
    %390 = tpu.concatenate %151, %185, %219, %253, %287, %321, %355, %389 in 1 : vector<8x32xf32>, vector<8x32xf32>, vector<8x32xf32>, vector<8x32xf32>, vector<8x32xf32>, vector<8x32xf32>, vector<8x32xf32>, vector<8x32xf32> -> vector<8x256xf32>
    %c0_52 = arith.constant 0 : index
    %c0_53 = arith.constant 0 : index
    %391 = vector.load %arg4[%c0_52, %c0_53] : memref<256x128xf32, #tpu.memory_space<vmem>>, vector<256x128xf32>
    %cst_54 = arith.constant dense<0.000000e+00> : vector<8x128xf32>
    %392 = tpu.matmul %390, %391, %cst_54 {dimension_numbers = #tpu.dot_dimension_numbers<[1], [0], [0], [1], [0, 0, 1, 1], [], []>} : vector<8x256xf32>, vector<256x128xf32>, vector<8x128xf32> -> vector<8x128xf32>
    %c0_55 = arith.constant 0 : index
    %c0_56 = arith.constant 0 : index
    %393 = vector.load %arg5[%c0_55, %c0_56] : memref<1x128xf32, #tpu.memory_space<vmem>>, vector<1x128xf32>
    %394 = vector.broadcast %393 : vector<1x128xf32> to vector<8x128xf32>
    %395 = arith.addf %392, %394 : vector<8x128xf32>
    %396 = math.tanh %395 : vector<8x128xf32>
    %c0_57 = arith.constant 0 : index
    %c0_58 = arith.constant 0 : index
    %397 = vector.load %arg6[%c0_57, %c0_58] : memref<128x128xf32, #tpu.memory_space<vmem>>, vector<128x128xf32>
    %cst_59 = arith.constant dense<0.000000e+00> : vector<8x128xf32>
    %398 = tpu.matmul %396, %397, %cst_59 {dimension_numbers = #tpu.dot_dimension_numbers<[1], [0], [0], [1], [0, 0, 1, 1], [], []>} : vector<8x128xf32>, vector<128x128xf32>, vector<8x128xf32> -> vector<8x128xf32>
    %c0_60 = arith.constant 0 : index
    %c0_61 = arith.constant 0 : index
    %399 = vector.load %arg7[%c0_60, %c0_61] : memref<1x128xf32, #tpu.memory_space<vmem>>, vector<1x128xf32>
    %400 = vector.broadcast %399 : vector<1x128xf32> to vector<8x128xf32>
    %401 = arith.addf %398, %400 : vector<8x128xf32>
    %402 = math.tanh %401 : vector<8x128xf32>
    %c0_62 = arith.constant 0 : index
    %c0_63 = arith.constant 0 : index
    %403 = vector.load %arg8[%c0_62, %c0_63] : memref<128x64xf32, #tpu.memory_space<vmem>>, vector<128x64xf32>
    %cst_64 = arith.constant dense<0.000000e+00> : vector<8x64xf32>
    %404 = tpu.matmul %402, %403, %cst_64 {dimension_numbers = #tpu.dot_dimension_numbers<[1], [0], [0], [1], [0, 0, 1, 1], [], []>} : vector<8x128xf32>, vector<128x64xf32>, vector<8x64xf32> -> vector<8x64xf32>
    %c0_65 = arith.constant 0 : index
    %c0_66 = arith.constant 0 : index
    %405 = vector.load %arg9[%c0_65, %c0_66] : memref<1x64xf32, #tpu.memory_space<vmem>>, vector<1x64xf32>
    %406 = vector.broadcast %405 : vector<1x64xf32> to vector<8x64xf32>
    %407 = arith.addf %404, %406 : vector<8x64xf32>
    %408 = math.tanh %407 : vector<8x64xf32>
    %c0_67 = arith.constant 0 : index
    %c0_68 = arith.constant 0 : index
    %409 = vector.load %arg10[%c0_67, %c0_68] : memref<64x4xf32, #tpu.memory_space<vmem>>, vector<64x4xf32>
    %cst_69 = arith.constant dense<0.000000e+00> : vector<8x4xf32>
    %410 = tpu.matmul %408, %409, %cst_69 {dimension_numbers = #tpu.dot_dimension_numbers<[1], [0], [0], [1], [0, 0, 1, 1], [], []>} : vector<8x64xf32>, vector<64x4xf32>, vector<8x4xf32> -> vector<8x4xf32>
    %c0_70 = arith.constant 0 : index
    %c0_71 = arith.constant 0 : index
    %411 = vector.load %arg11[%c0_70, %c0_71] : memref<1x4xf32, #tpu.memory_space<vmem>>, vector<1x4xf32>
    %412 = vector.broadcast %411 : vector<1x4xf32> to vector<8x4xf32>
    %413 = arith.addf %410, %412 : vector<8x4xf32>
    %cst_72 = arith.constant dense<0xFF800000> : vector<8xf32>
    %414 = vector.multi_reduction <maximumf>, %413, %cst_72 [1] : vector<8x4xf32> to vector<8xf32>
    %415 = vector.shape_cast %414 : vector<8xf32> to vector<8x1xf32>
    %416 = vector.broadcast %415 : vector<8x1xf32> to vector<8x4xf32>
    %417 = arith.subf %413, %416 : vector<8x4xf32>
    %418 = math.exp %417 : vector<8x4xf32>
    %cst_73 = arith.constant dense<0.000000e+00> : vector<8xf32>
    %419 = vector.multi_reduction <add>, %418, %cst_73 [1] : vector<8x4xf32> to vector<8xf32>
    %420 = vector.shape_cast %419 : vector<8xf32> to vector<8x1xf32>
    %421 = vector.broadcast %420 : vector<8x1xf32> to vector<8x4xf32>
    %422 = arith.divf %418, %421 : vector<8x4xf32>
    %c0_74 = arith.constant 0 : index
    %c0_75 = arith.constant 0 : index
    %423 = vector.load %arg12[%c0_74, %c0_75] : memref<8x4xf32, #tpu.memory_space<vmem>>, vector<8x4xf32>
    tpu.vector_store %arg12[%c0_74, %c0_75], %422 {strides = array<i32>} : memref<8x4xf32, #tpu.memory_space<vmem>>, vector<8x4xf32>,
    return
  }
}

</mosaic_0001>

<llo_original>
// kernel: lstm_q_forward.1
$region0: #{lstm_q_forward.1}
  #allocation0 [shape = 'u32[]', space=smem, size = 0x4, offset = 0x4, fixed_abs, tag = 'smem constant byte address 0x4 - core index']
  #allocation1 [shape = 'u32[144,128]{1,0:T(1,128)}', space=vmem, size = 0x12000, scoped, tag = 'internal scratch']
  %s0 = inlined_call_operand.vmem [shape: f32[8,8], index: 0, kind: input, shape index: {}]
  %s1 = inlined_call_operand.hbm [shape: f32[128,512], index: 1, kind: input, shape index: {}]
  %s2 = inlined_call_operand.vmem [shape: f32[1,512], index: 2, kind: input, shape index: {}]
  %s3 = inlined_call_operand.hbm [shape: f32[1,512], index: 3, kind: input, shape index: {}]
  %s4 = inlined_call_operand.vmem [shape: f32[256,128], index: 4, kind: input, shape index: {}]
  %s5 = inlined_call_operand.vmem [shape: f32[1,128], index: 5, kind: input, shape index: {}]
  %s6 = inlined_call_operand.hbm [shape: f32[128,128], index: 6, kind: input, shape index: {}]
  %s7 = inlined_call_operand.vmem [shape: f32[1,128], index: 7, kind: input, shape index: {}]
  %s8 = inlined_call_operand.vmem [shape: f32[128,64], index: 8, kind: input, shape index: {}]
  %s9 = inlined_call_operand.hbm [shape: f32[1,64], index: 9, kind: input, shape index: {}]
  %s10 = inlined_call_operand.vmem [shape: f32[64,4], index: 10, kind: input, shape index: {}]
  %s11 = inlined_call_operand.hbm [shape: f32[1,4], index: 11, kind: input, shape index: {}]
  %s12 = inlined_call_operand.vmem [shape: f32[8,4], index: 12, kind: output, shape index: {}]
  %s13 = sld [smem:[#allocation0]]
  $region78: #{lstm_q_forward.1} parent=0
    _
  %s15 = ssub.s32 1, %s13
  %s16 = scalar_select 0, %s15, %s13
  $region1: #{lstm_q_forward.1} parent=0
    #allocation2 [shape = 'u8[262144]{0}', space=vmem, size = 0x40000, scoped, tag = 'input window, operand 1, single buffered']
    #allocation3 [shape = 's32[1]{0}', space=sflag, size = 0x4, scoped, tag = 'scoped memory for lstm_q_forward.1']
    #allocation4 [shape = 'u8[2048]{0}', space=vmem, size = 0x800, scoped, tag = 'input window, operand 3, single buffered']
    #allocation5 [shape = 's32[1]{0}', space=sflag, size = 0x4, scoped, tag = 'scoped memory for lstm_q_forward.1']
    #allocation6 [shape = 'u8[65536]{0}', space=vmem, size = 0x10000, scoped, tag = 'input window, operand 6, single buffered']
    #allocation7 [shape = 'u8[512]{0}', space=vmem, size = 0x400, scoped, tag = 'input window, operand 9, single buffered']
    #allocation8 [shape = 's32[1]{0}', space=sflag, size = 0x4, scoped, tag = 'scoped memory for lstm_q_forward.1']
    #allocation9 [shape = 'u8[512]{0}', space=vmem, size = 0x400, scoped, tag = 'input window, operand 11, single buffered']
    %17 = vsyncpa [#allocation3], 0
    %18 = vsyncpa [#allocation5], 0
    %19 = vsyncpa [#allocation8], 0
    // Predicated region
    $region2: #{lstm_q_forward.1} parent=1 // pred_check
      _
    $region3: #{lstm_q_forward.1} parent=1 // pred_check_branch
      %21 = sbr.rel (0) target = $region5
    $region4: #{lstm_q_forward.1} parent=1 // pred_region
      _
    $region5: #{lstm_q_forward.1} parent=1 // pred_fallthru
      _
    // Predicated region
    $region6: #{lstm_q_forward.1} parent=1 // pred_check
      _
    $region7: #{lstm_q_forward.1} parent=1 // pred_check_branch
      %23 = sbr.rel (0) target = $region9
    $region8: #{lstm_q_forward.1} parent=1 // pred_region
      %s25 = ssub.s32 8192, 8192
      %26 = vsyncadd [#allocation3], %s25
      %s27 = sshll.u32 [#allocation2], 4
      %s28 = int_to_ptr.vmem [resolvable:$true] %s27
      %33 = dma.hbm_to_vmem [thread:$0]  %s1, 8192, %s28, [#allocation3], 512, 512, 32
    $region9: #{lstm_q_forward.1} parent=1 // pred_fallthru
      _
    // Predicated region
    $region10: #{lstm_q_forward.1} parent=1 // pred_check
      _
    $region11: #{lstm_q_forward.1} parent=1 // pred_check_branch
      %35 = sbr.rel (0) target = $region13
    $region12: #{lstm_q_forward.1} parent=1 // pred_region
      _
    $region13: #{lstm_q_forward.1} parent=1 // pred_fallthru
      _
    // Predicated region
    $region14: #{lstm_q_forward.1} parent=1 // pred_check
      _
    $region15: #{lstm_q_forward.1} parent=1 // pred_check_branch
      %37 = sbr.rel (0) target = $region17
    $region16: #{lstm_q_forward.1} parent=1 // pred_region
      %s39 = ssub.s32 64, 64
      %40 = vsyncadd [#allocation5], %s39
      %s42 = sshll.u32 [#allocation4], 4
      %s43 = int_to_ptr.vmem [resolvable:$true] %s42
      %45 = dma.hbm_to_vmem [thread:$0]  %s3, 64, %s43, [#allocation5]
    $region17: #{lstm_q_forward.1} parent=1 // pred_fallthru
      _
    // Predicated region
    $region18: #{lstm_q_forward.1} parent=1 // pred_check
      _
    $region19: #{lstm_q_forward.1} parent=1 // pred_check_branch
      %47 = sbr.rel (0) target = $region21
    $region20: #{lstm_q_forward.1} parent=1 // pred_region
      _
    $region21: #{lstm_q_forward.1} parent=1 // pred_fallthru
      _
    // Predicated region
    $region22: #{lstm_q_forward.1} parent=1 // pred_check
      _
    $region23: #{lstm_q_forward.1} parent=1 // pred_check_branch
      %49 = sbr.rel (0) target = $region25
    $region24: #{lstm_q_forward.1} parent=1 // pred_region
      _
    $region25: #{lstm_q_forward.1} parent=1 // pred_fallthru
      _
    // Predicated region
    $region26: #{lstm_q_forward.1} parent=1 // pred_check
      _
    $region27: #{lstm_q_forward.1} parent=1 // pred_check_branch
      %51 = sbr.rel (0) target = $region29
    $region28: #{lstm_q_forward.1} parent=1 // pred_region
      %s53 = ssub.s32 2048, 2048
      %54 = vsyncadd [#allocation5], %s53
      %s55 = sshll.u32 [#allocation6], 4
      %s56 = int_to_ptr.vmem [resolvable:$true] %s55
      %61 = dma.hbm_to_vmem [thread:$0]  %s6, 2048, %s56, [#allocation5], 128, 128, 8
    $region29: #{lstm_q_forward.1} parent=1 // pred_fallthru
      _
    // Predicated region
    $region30: #{lstm_q_forward.1} parent=1 // pred_check
      _
    $region31: #{lstm_q_forward.1} parent=1 // pred_check_branch
      %63 = sbr.rel (0) target = $region33
    $region32: #{lstm_q_forward.1} parent=1 // pred_region
      _
    $region33: #{lstm_q_forward.1} parent=1 // pred_fallthru
      _
    // Predicated region
    $region34: #{lstm_q_forward.1} parent=1 // pred_check
      _
    $region35: #{lstm_q_forward.1} parent=1 // pred_check_branch
      %65 = sbr.rel (0) target = $region37
    $region36: #{lstm_q_forward.1} parent=1 // pred_region
      _
    $region37: #{lstm_q_forward.1} parent=1 // pred_fallthru
      _
    // Predicated region
    $region38: #{lstm_q_forward.1} parent=1 // pred_check
      _
    $region39: #{lstm_q_forward.1} parent=1 // pred_check_branch
      %67 = sbr.rel (0) target = $region41
    $region40: #{lstm_q_forward.1} parent=1 // pred_region
      %s69 = ssub.s32 16, 16
      %70 = vsyncadd [#allocation8], %s69
      %s72 = sshll.u32 [#allocation7], 4
      %s73 = int_to_ptr.vmem [resolvable:$true] %s72
      %75 = dma.hbm_to_vmem [thread:$0]  %s9, 16, %s73, [#allocation8]
    $region41: #{lstm_q_forward.1} parent=1 // pred_fallthru
      _
    // Predicated region
    $region42: #{lstm_q_forward.1} parent=1 // pred_check
      _
    $region43: #{lstm_q_forward.1} parent=1 // pred_check_branch
      %77 = sbr.rel (0) target = $region45
    $region44: #{lstm_q_forward.1} parent=1 // pred_region
      _
    $region45: #{lstm_q_forward.1} parent=1 // pred_fallthru
      _
    // Predicated region
    $region46: #{lstm_q_forward.1} parent=1 // pred_check
      _
    $region47: #{lstm_q_forward.1} parent=1 // pred_check_branch
      %79 = sbr.rel (0) target = $region49
    $region48: #{lstm_q_forward.1} parent=1 // pred_region
      %s81 = ssub.s32 16, 16
      %82 = vsyncadd [#allocation8], %s81
      %s84 = sshll.u32 [#allocation9], 4
      %s85 = int_to_ptr.vmem [resolvable:$true] %s84
      %87 = dma.hbm_to_vmem [thread:$0]  %s11, 16, %s85, [#allocation8]
    $region49: #{lstm_q_forward.1} parent=1 // pred_fallthru
      _
    // Predicated region
    $region50: #{lstm_q_forward.1} parent=1 // pred_check
      _
    $region51: #{lstm_q_forward.1} parent=1 // pred_check_branch
      %89 = sbr.rel (0) target = $region53
    $region52: #{lstm_q_forward.1} parent=1 // pred_region
      %90 = dma.done [#allocation3], 8192
    $region53: #{lstm_q_forward.1} parent=1 // pred_fallthru
      _
    // Predicated region
    $region54: #{lstm_q_forward.1} parent=1 // pred_check
      _
    $region55: #{lstm_q_forward.1} parent=1 // pred_check_branch
      %92 = sbr.rel (0) target = $region57
    $region56: #{lstm_q_forward.1} parent=1 // pred_region
      %93 = dma.done [#allocation5], 64
    $region57: #{lstm_q_forward.1} parent=1 // pred_fallthru
      _
    // Predicated region
    $region58: #{lstm_q_forward.1} parent=1 // pred_check
      _
    $region59: #{lstm_q_forward.1} parent=1 // pred_check_branch
      %95 = sbr.rel (0) target = $region61
    $region60: #{lstm_q_forward.1} parent=1 // pred_region
      %96 = dma.done [#allocation5], 2048
    $region61: #{lstm_q_forward.1} parent=1 // pred_fallthru
      _
    // Predicated region
    $region62: #{lstm_q_forward.1} parent=1 // pred_check
      _
    $region63: #{lstm_q_forward.1} parent=1 // pred_check_branch
      %98 = sbr.rel (0) target = $region65
    $region64: #{lstm_q_forward.1} parent=1 // pred_region
      %99 = dma.done [#allocation8], 16
    $region65: #{lstm_q_forward.1} parent=1 // pred_fallthru
      _
    // Predicated region
    $region66: #{lstm_q_forward.1} parent=1 // pred_check
      _
    $region67: #{lstm_q_forward.1} parent=1 // pred_check_branch
      %101 = sbr.rel (0) target = $region69
    $region68: #{lstm_q_forward.1} parent=1 // pred_region
      %102 = dma.done [#allocation8], 16
    $region69: #{lstm_q_forward.1} parent=1 // pred_fallthru
      _
    %v103 = vld [vmem:[%s0] sm:$0xff]
    %v104 = vld [vmem:[#allocation2] sm:$0xff]
    %v105 = vld [vmem:[#allocation2 + $0x8] sm:$0xff]
    %v106 = vld [vmem:[#allocation2 + $0x10] sm:$0xff]
    %v107 = vld [vmem:[#allocation2 + $0x18] sm:$0xff]
    %v108 = vld [vmem:[#allocation2 + $0x20] sm:$0xff]
    %v109 = vld [vmem:[#allocation2 + $0x28] sm:$0xff]
    %v110 = vld [vmem:[#allocation2 + $0x30] sm:$0xff]
    %v111 = vld [vmem:[#allocation2 + $0x38] sm:$0xff]
    %v112 = vld [vmem:[#allocation2 + $0x40] sm:$0xff]
    %v113 = vld [vmem:[#allocation2 + $0x48] sm:$0xff]
    %v114 = vld [vmem:[#allocation2 + $0x50] sm:$0xff]
    %v115 = vld [vmem:[#allocation2 + $0x58] sm:$0xff]
    %v116 = vld [vmem:[#allocation2 + $0x60] sm:$0xff]
    %v117 = vld [vmem:[#allocation2 + $0x68] sm:$0xff]
    %v118 = vld [vmem:[#allocation2 + $0x70] sm:$0xff]
    %v119 = vld [vmem:[#allocation2 + $0x78] sm:$0xff]
    %v120 = vld [vmem:[#allocation2 + $0x80] sm:$0xff]
    %v121 = vld [vmem:[#allocation2 + $0x88] sm:$0xff]
    %v122 = vld [vmem:[#allocation2 + $0x90] sm:$0xff]
    %v123 = vld [vmem:[#allocation2 + $0x98] sm:$0xff]
    %v124 = vld [vmem:[#allocation2 + $0xa0] sm:$0xff]
    %v125 = vld [vmem:[#allocation2 + $0xa8] sm:$0xff]
    %v126 = vld [vmem:[#allocation2 + $0xb0] sm:$0xff]
    %v127 = vld [vmem:[#allocation2 + $0xb8] sm:$0xff]
    %v128 = vld [vmem:[#allocation2 + $0xc0] sm:$0xff]
    %v129 = vld [vmem:[#allocation2 + $0xc8] sm:$0xff]
    %v130 = vld [vmem:[#allocation2 + $0xd0] sm:$0xff]
    %v131 = vld [vmem:[#allocation2 + $0xd8] sm:$0xff]
    %v132 = vld [vmem:[#allocation2 + $0xe0] sm:$0xff]
    %v133 = vld [vmem:[#allocation2 + $0xe8] sm:$0xff]
    %v134 = vld [vmem:[#allocation2 + $0xf0] sm:$0xff]
    %v135 = vld [vmem:[#allocation2 + $0xf8] sm:$0xff]
    %v136 = vld [vmem:[#allocation2 + $0x100] sm:$0xff]
    %v137 = vld [vmem:[#allocation2 + $0x108] sm:$0xff]
    %v138 = vld [vmem:[#allocation2 + $0x110] sm:$0xff]
    %v139 = vld [vmem:[#allocation2 + $0x118] sm:$0xff]
    %v140 = vld [vmem:[#allocation2 + $0x120] sm:$0xff]
    %v141 = vld [vmem:[#allocation2 + $0x128] sm:$0xff]
    %v142 = vld [vmem:[#allocation2 + $0x130] sm:$0xff]
    %v143 = vld [vmem:[#allocation2 + $0x138] sm:$0xff]
    %v144 = vld [vmem:[#allocation2 + $0x140] sm:$0xff]
    %v145 = vld [vmem:[#allocation2 + $0x148] sm:$0xff]
    %v146 = vld [vmem:[#allocation2 + $0x150] sm:$0xff]
    %v147 = vld [vmem:[#allocation2 + $0x158] sm:$0xff]
    %v148 = vld [vmem:[#allocation2 + $0x160] sm:$0xff]
    %v149 = vld [vmem:[#allocation2 + $0x168] sm:$0xff]
    %v150 = vld [vmem:[#allocation2 + $0x170] sm:$0xff]
    %v151 = vld [vmem:[#allocation2 + $0x178] sm:$0xff]
    %v152 = vld [vmem:[#allocation2 + $0x180] sm:$0xff]
    %v153 = vld [vmem:[#allocation2 + $0x188] sm:$0xff]
    %v154 = vld [vmem:[#allocation2 + $0x190] sm:$0xff]
    %v155 = vld [vmem:[#allocation2 + $0x198] sm:$0xff]
    %v156 = vld [vmem:[#allocation2 + $0x1a0] sm:$0xff]
    %v157 = vld [vmem:[#allocation2 + $0x1a8] sm:$0xff]
    %v158 = vld [vmem:[#allocation2 + $0x1b0] sm:$0xff]
    %v159 = vld [vmem:[#allocation2 + $0x1b8] sm:$0xff]
    %v160 = vld [vmem:[#allocation2 + $0x1c0] sm:$0xff]
    %v161 = vld [vmem:[#allocation2 + $0x1c8] sm:$0xff]
    %v162 = vld [vmem:[#allocation2 + $0x1d0] sm:$0xff]
    %v163 = vld [vmem:[#allocation2 + $0x1d8] sm:$0xff]
    %v164 = vld [vmem:[#allocation2 + $0x1e0] sm:$0xff]
    %v165 = vld [vmem:[#allocation2 + $0x1e8] sm:$0xff]
    %v166 = vld [vmem:[#allocation2 + $0x1f0] sm:$0xff]
    %v167 = vld [vmem:[#allocation2 + $0x1f8] sm:$0xff]
    %v168 = vld [vmem:[%s2] sm:$0xf]
    %v169 = vld [vmem:[#allocation4] sm:$0xf]
    %v170 = vlaneseq
    %v171 = vand.u32 %v170, 127
    %173 = vset.pattern.permute.xlu0 0
    %174 = vperm.xlu0 %173, %v103
    %v175 = vpop.permute.xlu0 %174
    %v178 = vlaneseq
    %v179 = vshrl.u32 %v178, 7
    %v180 = vsub.s32 0, %v179
    %v181 = vrot.slane %v168, %v180
    %v182 = vlaneseq
    %v183 = vshrl.u32 %v182, 7
    %v184 = vsub.s32 1, %v183
    %v185 = vrot.slane %v168, %v184
    %v186 = vlaneseq
    %v187 = vshrl.u32 %v186, 7
    %v188 = vsub.s32 2, %v187
    %v189 = vrot.slane %v168, %v188
    %v190 = vlaneseq
    %v191 = vshrl.u32 %v190, 7
    %v192 = vsub.s32 3, %v191
    %v193 = vrot.slane %v168, %v192
    %v198 = vmul.f32 %v175, %v181
    %v199 = vmul.f32 %v175, %v185
    %v200 = vmul.f32 %v175, %v189
    %v201 = vmul.f32 %v175, %v193
    %202 = vmatprep.subr.mxu0 %v165
    %203 = vmatpush1.msra.mxu0 %v164
    %204 = vmatprep.subr.mxu0 %v161
    %205 = vmatpush1.msra.mxu0 %v160
    %206 = vmatprep.subr.mxu0 %v157
    %207 = vmatpush1.msra.mxu0 %v156
    %208 = vmatprep.subr.mxu0 %v153
    %209 = vmatpush1.msra.mxu0 %v152
    %210 = vmatprep.subr.mxu0 %v149
    %211 = vmatpush1.msra.mxu0 %v148
    %212 = vmatprep.subr.mxu0 %v145
    %213 = vmatpush1.msra.mxu0 %v144
    %214 = vmatprep.subr.mxu0 %v141
    %215 = vmatpush1.msra.mxu0 %v140
    %216 = vmatprep.subr.mxu0 %v137
    %217 = vmatpush1.msra.mxu0 %v136
    %218 = vmatprep.subr.mxu0 %v133
    %219 = vmatpush1.msra.mxu0 %v132
    %220 = vmatprep.subr.mxu0 %v129
    %221 = vmatpush1.msra.mxu0 %v128
    %222 = vmatprep.subr.mxu0 %v125
    %223 = vmatpush1.msra.mxu0 %v124
    %224 = vmatprep.subr.mxu0 %v121
    %225 = vmatpush1.msra.mxu0 %v120
    %226 = vmatprep.subr.mxu0 %v117
    %227 = vmatpush1.msra.mxu0 %v116
    %228 = vmatprep.subr.mxu0 %v113
    %229 = vmatpush1.msra.mxu0 %v112
    %230 = vmatprep.subr.mxu0 %v109
    %231 = vmatpush1.msra.mxu0 %v108
    %232 = vmatprep.subr.mxu0 %v105
    %233 = vmatpush1.msra.mxu0 %v104
    %234 = vmatprep.subr.mxu0 0.0
    %235 = vmatpush2.msra.mxu0 0.0
    %236 = vmatprep.subr.mxu0 0.0
    %237 = vmatpush2.msra.mxu0 0.0
    %238 = vmatprep.subr.mxu0 0.0
    %239 = vmatpush2.msra.mxu0 0.0
    %240 = vmatprep.subr.mxu0 0.0
    %241 = vmatpush2.msra.mxu0 0.0
    %242 = vmatprep.subr.mxu0 0.0
    %243 = vmatpush2.msra.mxu0 0.0
    %244 = vmatprep.subr.mxu0 0.0
    %245 = vmatpush2.msra.mxu0 0.0
    %246 = vmatprep.subr.mxu0 0.0
    %247 = vmatpush2.msra.mxu0 0.0
    %248 = vmatprep.subr.mxu0 0.0
    %249 = vmatpush2.msra.mxu0 0.0
    %250 = vmatprep.subr.mxu0 0.0
    %251 = vmatpush2.msra.mxu0 0.0
    %252 = vmatprep.subr.mxu0 0.0
    %253 = vmatpush2.msra.mxu0 0.0
    %254 = vmatprep.subr.mxu0 0.0
    %255 = vmatpush2.msra.mxu0 0.0
    %256 = vmatprep.subr.mxu0 0.0
    %257 = vmatpush2.msra.mxu0 0.0
    %258 = vmatprep.subr.mxu0 0.0
    %259 = vmatpush2.msra.mxu0 0.0
    %260 = vmatprep.subr.mxu0 0.0
    %261 = vmatpush2.msra.mxu0 0.0
    %262 = vmatprep.subr.mxu0 0.0
    %263 = vmatpush2.msra.mxu0 0.0
    %264 = vmatprep.subr.mxu0 0.0
    %265 = vmatpush2.msra.mxu0 0.0
    %266 = vmatprep.mubr.f32.mxu0 0.0
    %267 = vmatmul.mubr.f32.gmra.mxu0 0.0
    %v268 = vpop.f32.mrf.mxu0
    %v269 = vadd.f32 %v198, %v268
    %v270 = vpop.f32.mrf.mxu0
    %v271 = vadd.f32 %v199, %v270
    %272 = vdwg.mxu0
    %273 = vmatprep.subr.mxu0 %v167
    %274 = vmatpush1.msra.mxu0 %v166
    %275 = vmatprep.subr.mxu0 %v163
    %276 = vmatpush1.msra.mxu0 %v162
    %277 = vmatprep.subr.mxu0 %v159
    %278 = vmatpush1.msra.mxu0 %v158
    %279 = vmatprep.subr.mxu0 %v155
    %280 = vmatpush1.msra.mxu0 %v154
    %281 = vmatprep.subr.mxu0 %v151
    %282 = vmatpush1.msra.mxu0 %v150
    %283 = vmatprep.subr.mxu0 %v147
    %284 = vmatpush1.msra.mxu0 %v146
    %285 = vmatprep.subr.mxu0 %v143
    %286 = vmatpush1.msra.mxu0 %v142
    %287 = vmatprep.subr.mxu0 %v139
    %288 = vmatpush1.msra.mxu0 %v138
    %289 = vmatprep.subr.mxu0 %v135
    %290 = vmatpush1.msra.mxu0 %v134
    %291 = vmatprep.subr.mxu0 %v131
    %292 = vmatpush1.msra.mxu0 %v130
    %293 = vmatprep.subr.mxu0 %v127
    %294 = vmatpush1.msra.mxu0 %v126
    %295 = vmatprep.subr.mxu0 %v123
    %296 = vmatpush1.msra.mxu0 %v122
    %297 = vmatprep.subr.mxu0 %v119
    %298 = vmatpush1.msra.mxu0 %v118
    %299 = vmatprep.subr.mxu0 %v115
    %300 = vmatpush1.msra.mxu0 %v114
    %301 = vmatprep.subr.mxu0 %v111
    %302 = vmatpush1.msra.mxu0 %v110
    %303 = vmatprep.subr.mxu0 %v107
    %304 = vmatpush1.msra.mxu0 %v106
    %305 = vmatprep.subr.mxu0 0.0
    %306 = vmatpush2.msra.mxu0 0.0
    %307 = vmatprep.subr.mxu0 0.0
    %308 = vmatpush2.msra.mxu0 0.0
    %309 = vmatprep.subr.mxu0 0.0
    %310 = vmatpush2.msra.mxu0 0.0
    %311 = vmatprep.subr.mxu0 0.0
    %312 = vmatpush2.msra.mxu0 0.0
    %313 = vmatprep.subr.mxu0 0.0
    %314 = vmatpush2.msra.mxu0 0.0
    %315 = vmatprep.subr.mxu0 0.0
    %316 = vmatpush2.msra.mxu0 0.0
    %317 = vmatprep.subr.mxu0 0.0
    %318 = vmatpush2.msra.mxu0 0.0
    %319 = vmatprep.subr.mxu0 0.0
    %320 = vmatpush2.msra.mxu0 0.0
    %321 = vmatprep.subr.mxu0 0.0
    %322 = vmatpush2.msra.mxu0 0.0
    %323 = vmatprep.subr.mxu0 0.0
    %324 = vmatpush2.msra.mxu0 0.0
    %325 = vmatprep.subr.mxu0 0.0
    %326 = vmatpush2.msra.mxu0 0.0
    %327 = vmatprep.subr.mxu0 0.0
    %328 = vmatpush2.msra.mxu0 0.0
    %329 = vmatprep.subr.mxu0 0.0
    %330 = vmatpush2.msra.mxu0 0.0
    %331 = vmatprep.subr.mxu0 0.0
    %332 = vmatpush2.msra.mxu0 0.0
    %333 = vmatprep.subr.mxu0 0.0
    %334 = vmatpush2.msra.mxu0 0.0
    %335 = vmatprep.subr.mxu0 0.0
    %336 = vmatpush2.msra.mxu0 0.0
    %337 = vmatprep.mubr.f32.mxu0 0.0
    %338 = vmatmul.mubr.f32.gmra.mxu0 0.0
    %v339 = vpop.f32.mrf.mxu0
    %v340 = vadd.f32 %v200, %v339
    %v341 = vpop.f32.mrf.mxu0
    %v342 = vadd.f32 %v201, %v341
    %343 = vdwg.mxu0
    %v345 = vlaneseq
    %v346 = vshrl.u32 %v345, 7
    %v347 = vsub.s32 0, %v346
    %v348 = vrot.slane %v169, %v347
    %v349 = vlaneseq
    %v350 = vshrl.u32 %v349, 7
    %v351 = vsub.s32 1, %v350
    %v352 = vrot.slane %v169, %v351
    %v353 = vlaneseq
    %v354 = vshrl.u32 %v353, 7
    %v355 = vsub.s32 2, %v354
    %v356 = vrot.slane %v169, %v355
    %v357 = vlaneseq
    %v358 = vshrl.u32 %v357, 7
    %v359 = vsub.s32 3, %v358
    %v360 = vrot.slane %v169, %v359
    %v365 = vadd.f32 %v269, %v348
    %v366 = vadd.f32 %v271, %v352
    %v367 = vadd.f32 %v340, %v356
    %v368 = vadd.f32 %v342, %v360
    %v369 = vxor.u32 %v365, 2147483648
    %v370 = vmul.f32 %v369, 1.442695
    %v371 = vpow.pop %v370
    %v372 = vadd.f32 %v371, 1.0
    %v373 = vrcp.pop %v372
    %v374 = vmul.f32 1.0, %v373
    %v375 = vxor.u32 %v366, 2147483648
    %v376 = vmul.f32 %v375, 1.442695
    %v377 = vpow.pop %v376
    %v378 = vadd.f32 %v377, 1.0
    %v379 = vrcp.pop %v378
    %v380 = vmul.f32 1.0, %v379
    %v381 = vxor.u32 %v367, 2147483648
    %v382 = vmul.f32 %v381, 1.442695
    %v383 = vpow.pop %v382
    %v384 = vadd.f32 %v383, 1.0
    %v385 = vrcp.pop %v384
    %v386 = vmul.f32 1.0, %v385
    %v387 = vtanh.pop %v368
    %v388 = vmul.f32 %v380, 0.0
    %v389 = vmul.f32 %v374, %v387
    %v390 = vadd.f32 %v388, %v389
    %v391 = vtanh.pop %v390
    %v392 = vmul.f32 %v386, %v391
    %vm393 = vcmp.lt.s32.totalorder %v171, 32
    %v394 = vsel %vm393, %v392, 0.0
    %v395 = vsel %vm393, %v390, 0.0
    %396 = vset.pattern.permute.xlu0 1
    %397 = vperm.xlu0 %396, %v103
    %v398 = vpop.permute.xlu0 %397
    %v400 = vmul.f32 %v398, %v181
    %v401 = vmul.f32 %v398, %v185
    %v402 = vmul.f32 %v398, %v189
    %v403 = vmul.f32 %v398, %v193
    %404 = vmatprep.subr.mxu0 %v165
    %405 = vmatpush1.msra.mxu0 %v164
    %406 = vmatprep.subr.mxu0 %v161
    %407 = vmatpush1.msra.mxu0 %v160
    %408 = vmatprep.subr.mxu0 %v157
    %409 = vmatpush1.msra.mxu0 %v156
    %410 = vmatprep.subr.mxu0 %v153
    %411 = vmatpush1.msra.mxu0 %v152
    %412 = vmatprep.subr.mxu0 %v149
    %413 = vmatpush1.msra.mxu0 %v148
    %414 = vmatprep.subr.mxu0 %v145
    %415 = vmatpush1.msra.mxu0 %v144
    %416 = vmatprep.subr.mxu0 %v141
    %417 = vmatpush1.msra.mxu0 %v140
    %418 = vmatprep.subr.mxu0 %v137
    %419 = vmatpush1.msra.mxu0 %v136
    %420 = vmatprep.subr.mxu0 %v133
    %421 = vmatpush1.msra.mxu0 %v132
    %422 = vmatprep.subr.mxu0 %v129
    %423 = vmatpush1.msra.mxu0 %v128
    %424 = vmatprep.subr.mxu0 %v125
    %425 = vmatpush1.msra.mxu0 %v124
    %426 = vmatprep.subr.mxu0 %v121
    %427 = vmatpush1.msra.mxu0 %v120
    %428 = vmatprep.subr.mxu0 %v117
    %429 = vmatpush1.msra.mxu0 %v116
    %430 = vmatprep.subr.mxu0 %v113
    %431 = vmatpush1.msra.mxu0 %v112
    %432 = vmatprep.subr.mxu0 %v109
    %433 = vmatpush1.msra.mxu0 %v108
    %434 = vmatprep.subr.mxu0 %v105
    %435 = vmatpush1.msra.mxu0 %v104
    %436 = vmatprep.subr.mxu0 0.0
    %437 = vmatpush2.msra.mxu0 0.0
    %438 = vmatprep.subr.mxu0 0.0
    %439 = vmatpush2.msra.mxu0 0.0
    %440 = vmatprep.subr.mxu0 0.0
    %441 = vmatpush2.msra.mxu0 0.0
    %442 = vmatprep.subr.mxu0 0.0
    %443 = vmatpush2.msra.mxu0 0.0
    %444 = vmatprep.subr.mxu0 0.0
    %445 = vmatpush2.msra.mxu0 0.0
    %446 = vmatprep.subr.mxu0 0.0
    %447 = vmatpush2.msra.mxu0 0.0
    %448 = vmatprep.subr.mxu0 0.0
    %449 = vmatpush2.msra.mxu0 0.0
    %450 = vmatprep.subr.mxu0 0.0
    %451 = vmatpush2.msra.mxu0 0.0
    %452 = vmatprep.subr.mxu0 0.0
    %453 = vmatpush2.msra.mxu0 0.0
    %454 = vmatprep.subr.mxu0 0.0
    %455 = vmatpush2.msra.mxu0 0.0
    %456 = vmatprep.subr.mxu0 0.0
    %457 = vmatpush2.msra.mxu0 0.0
    %458 = vmatprep.subr.mxu0 0.0
    %459 = vmatpush2.msra.mxu0 0.0
    %460 = vmatprep.subr.mxu0 0.0
    %461 = vmatpush2.msra.mxu0 0.0
    %462 = vmatprep.subr.mxu0 0.0
    %463 = vmatpush2.msra.mxu0 0.0
    %464 = vmatprep.subr.mxu0 0.0
    %465 = vmatpush2.msra.mxu0 0.0
    %466 = vmatprep.subr.mxu0 0.0
    %467 = vmatpush2.msra.mxu0 0.0
    %468 = vmatprep.mubr.f32.mxu0 0.0
    %469 = vmatmul.mubr.f32.gmra.mxu0 %v394
    %v470 = vpop.f32.mrf.mxu0
    %v471 = vadd.f32 %v400, %v470
    %v472 = vpop.f32.mrf.mxu0
    %v473 = vadd.f32 %v401, %v472
    %474 = vdwg.mxu0
    %475 = vmatprep.subr.mxu0 %v167
    %476 = vmatpush1.msra.mxu0 %v166
    %477 = vmatprep.subr.mxu0 %v163
    %478 = vmatpush1.msra.mxu0 %v162
    %479 = vmatprep.subr.mxu0 %v159
    %480 = vmatpush1.msra.mxu0 %v158
    %481 = vmatprep.subr.mxu0 %v155
    %482 = vmatpush1.msra.mxu0 %v154
    %483 = vmatprep.subr.mxu0 %v151
    %484 = vmatpush1.msra.mxu0 %v150
    %485 = vmatprep.subr.mxu0 %v147
    %486 = vmatpush1.msra.mxu0 %v146
    %487 = vmatprep.subr.mxu0 %v143
    %488 = vmatpush1.msra.mxu0 %v142
    %489 = vmatprep.subr.mxu0 %v139
    %490 = vmatpush1.msra.mxu0 %v138
    %491 = vmatprep.subr.mxu0 %v135
    %492 = vmatpush1.msra.mxu0 %v134
    %493 = vmatprep.subr.mxu0 %v131
    %494 = vmatpush1.msra.mxu0 %v130
    %495 = vmatprep.subr.mxu0 %v127
    %496 = vmatpush1.msra.mxu0 %v126
    %497 = vmatprep.subr.mxu0 %v123
    %498 = vmatpush1.msra.mxu0 %v122
    %499 = vmatprep.subr.mxu0 %v119
    %500 = vmatpush1.msra.mxu0 %v118
    %501 = vmatprep.subr.mxu0 %v115
    %502 = vmatpush1.msra.mxu0 %v114
    %503 = vmatprep.subr.mxu0 %v111
    %504 = vmatpush1.msra.mxu0 %v110
    %505 = vmatprep.subr.mxu0 %v107
    %506 = vmatpush1.msra.mxu0 %v106
    %507 = vmatprep.subr.mxu0 0.0
    %508 = vmatpush2.msra.mxu0 0.0
    %509 = vmatprep.subr.mxu0 0.0
    %510 = vmatpush2.msra.mxu0 0.0
    %511 = vmatprep.subr.mxu0 0.0
    %512 = vmatpush2.msra.mxu0 0.0
    %513 = vmatprep.subr.mxu0 0.0
    %514 = vmatpush2.msra.mxu0 0.0
    %515 = vmatprep.subr.mxu0 0.0
    %516 = vmatpush2.msra.mxu0 0.0
    %517 = vmatprep.subr.mxu0 0.0
    %518 = vmatpush2.msra.mxu0 0.0
    %519 = vmatprep.subr.mxu0 0.0
    %520 = vmatpush2.msra.mxu0 0.0
    %521 = vmatprep.subr.mxu0 0.0
    %522 = vmatpush2.msra.mxu0 0.0
    %523 = vmatprep.subr.mxu0 0.0
    %524 = vmatpush2.msra.mxu0 0.0
    %525 = vmatprep.subr.mxu0 0.0
    %526 = vmatpush2.msra.mxu0 0.0
    %527 = vmatprep.subr.mxu0 0.0
    %528 = vmatpush2.msra.mxu0 0.0
    %529 = vmatprep.subr.mxu0 0.0
    %530 = vmatpush2.msra.mxu0 0.0
    %531 = vmatprep.subr.mxu0 0.0
    %532 = vmatpush2.msra.mxu0 0.0
    %533 = vmatprep.subr.mxu0 0.0
    %534 = vmatpush2.msra.mxu0 0.0
    %535 = vmatprep.subr.mxu0 0.0
    %536 = vmatpush2.msra.mxu0 0.0
    %537 = vmatprep.subr.mxu0 0.0
    %538 = vmatpush2.msra.mxu0 0.0
    %539 = vmatprep.mubr.f32.mxu0 0.0
    %540 = vmatmul.mubr.f32.gmra.mxu0 %v394
    %v541 = vpop.f32.mrf.mxu0
    %v542 = vadd.f32 %v402, %v541
    %v543 = vpop.f32.mrf.mxu0
    %v544 = vadd.f32 %v403, %v543
    %545 = vdwg.mxu0
    %v546 = vadd.f32 %v471, %v348
    %v547 = vadd.f32 %v473, %v352
    %v548 = vadd.f32 %v542, %v356
    %v549 = vadd.f32 %v544, %v360
    %v550 = vxor.u32 %v546, 2147483648
    %v551 = vmul.f32 %v550, 1.442695
    %v552 = vpow.pop %v551
    %v553 = vadd.f32 %v552, 1.0
    %v554 = vrcp.pop %v553
    %v555 = vmul.f32 1.0, %v554
    %v556 = vxor.u32 %v547, 2147483648
    %v557 = vmul.f32 %v556, 1.442695
    %v558 = vpow.pop %v557
    %v559 = vadd.f32 %v558, 1.0
    %v560 = vrcp.pop %v559
    %v561 = vmul.f32 1.0, %v560
    %v562 = vxor.u32 %v548, 2147483648
    %v563 = vmul.f32 %v562, 1.442695
    %v564 = vpow.pop %v563
    %v565 = vadd.f32 %v564, 1.0
    %v566 = vrcp.pop %v565
    %v567 = vmul.f32 1.0, %v566
    %v568 = vtanh.pop %v549
    %v569 = vmul.f32 %v561, %v395
    %v570 = vmul.f32 %v555, %v568
    %v571 = vadd.f32 %v569, %v570
    %v572 = vtanh.pop %v571
    %v573 = vmul.f32 %v567, %v572
    %vm574 = vcmp.lt.s32.totalorder %v171, 64
    %v575 = vsel %vm574, %v573, %v394
    %v576 = vsel %vm574, %v571, %v395
    %577 = vset.pattern.permute.xlu0 2
    %578 = vperm.xlu0 %577, %v103
    %v579 = vpop.permute.xlu0 %578
    %v581 = vmul.f32 %v579, %v181
    %v582 = vmul.f32 %v579, %v185
    %v583 = vmul.f32 %v579, %v189
    %v584 = vmul.f32 %v579, %v193
    %585 = vmatprep.subr.mxu0 %v165
    %586 = vmatpush1.msra.mxu0 %v164
    %587 = vmatprep.subr.mxu0 %v161
    %588 = vmatpush1.msra.mxu0 %v160
    %589 = vmatprep.subr.mxu0 %v157
    %590 = vmatpush1.msra.mxu0 %v156
    %591 = vmatprep.subr.mxu0 %v153
    %592 = vmatpush1.msra.mxu0 %v152
    %593 = vmatprep.subr.mxu0 %v149
    %594 = vmatpush1.msra.mxu0 %v148
    %595 = vmatprep.subr.mxu0 %v145
    %596 = vmatpush1.msra.mxu0 %v144
    %597 = vmatprep.subr.mxu0 %v141
    %598 = vmatpush1.msra.mxu0 %v140
    %599 = vmatprep.subr.mxu0 %v137
    %600 = vmatpush1.msra.mxu0 %v136
    %601 = vmatprep.subr.mxu0 %v133
    %602 = vmatpush1.msra.mxu0 %v132
    %603 = vmatprep.subr.mxu0 %v129
    %604 = vmatpush1.msra.mxu0 %v128
    %605 = vmatprep.subr.mxu0 %v125
    %606 = vmatpush1.msra.mxu0 %v124
    %607 = vmatprep.subr.mxu0 %v121
    %608 = vmatpush1.msra.mxu0 %v120
    %609 = vmatprep.subr.mxu0 %v117
    %610 = vmatpush1.msra.mxu0 %v116
    %611 = vmatprep.subr.mxu0 %v113
    %612 = vmatpush1.msra.mxu0 %v112
    %613 = vmatprep.subr.mxu0 %v109
    %614 = vmatpush1.msra.mxu0 %v108
    %615 = vmatprep.subr.mxu0 %v105
    %616 = vmatpush1.msra.mxu0 %v104
    %617 = vmatprep.subr.mxu0 0.0
    %618 = vmatpush2.msra.mxu0 0.0
    %619 = vmatprep.subr.mxu0 0.0
    %620 = vmatpush2.msra.mxu0 0.0
    %621 = vmatprep.subr.mxu0 0.0
    %622 = vmatpush2.msra.mxu0 0.0
    %623 = vmatprep.subr.mxu0 0.0
    %624 = vmatpush2.msra.mxu0 0.0
    %625 = vmatprep.subr.mxu0 0.0
    %626 = vmatpush2.msra.mxu0 0.0
    %627 = vmatprep.subr.mxu0 0.0
    %628 = vmatpush2.msra.mxu0 0.0
    %629 = vmatprep.subr.mxu0 0.0
    %630 = vmatpush2.msra.mxu0 0.0
    %631 = vmatprep.subr.mxu0 0.0
    %632 = vmatpush2.msra.mxu0 0.0
    %633 = vmatprep.subr.mxu0 0.0
    %634 = vmatpush2.msra.mxu0 0.0
    %635 = vmatprep.subr.mxu0 0.0
    %636 = vmatpush2.msra.mxu0 0.0
    %637 = vmatprep.subr.mxu0 0.0
    %638 = vmatpush2.msra.mxu0 0.0
    %639 = vmatprep.subr.mxu0 0.0
    %640 = vmatpush2.msra.mxu0 0.0
    %641 = vmatprep.subr.mxu0 0.0
    %642 = vmatpush2.msra.mxu0 0.0
    %643 = vmatprep.subr.mxu0 0.0
    %644 = vmatpush2.msra.mxu0 0.0
    %645 = vmatprep.subr.mxu0 0.0
    %646 = vmatpush2.msra.mxu0 0.0
    %647 = vmatprep.subr.mxu0 0.0
    %648 = vmatpush2.msra.mxu0 0.0
    %649 = vmatprep.mubr.f32.mxu0 0.0
    %650 = vmatmul.mubr.f32.gmra.mxu0 %v575
    %v651 = vpop.f32.mrf.mxu0
    %v652 = vadd.f32 %v581, %v651
    %v653 = vpop.f32.mrf.mxu0
    %v654 = vadd.f32 %v582, %v653
    %655 = vdwg.mxu0
    %656 = vmatprep.subr.mxu0 %v167
    %657 = vmatpush1.msra.mxu0 %v166
    %658 = vmatprep.subr.mxu0 %v163
    %659 = vmatpush1.msra.mxu0 %v162
    %660 = vmatprep.subr.mxu0 %v159
    %661 = vmatpush1.msra.mxu0 %v158
    %662 = vmatprep.subr.mxu0 %v155
    %663 = vmatpush1.msra.mxu0 %v154
    %664 = vmatprep.subr.mxu0 %v151
    %665 = vmatpush1.msra.mxu0 %v150
    %666 = vmatprep.subr.mxu0 %v147
    %667 = vmatpush1.msra.mxu0 %v146
    %668 = vmatprep.subr.mxu0 %v143
    %669 = vmatpush1.msra.mxu0 %v142
    %670 = vmatprep.subr.mxu0 %v139
    %671 = vmatpush1.msra.mxu0 %v138
    %672 = vmatprep.subr.mxu0 %v135
    %673 = vmatpush1.msra.mxu0 %v134
    %674 = vmatprep.subr.mxu0 %v131
    %675 = vmatpush1.msra.mxu0 %v130
    %676 = vmatprep.subr.mxu0 %v127
    %677 = vmatpush1.msra.mxu0 %v126
    %678 = vmatprep.subr.mxu0 %v123
    %679 = vmatpush1.msra.mxu0 %v122
    %680 = vmatprep.subr.mxu0 %v119
    %681 = vmatpush1.msra.mxu0 %v118
    %682 = vmatprep.subr.mxu0 %v115
    %683 = vmatpush1.msra.mxu0 %v114
    %684 = vmatprep.subr.mxu0 %v111
    %685 = vmatpush1.msra.mxu0 %v110
    %686 = vmatprep.subr.mxu0 %v107
    %687 = vmatpush1.msra.mxu0 %v106
    %688 = vmatprep.subr.mxu0 0.0
    %689 = vmatpush2.msra.mxu0 0.0
    %690 = vmatprep.subr.mxu0 0.0
    %691 = vmatpush2.msra.mxu0 0.0
    %692 = vmatprep.subr.mxu0 0.0
    %693 = vmatpush2.msra.mxu0 0.0
    %694 = vmatprep.subr.mxu0 0.0
    %695 = vmatpush2.msra.mxu0 0.0
    %696 = vmatprep.subr.mxu0 0.0
    %697 = vmatpush2.msra.mxu0 0.0
    %698 = vmatprep.subr.mxu0 0.0
    %699 = vmatpush2.msra.mxu0 0.0
    %700 = vmatprep.subr.mxu0 0.0
    %701 = vmatpush2.msra.mxu0 0.0
    %702 = vmatprep.subr.mxu0 0.0
    %703 = vmatpush2.msra.mxu0 0.0
    %704 = vmatprep.subr.mxu0 0.0
    %705 = vmatpush2.msra.mxu0 0.0
    %706 = vmatprep.subr.mxu0 0.0
    %707 = vmatpush2.msra.mxu0 0.0
    %708 = vmatprep.subr.mxu0 0.0
    %709 = vmatpush2.msra.mxu0 0.0
    %710 = vmatprep.subr.mxu0 0.0
    %711 = vmatpush2.msra.mxu0 0.0
    %712 = vmatprep.subr.mxu0 0.0
    %713 = vmatpush2.msra.mxu0 0.0
    %714 = vmatprep.subr.mxu0 0.0
    %715 = vmatpush2.msra.mxu0 0.0
    %716 = vmatprep.subr.mxu0 0.0
    %717 = vmatpush2.msra.mxu0 0.0
    %718 = vmatprep.subr.mxu0 0.0
    %719 = vmatpush2.msra.mxu0 0.0
    %720 = vmatprep.mubr.f32.mxu0 0.0
    %721 = vmatmul.mubr.f32.gmra.mxu0 %v575
    %v722 = vpop.f32.mrf.mxu0
    %v723 = vadd.f32 %v583, %v722
    %v724 = vpop.f32.mrf.mxu0
    %v725 = vadd.f32 %v584, %v724
    %726 = vdwg.mxu0
    %v727 = vadd.f32 %v652, %v348
    %v728 = vadd.f32 %v654, %v352
    %v729 = vadd.f32 %v723, %v356
    %v730 = vadd.f32 %v725, %v360
    %v731 = vxor.u32 %v727, 2147483648
    %v732 = vmul.f32 %v731, 1.442695
    %v733 = vpow.pop %v732
    %v734 = vadd.f32 %v733, 1.0
    %v735 = vrcp.pop %v734
    %v736 = vmul.f32 1.0, %v735
    %v737 = vxor.u32 %v728, 2147483648
    %v738 = vmul.f32 %v737, 1.442695
    %v739 = vpow.pop %v738
    %v740 = vadd.f32 %v739, 1.0
    %v741 = vrcp.pop %v740
    %v742 = vmul.f32 1.0, %v741
    %v743 = vxor.u32 %v729, 2147483648
    %v744 = vmul.f32 %v743, 1.442695
    %v745 = vpow.pop %v744
    %v746 = vadd.f32 %v745, 1.0
    %v747 = vrcp.pop %v746
    %v748 = vmul.f32 1.0, %v747
    %v749 = vtanh.pop %v730
    %v750 = vmul.f32 %v742, %v576
    %v751 = vmul.f32 %v736, %v749
    %v752 = vadd.f32 %v750, %v751
    %v753 = vtanh.pop %v752
    %v754 = vmul.f32 %v748, %v753
    %vm755 = vcmp.lt.s32.totalorder %v171, 96
    %v756 = vsel %vm755, %v754, %v575
    %v757 = vsel %vm755, %v752, %v576
    %758 = vset.pattern.permute.xlu0 3
    %759 = vperm.xlu0 %758, %v103
    %v760 = vpop.permute.xlu0 %759
    %v762 = vmul.f32 %v760, %v181
    %v763 = vmul.f32 %v760, %v185
    %v764 = vmul.f32 %v760, %v189
    %v765 = vmul.f32 %v760, %v193
    %766 = vmatprep.subr.mxu0 %v165
    %767 = vmatpush1.msra.mxu0 %v164
    %768 = vmatprep.subr.mxu0 %v161
    %769 = vmatpush1.msra.mxu0 %v160
    %770 = vmatprep.subr.mxu0 %v157
    %771 = vmatpush1.msra.mxu0 %v156
    %772 = vmatprep.subr.mxu0 %v153
    %773 = vmatpush1.msra.mxu0 %v152
    %774 = vmatprep.subr.mxu0 %v149
    %775 = vmatpush1.msra.mxu0 %v148
    %776 = vmatprep.subr.mxu0 %v145
    %777 = vmatpush1.msra.mxu0 %v144
    %778 = vmatprep.subr.mxu0 %v141
    %779 = vmatpush1.msra.mxu0 %v140
    %780 = vmatprep.subr.mxu0 %v137
    %781 = vmatpush1.msra.mxu0 %v136
    %782 = vmatprep.subr.mxu0 %v133
    %783 = vmatpush1.msra.mxu0 %v132
    %784 = vmatprep.subr.mxu0 %v129
    %785 = vmatpush1.msra.mxu0 %v128
    %786 = vmatprep.subr.mxu0 %v125
    %787 = vmatpush1.msra.mxu0 %v124
    %788 = vmatprep.subr.mxu0 %v121
    %789 = vmatpush1.msra.mxu0 %v120
    %790 = vmatprep.subr.mxu0 %v117
    %791 = vmatpush1.msra.mxu0 %v116
    %792 = vmatprep.subr.mxu0 %v113
    %793 = vmatpush1.msra.mxu0 %v112
    %794 = vmatprep.subr.mxu0 %v109
    %795 = vmatpush1.msra.mxu0 %v108
    %796 = vmatprep.subr.mxu0 %v105
    %797 = vmatpush1.msra.mxu0 %v104
    %798 = vmatprep.subr.mxu0 0.0
    %799 = vmatpush2.msra.mxu0 0.0
    %800 = vmatprep.subr.mxu0 0.0
    %801 = vmatpush2.msra.mxu0 0.0
    %802 = vmatprep.subr.mxu0 0.0
    %803 = vmatpush2.msra.mxu0 0.0
    %804 = vmatprep.subr.mxu0 0.0
    %805 = vmatpush2.msra.mxu0 0.0
    %806 = vmatprep.subr.mxu0 0.0
    %807 = vmatpush2.msra.mxu0 0.0
    %808 = vmatprep.subr.mxu0 0.0
    %809 = vmatpush2.msra.mxu0 0.0
    %810 = vmatprep.subr.mxu0 0.0
    %811 = vmatpush2.msra.mxu0 0.0
    %812 = vmatprep.subr.mxu0 0.0
    %813 = vmatpush2.msra.mxu0 0.0
    %814 = vmatprep.subr.mxu0 0.0
    %815 = vmatpush2.msra.mxu0 0.0
    %816 = vmatprep.subr.mxu0 0.0
    %817 = vmatpush2.msra.mxu0 0.0
    %818 = vmatprep.subr.mxu0 0.0
    %819 = vmatpush2.msra.mxu0 0.0
    %820 = vmatprep.subr.mxu0 0.0
    %821 = vmatpush2.msra.mxu0 0.0
    %822 = vmatprep.subr.mxu0 0.0
    %823 = vmatpush2.msra.mxu0 0.0
    %824 = vmatprep.subr.mxu0 0.0
    %825 = vmatpush2.msra.mxu0 0.0
    %826 = vmatprep.subr.mxu0 0.0
    %827 = vmatpush2.msra.mxu0 0.0
    %828 = vmatprep.subr.mxu0 0.0
    %829 = vmatpush2.msra.mxu0 0.0
    %830 = vmatprep.mubr.f32.mxu0 0.0
    %831 = vmatmul.mubr.f32.gmra.mxu0 %v756
    %v832 = vpop.f32.mrf.mxu0
    %v833 = vadd.f32 %v762, %v832
    %v834 = vpop.f32.mrf.mxu0
    %v835 = vadd.f32 %v763, %v834
    %836 = vdwg.mxu0
    %837 = vmatprep.subr.mxu0 %v167
    %838 = vmatpush1.msra.mxu0 %v166
    %839 = vmatprep.subr.mxu0 %v163
    %840 = vmatpush1.msra.mxu0 %v162
    %841 = vmatprep.subr.mxu0 %v159
    %842 = vmatpush1.msra.mxu0 %v158
    %843 = vmatprep.subr.mxu0 %v155
    %844 = vmatpush1.msra.mxu0 %v154
    %845 = vmatprep.subr.mxu0 %v151
    %846 = vmatpush1.msra.mxu0 %v150
    %847 = vmatprep.subr.mxu0 %v147
    %848 = vmatpush1.msra.mxu0 %v146
    %849 = vmatprep.subr.mxu0 %v143
    %850 = vmatpush1.msra.mxu0 %v142
    %851 = vmatprep.subr.mxu0 %v139
    %852 = vmatpush1.msra.mxu0 %v138
    %853 = vmatprep.subr.mxu0 %v135
    %854 = vmatpush1.msra.mxu0 %v134
    %855 = vmatprep.subr.mxu0 %v131
    %856 = vmatpush1.msra.mxu0 %v130
    %857 = vmatprep.subr.mxu0 %v127
    %858 = vmatpush1.msra.mxu0 %v126
    %859 = vmatprep.subr.mxu0 %v123
    %860 = vmatpush1.msra.mxu0 %v122
    %861 = vmatprep.subr.mxu0 %v119
    %862 = vmatpush1.msra.mxu0 %v118
    %863 = vmatprep.subr.mxu0 %v115
    %864 = vmatpush1.msra.mxu0 %v114
    %865 = vmatprep.subr.mxu0 %v111
    %866 = vmatpush1.msra.mxu0 %v110
    %867 = vmatprep.subr.mxu0 %v107
    %868 = vmatpush1.msra.mxu0 %v106
    %869 = vmatprep.subr.mxu0 0.0
    %870 = vmatpush2.msra.mxu0 0.0
    %871 = vmatprep.subr.mxu0 0.0
    %872 = vmatpush2.msra.mxu0 0.0
    %873 = vmatprep.subr.mxu0 0.0
    %874 = vmatpush2.msra.mxu0 0.0
    %875 = vmatprep.subr.mxu0 0.0
    %876 = vmatpush2.msra.mxu0 0.0
    %877 = vmatprep.subr.mxu0 0.0
    %878 = vmatpush2.msra.mxu0 0.0
    %879 = vmatprep.subr.mxu0 0.0
    %880 = vmatpush2.msra.mxu0 0.0
    %881 = vmatprep.subr.mxu0 0.0
    %882 = vmatpush2.msra.mxu0 0.0
    %883 = vmatprep.subr.mxu0 0.0
    %884 = vmatpush2.msra.mxu0 0.0
    %885 = vmatprep.subr.mxu0 0.0
    %886 = vmatpush2.msra.mxu0 0.0
    %887 = vmatprep.subr.mxu0 0.0
    %888 = vmatpush2.msra.mxu0 0.0
    %889 = vmatprep.subr.mxu0 0.0
    %890 = vmatpush2.msra.mxu0 0.0
    %891 = vmatprep.subr.mxu0 0.0
    %892 = vmatpush2.msra.mxu0 0.0
    %893 = vmatprep.subr.mxu0 0.0
    %894 = vmatpush2.msra.mxu0 0.0
    %895 = vmatprep.subr.mxu0 0.0
    %896 = vmatpush2.msra.mxu0 0.0
    %897 = vmatprep.subr.mxu0 0.0
    %898 = vmatpush2.msra.mxu0 0.0
    %899 = vmatprep.subr.mxu0 0.0
    %900 = vmatpush2.msra.mxu0 0.0
    %901 = vmatprep.mubr.f32.mxu0 0.0
    %902 = vmatmul.mubr.f32.gmra.mxu0 %v756
    %v903 = vpop.f32.mrf.mxu0
    %v904 = vadd.f32 %v764, %v903
    %v905 = vpop.f32.mrf.mxu0
    %v906 = vadd.f32 %v765, %v905
    %907 = vdwg.mxu0
    %v908 = vadd.f32 %v833, %v348
    %v909 = vadd.f32 %v835, %v352
    %v910 = vadd.f32 %v904, %v356
    %v911 = vadd.f32 %v906, %v360
    %v912 = vxor.u32 %v908, 2147483648
    %v913 = vmul.f32 %v912, 1.442695
    %v914 = vpow.pop %v913
    %v915 = vadd.f32 %v914, 1.0
    %v916 = vrcp.pop %v915
    %v917 = vmul.f32 1.0, %v916
    %v918 = vxor.u32 %v909, 2147483648
    %v919 = vmul.f32 %v918, 1.442695
    %v920 = vpow.pop %v919
    %v921 = vadd.f32 %v920, 1.0
    %v922 = vrcp.pop %v921
    %v923 = vmul.f32 1.0, %v922
    %v924 = vxor.u32 %v910, 2147483648
    %v925 = vmul.f32 %v924, 1.442695
    %v926 = vpow.pop %v925
    %v927 = vadd.f32 %v926, 1.0
    %v928 = vrcp.pop %v927
    %v929 = vmul.f32 1.0, %v928
    %v930 = vtanh.pop %v911
    %v931 = vmul.f32 %v923, %v757
    %v932 = vmul.f32 %v917, %v930
    %v933 = vadd.f32 %v931, %v932
    %v934 = vtanh.pop %v933
    %v935 = vmul.f32 %v929, %v934
    %936 = vset.pattern.permute.xlu0 4
    %937 = vperm.xlu0 %936, %v103
    %v938 = vpop.permute.xlu0 %937
    %v940 = vmul.f32 %v938, %v181
    %v941 = vmul.f32 %v938, %v185
    %v942 = vmul.f32 %v938, %v189
    %v943 = vmul.f32 %v938, %v193
    %944 = vmatprep.subr.mxu0 %v165
    %945 = vmatpush1.msra.mxu0 %v164
    %946 = vmatprep.subr.mxu0 %v161
    %947 = vmatpush1.msra.mxu0 %v160
    %948 = vmatprep.subr.mxu0 %v157
    %949 = vmatpush1.msra.mxu0 %v156
    %950 = vmatprep.subr.mxu0 %v153
    %951 = vmatpush1.msra.mxu0 %v152
    %952 = vmatprep.subr.mxu0 %v149
    %953 = vmatpush1.msra.mxu0 %v148
    %954 = vmatprep.subr.mxu0 %v145
    %955 = vmatpush1.msra.mxu0 %v144
    %956 = vmatprep.subr.mxu0 %v141
    %957 = vmatpush1.msra.mxu0 %v140
    %958 = vmatprep.subr.mxu0 %v137
    %959 = vmatpush1.msra.mxu0 %v136
    %960 = vmatprep.subr.mxu0 %v133
    %961 = vmatpush1.msra.mxu0 %v132
    %962 = vmatprep.subr.mxu0 %v129
    %963 = vmatpush1.msra.mxu0 %v128
    %964 = vmatprep.subr.mxu0 %v125
    %965 = vmatpush1.msra.mxu0 %v124
    %966 = vmatprep.subr.mxu0 %v121
    %967 = vmatpush1.msra.mxu0 %v120
    %968 = vmatprep.subr.mxu0 %v117
    %969 = vmatpush1.msra.mxu0 %v116
    %970 = vmatprep.subr.mxu0 %v113
    %971 = vmatpush1.msra.mxu0 %v112
    %972 = vmatprep.subr.mxu0 %v109
    %973 = vmatpush1.msra.mxu0 %v108
    %974 = vmatprep.subr.mxu0 %v105
    %975 = vmatpush1.msra.mxu0 %v104
    %976 = vmatprep.subr.mxu0 0.0
    %977 = vmatpush2.msra.mxu0 0.0
    %978 = vmatprep.subr.mxu0 0.0
    %979 = vmatpush2.msra.mxu0 0.0
    %980 = vmatprep.subr.mxu0 0.0
    %981 = vmatpush2.msra.mxu0 0.0
    %982 = vmatprep.subr.mxu0 0.0
    %983 = vmatpush2.msra.mxu0 0.0
    %984 = vmatprep.subr.mxu0 0.0
    %985 = vmatpush2.msra.mxu0 0.0
    %986 = vmatprep.subr.mxu0 0.0
    %987 = vmatpush2.msra.mxu0 0.0
    %988 = vmatprep.subr.mxu0 0.0
    %989 = vmatpush2.msra.mxu0 0.0
    %990 = vmatprep.subr.mxu0 0.0
    %991 = vmatpush2.msra.mxu0 0.0
    %992 = vmatprep.subr.mxu0 0.0
    %993 = vmatpush2.msra.mxu0 0.0
    %994 = vmatprep.subr.mxu0 0.0
    %995 = vmatpush2.msra.mxu0 0.0
    %996 = vmatprep.subr.mxu0 0.0
    %997 = vmatpush2.msra.mxu0 0.0
    %998 = vmatprep.subr.mxu0 0.0
    %999 = vmatpush2.msra.mxu0 0.0
    %1000 = vmatprep.subr.mxu0 0.0
    %1001 = vmatpush2.msra.mxu0 0.0
    %1002 = vmatprep.subr.mxu0 0.0
    %1003 = vmatpush2.msra.mxu0 0.0
    %1004 = vmatprep.subr.mxu0 0.0
    %1005 = vmatpush2.msra.mxu0 0.0
    %1006 = vmatprep.subr.mxu0 0.0
    %1007 = vmatpush2.msra.mxu0 0.0
    %1008 = vmatprep.mubr.f32.mxu0 0.0
    %1009 = vmatmul.mubr.f32.gmra.mxu0 %v935
    %v1010 = vpop.f32.mrf.mxu0
    %v1011 = vadd.f32 %v940, %v1010
    %v1012 = vpop.f32.mrf.mxu0
    %v1013 = vadd.f32 %v941, %v1012
    %1014 = vdwg.mxu0
    %1015 = vmatprep.subr.mxu0 %v167
    %1016 = vmatpush1.msra.mxu0 %v166
    %1017 = vmatprep.subr.mxu0 %v163
    %1018 = vmatpush1.msra.mxu0 %v162
    %1019 = vmatprep.subr.mxu0 %v159
    %1020 = vmatpush1.msra.mxu0 %v158
    %1021 = vmatprep.subr.mxu0 %v155
    %1022 = vmatpush1.msra.mxu0 %v154
    %1023 = vmatprep.subr.mxu0 %v151
    %1024 = vmatpush1.msra.mxu0 %v150
    %1025 = vmatprep.subr.mxu0 %v147
    %1026 = vmatpush1.msra.mxu0 %v146
    %1027 = vmatprep.subr.mxu0 %v143
    %1028 = vmatpush1.msra.mxu0 %v142
    %1029 = vmatprep.subr.mxu0 %v139
    %1030 = vmatpush1.msra.mxu0 %v138
    %1031 = vmatprep.subr.mxu0 %v135
    %1032 = vmatpush1.msra.mxu0 %v134
    %1033 = vmatprep.subr.mxu0 %v131
    %1034 = vmatpush1.msra.mxu0 %v130
    %1035 = vmatprep.subr.mxu0 %v127
    %1036 = vmatpush1.msra.mxu0 %v126
    %1037 = vmatprep.subr.mxu0 %v123
    %1038 = vmatpush1.msra.mxu0 %v122
    %1039 = vmatprep.subr.mxu0 %v119
    %1040 = vmatpush1.msra.mxu0 %v118
    %1041 = vmatprep.subr.mxu0 %v115
    %1042 = vmatpush1.msra.mxu0 %v114
    %1043 = vmatprep.subr.mxu0 %v111
    %1044 = vmatpush1.msra.mxu0 %v110
    %1045 = vmatprep.subr.mxu0 %v107
    %1046 = vmatpush1.msra.mxu0 %v106
    %1047 = vmatprep.subr.mxu0 0.0
    %1048 = vmatpush2.msra.mxu0 0.0
    %1049 = vmatprep.subr.mxu0 0.0
    %1050 = vmatpush2.msra.mxu0 0.0
    %1051 = vmatprep.subr.mxu0 0.0
    %1052 = vmatpush2.msra.mxu0 0.0
    %1053 = vmatprep.subr.mxu0 0.0
    %1054 = vmatpush2.msra.mxu0 0.0
    %1055 = vmatprep.subr.mxu0 0.0
    %1056 = vmatpush2.msra.mxu0 0.0
    %1057 = vmatprep.subr.mxu0 0.0
    %1058 = vmatpush2.msra.mxu0 0.0
    %1059 = vmatprep.subr.mxu0 0.0
    %1060 = vmatpush2.msra.mxu0 0.0
    %1061 = vmatprep.subr.mxu0 0.0
    %1062 = vmatpush2.msra.mxu0 0.0
    %1063 = vmatprep.subr.mxu0 0.0
    %1064 = vmatpush2.msra.mxu0 0.0
    %1065 = vmatprep.subr.mxu0 0.0
    %1066 = vmatpush2.msra.mxu0 0.0
    %1067 = vmatprep.subr.mxu0 0.0
    %1068 = vmatpush2.msra.mxu0 0.0
    %1069 = vmatprep.subr.mxu0 0.0
    %1070 = vmatpush2.msra.mxu0 0.0
    %1071 = vmatprep.subr.mxu0 0.0
    %1072 = vmatpush2.msra.mxu0 0.0
    %1073 = vmatprep.subr.mxu0 0.0
    %1074 = vmatpush2.msra.mxu0 0.0
    %1075 = vmatprep.subr.mxu0 0.0
    %1076 = vmatpush2.msra.mxu0 0.0
    %1077 = vmatprep.subr.mxu0 0.0
    %1078 = vmatpush2.msra.mxu0 0.0
    %1079 = vmatprep.mubr.f32.mxu0 0.0
    %1080 = vmatmul.mubr.f32.gmra.mxu0 %v935
    %v1081 = vpop.f32.mrf.mxu0
    %v1082 = vadd.f32 %v942, %v1081
    %v1083 = vpop.f32.mrf.mxu0
    %v1084 = vadd.f32 %v943, %v1083
    %1085 = vdwg.mxu0
    %v1086 = vadd.f32 %v1011, %v348
    %v1087 = vadd.f32 %v1013, %v352
    %v1088 = vadd.f32 %v1082, %v356
    %v1089 = vadd.f32 %v1084, %v360
    %v1090 = vxor.u32 %v1086, 2147483648
    %v1091 = vmul.f32 %v1090, 1.442695
    %v1092 = vpow.pop %v1091
    %v1093 = vadd.f32 %v1092, 1.0
    %v1094 = vrcp.pop %v1093
    %v1095 = vmul.f32 1.0, %v1094
    %v1096 = vxor.u32 %v1087, 2147483648
    %v1097 = vmul.f32 %v1096, 1.442695
    %v1098 = vpow.pop %v1097
    %v1099 = vadd.f32 %v1098, 1.0
    %v1100 = vrcp.pop %v1099
    %v1101 = vmul.f32 1.0, %v1100
    %v1102 = vxor.u32 %v1088, 2147483648
    %v1103 = vmul.f32 %v1102, 1.442695
    %v1104 = vpow.pop %v1103
    %v1105 = vadd.f32 %v1104, 1.0
    %v1106 = vrcp.pop %v1105
    %v1107 = vmul.f32 1.0, %v1106
    %v1108 = vtanh.pop %v1089
    %v1109 = vmul.f32 %v1101, %v933
    %v1110 = vmul.f32 %v1095, %v1108
    %v1111 = vadd.f32 %v1109, %v1110
    %v1112 = vtanh.pop %v1111
    %v1113 = vmul.f32 %v1107, %v1112
    %1114 = vset.pattern.permute.xlu0 5
    %1115 = vperm.xlu0 %1114, %v103
    %v1116 = vpop.permute.xlu0 %1115
    %v1118 = vmul.f32 %v1116, %v181
    %v1119 = vmul.f32 %v1116, %v185
    %v1120 = vmul.f32 %v1116, %v189
    %v1121 = vmul.f32 %v1116, %v193
    %1122 = vmatprep.subr.mxu0 %v165
    %1123 = vmatpush1.msra.mxu0 %v164
    %1124 = vmatprep.subr.mxu0 %v161
    %1125 = vmatpush1.msra.mxu0 %v160
    %1126 = vmatprep.subr.mxu0 %v157
    %1127 = vmatpush1.msra.mxu0 %v156
    %1128 = vmatprep.subr.mxu0 %v153
    %1129 = vmatpush1.msra.mxu0 %v152
    %1130 = vmatprep.subr.mxu0 %v149
    %1131 = vmatpush1.msra.mxu0 %v148
    %1132 = vmatprep.subr.mxu0 %v145
    %1133 = vmatpush1.msra.mxu0 %v144
    %1134 = vmatprep.subr.mxu0 %v141
    %1135 = vmatpush1.msra.mxu0 %v140
    %1136 = vmatprep.subr.mxu0 %v137
    %1137 = vmatpush1.msra.mxu0 %v136
    %1138 = vmatprep.subr.mxu0 %v133
    %1139 = vmatpush1.msra.mxu0 %v132
    %1140 = vmatprep.subr.mxu0 %v129
    %1141 = vmatpush1.msra.mxu0 %v128
    %1142 = vmatprep.subr.mxu0 %v125
    %1143 = vmatpush1.msra.mxu0 %v124
    %1144 = vmatprep.subr.mxu0 %v121
    %1145 = vmatpush1.msra.mxu0 %v120
    %1146 = vmatprep.subr.mxu0 %v117
    %1147 = vmatpush1.msra.mxu0 %v116
    %1148 = vmatprep.subr.mxu0 %v113
    %1149 = vmatpush1.msra.mxu0 %v112
    %1150 = vmatprep.subr.mxu0 %v109
    %1151 = vmatpush1.msra.mxu0 %v108
    %1152 = vmatprep.subr.mxu0 %v105
    %1153 = vmatpush1.msra.mxu0 %v104
    %1154 = vmatprep.subr.mxu0 0.0
    %1155 = vmatpush2.msra.mxu0 0.0
    %1156 = vmatprep.subr.mxu0 0.0
    %1157 = vmatpush2.msra.mxu0 0.0
    %1158 = vmatprep.subr.mxu0 0.0
    %1159 = vmatpush2.msra.mxu0 0.0
    %1160 = vmatprep.subr.mxu0 0.0
    %1161 = vmatpush2.msra.mxu0 0.0
    %1162 = vmatprep.subr.mxu0 0.0
    %1163 = vmatpush2.msra.mxu0 0.0
    %1164 = vmatprep.subr.mxu0 0.0
    %1165 = vmatpush2.msra.mxu0 0.0
    %1166 = vmatprep.subr.mxu0 0.0
    %1167 = vmatpush2.msra.mxu0 0.0
    %1168 = vmatprep.subr.mxu0 0.0
    %1169 = vmatpush2.msra.mxu0 0.0
    %1170 = vmatprep.subr.mxu0 0.0
    %1171 = vmatpush2.msra.mxu0 0.0
    %1172 = vmatprep.subr.mxu0 0.0
    %1173 = vmatpush2.msra.mxu0 0.0
    %1174 = vmatprep.subr.mxu0 0.0
    %1175 = vmatpush2.msra.mxu0 0.0
    %1176 = vmatprep.subr.mxu0 0.0
    %1177 = vmatpush2.msra.mxu0 0.0
    %1178 = vmatprep.subr.mxu0 0.0
    %1179 = vmatpush2.msra.mxu0 0.0
    %1180 = vmatprep.subr.mxu0 0.0
    %1181 = vmatpush2.msra.mxu0 0.0
    %1182 = vmatprep.subr.mxu0 0.0
    %1183 = vmatpush2.msra.mxu0 0.0
    %1184 = vmatprep.subr.mxu0 0.0
    %1185 = vmatpush2.msra.mxu0 0.0
    %1186 = vmatprep.mubr.f32.mxu0 0.0
    %1187 = vmatmul.mubr.f32.gmra.mxu0 %v1113
    %v1188 = vpop.f32.mrf.mxu0
    %v1189 = vadd.f32 %v1118, %v1188
    %v1190 = vpop.f32.mrf.mxu0
    %v1191 = vadd.f32 %v1119, %v1190
    %1192 = vdwg.mxu0
    %1193 = vmatprep.subr.mxu0 %v167
    %1194 = vmatpush1.msra.mxu0 %v166
    %1195 = vmatprep.subr.mxu0 %v163
    %1196 = vmatpush1.msra.mxu0 %v162
    %1197 = vmatprep.subr.mxu0 %v159
    %1198 = vmatpush1.msra.mxu0 %v158
    %1199 = vmatprep.subr.mxu0 %v155
    %1200 = vmatpush1.msra.mxu0 %v154
    %1201 = vmatprep.subr.mxu0 %v151
    %1202 = vmatpush1.msra.mxu0 %v150
    %1203 = vmatprep.subr.mxu0 %v147
    %1204 = vmatpush1.msra.mxu0 %v146
    %1205 = vmatprep.subr.mxu0 %v143
    %1206 = vmatpush1.msra.mxu0 %v142
    %1207 = vmatprep.subr.mxu0 %v139
    %1208 = vmatpush1.msra.mxu0 %v138
    %1209 = vmatprep.subr.mxu0 %v135
    %1210 = vmatpush1.msra.mxu0 %v134
    %1211 = vmatprep.subr.mxu0 %v131
    %1212 = vmatpush1.msra.mxu0 %v130
    %1213 = vmatprep.subr.mxu0 %v127
    %1214 = vmatpush1.msra.mxu0 %v126
    %1215 = vmatprep.subr.mxu0 %v123
    %1216 = vmatpush1.msra.mxu0 %v122
    %1217 = vmatprep.subr.mxu0 %v119
    %1218 = vmatpush1.msra.mxu0 %v118
    %1219 = vmatprep.subr.mxu0 %v115
    %1220 = vmatpush1.msra.mxu0 %v114
    %1221 = vmatprep.subr.mxu0 %v111
    %1222 = vmatpush1.msra.mxu0 %v110
    %1223 = vmatprep.subr.mxu0 %v107
    %1224 = vmatpush1.msra.mxu0 %v106
    %1225 = vmatprep.subr.mxu0 0.0
    %1226 = vmatpush2.msra.mxu0 0.0
    %1227 = vmatprep.subr.mxu0 0.0
    %1228 = vmatpush2.msra.mxu0 0.0
    %1229 = vmatprep.subr.mxu0 0.0
    %1230 = vmatpush2.msra.mxu0 0.0
    %1231 = vmatprep.subr.mxu0 0.0
    %1232 = vmatpush2.msra.mxu0 0.0
    %1233 = vmatprep.subr.mxu0 0.0
    %1234 = vmatpush2.msra.mxu0 0.0
    %1235 = vmatprep.subr.mxu0 0.0
    %1236 = vmatpush2.msra.mxu0 0.0
    %1237 = vmatprep.subr.mxu0 0.0
    %1238 = vmatpush2.msra.mxu0 0.0
    %1239 = vmatprep.subr.mxu0 0.0
    %1240 = vmatpush2.msra.mxu0 0.0
    %1241 = vmatprep.subr.mxu0 0.0
    %1242 = vmatpush2.msra.mxu0 0.0
    %1243 = vmatprep.subr.mxu0 0.0
    %1244 = vmatpush2.msra.mxu0 0.0
    %1245 = vmatprep.subr.mxu0 0.0
    %1246 = vmatpush2.msra.mxu0 0.0
    %1247 = vmatprep.subr.mxu0 0.0
    %1248 = vmatpush2.msra.mxu0 0.0
    %1249 = vmatprep.subr.mxu0 0.0
    %1250 = vmatpush2.msra.mxu0 0.0
    %1251 = vmatprep.subr.mxu0 0.0
    %1252 = vmatpush2.msra.mxu0 0.0
    %1253 = vmatprep.subr.mxu0 0.0
    %1254 = vmatpush2.msra.mxu0 0.0
    %1255 = vmatprep.subr.mxu0 0.0
    %1256 = vmatpush2.msra.mxu0 0.0
    %1257 = vmatprep.mubr.f32.mxu0 0.0
    %1258 = vmatmul.mubr.f32.gmra.mxu0 %v1113
    %v1259 = vpop.f32.mrf.mxu0
    %v1260 = vadd.f32 %v1120, %v1259
    %v1261 = vpop.f32.mrf.mxu0
    %v1262 = vadd.f32 %v1121, %v1261
    %1263 = vdwg.mxu0
    %v1264 = vadd.f32 %v1189, %v348
    %v1265 = vadd.f32 %v1191, %v352
    %v1266 = vadd.f32 %v1260, %v356
    %v1267 = vadd.f32 %v1262, %v360
    %v1268 = vxor.u32 %v1264, 2147483648
    %v1269 = vmul.f32 %v1268, 1.442695
    %v1270 = vpow.pop %v1269
    %v1271 = vadd.f32 %v1270, 1.0
    %v1272 = vrcp.pop %v1271
    %v1273 = vmul.f32 1.0, %v1272
    %v1274 = vxor.u32 %v1265, 2147483648
    %v1275 = vmul.f32 %v1274, 1.442695
    %v1276 = vpow.pop %v1275
    %v1277 = vadd.f32 %v1276, 1.0
    %v1278 = vrcp.pop %v1277
    %v1279 = vmul.f32 1.0, %v1278
    %v1280 = vxor.u32 %v1266, 2147483648
    %v1281 = vmul.f32 %v1280, 1.442695
    %v1282 = vpow.pop %v1281
    %v1283 = vadd.f32 %v1282, 1.0
    %v1284 = vrcp.pop %v1283
    %v1285 = vmul.f32 1.0, %v1284
    %v1286 = vtanh.pop %v1267
    %v1287 = vmul.f32 %v1279, %v1111
    %v1288 = vmul.f32 %v1273, %v1286
    %v1289 = vadd.f32 %v1287, %v1288
    %v1290 = vtanh.pop %v1289
    %v1291 = vmul.f32 %v1285, %v1290
    %1292 = vset.pattern.permute.xlu0 6
    %1293 = vperm.xlu0 %1292, %v103
    %v1294 = vpop.permute.xlu0 %1293
    %v1296 = vmul.f32 %v1294, %v181
    %v1297 = vmul.f32 %v1294, %v185
    %v1298 = vmul.f32 %v1294, %v189
    %v1299 = vmul.f32 %v1294, %v193
    %1300 = vmatprep.subr.mxu0 %v165
    %1301 = vmatpush1.msra.mxu0 %v164
    %1302 = vmatprep.subr.mxu0 %v161
    %1303 = vmatpush1.msra.mxu0 %v160
    %1304 = vmatprep.subr.mxu0 %v157
    %1305 = vmatpush1.msra.mxu0 %v156
    %1306 = vmatprep.subr.mxu0 %v153
    %1307 = vmatpush1.msra.mxu0 %v152
    %1308 = vmatprep.subr.mxu0 %v149
    %1309 = vmatpush1.msra.mxu0 %v148
    %1310 = vmatprep.subr.mxu0 %v145
    %1311 = vmatpush1.msra.mxu0 %v144
    %1312 = vmatprep.subr.mxu0 %v141
    %1313 = vmatpush1.msra.mxu0 %v140
    %1314 = vmatprep.subr.mxu0 %v137
    %1315 = vmatpush1.msra.mxu0 %v136
    %1316 = vmatprep.subr.mxu0 %v133
    %1317 = vmatpush1.msra.mxu0 %v132
    %1318 = vmatprep.subr.mxu0 %v129
    %1319 = vmatpush1.msra.mxu0 %v128
    %1320 = vmatprep.subr.mxu0 %v125
    %1321 = vmatpush1.msra.mxu0 %v124
    %1322 = vmatprep.subr.mxu0 %v121
    %1323 = vmatpush1.msra.mxu0 %v120
    %1324 = vmatprep.subr.mxu0 %v117
    %1325 = vmatpush1.msra.mxu0 %v116
    %1326 = vmatprep.subr.mxu0 %v113
    %1327 = vmatpush1.msra.mxu0 %v112
    %1328 = vmatprep.subr.mxu0 %v109
    %1329 = vmatpush1.msra.mxu0 %v108
    %1330 = vmatprep.subr.mxu0 %v105
    %1331 = vmatpush1.msra.mxu0 %v104
    %1332 = vmatprep.subr.mxu0 0.0
    %1333 = vmatpush2.msra.mxu0 0.0
    %1334 = vmatprep.subr.mxu0 0.0
    %1335 = vmatpush2.msra.mxu0 0.0
    %1336 = vmatprep.subr.mxu0 0.0
    %1337 = vmatpush2.msra.mxu0 0.0
    %1338 = vmatprep.subr.mxu0 0.0
    %1339 = vmatpush2.msra.mxu0 0.0
    %1340 = vmatprep.subr.mxu0 0.0
    %1341 = vmatpush2.msra.mxu0 0.0
    %1342 = vmatprep.subr.mxu0 0.0
    %1343 = vmatpush2.msra.mxu0 0.0
    %1344 = vmatprep.subr.mxu0 0.0
    %1345 = vmatpush2.msra.mxu0 0.0
    %1346 = vmatprep.subr.mxu0 0.0
    %1347 = vmatpush2.msra.mxu0 0.0
    %1348 = vmatprep.subr.mxu0 0.0
    %1349 = vmatpush2.msra.mxu0 0.0
    %1350 = vmatprep.subr.mxu0 0.0
    %1351 = vmatpush2.msra.mxu0 0.0
    %1352 = vmatprep.subr.mxu0 0.0
    %1353 = vmatpush2.msra.mxu0 0.0
    %1354 = vmatprep.subr.mxu0 0.0
    %1355 = vmatpush2.msra.mxu0 0.0
    %1356 = vmatprep.subr.mxu0 0.0
    %1357 = vmatpush2.msra.mxu0 0.0
    %1358 = vmatprep.subr.mxu0 0.0
    %1359 = vmatpush2.msra.mxu0 0.0
    %1360 = vmatprep.subr.mxu0 0.0
    %1361 = vmatpush2.msra.mxu0 0.0
    %1362 = vmatprep.subr.mxu0 0.0
    %1363 = vmatpush2.msra.mxu0 0.0
    %1364 = vmatprep.mubr.f32.mxu0 0.0
    %1365 = vmatmul.mubr.f32.gmra.mxu0 %v1291
    %v1366 = vpop.f32.mrf.mxu0
    %v1367 = vadd.f32 %v1296, %v1366
    %v1368 = vpop.f32.mrf.mxu0
    %v1369 = vadd.f32 %v1297, %v1368
    %1370 = vdwg.mxu0
    %1371 = vmatprep.subr.mxu0 %v167
    %1372 = vmatpush1.msra.mxu0 %v166
    %1373 = vmatprep.subr.mxu0 %v163
    %1374 = vmatpush1.msra.mxu0 %v162
    %1375 = vmatprep.subr.mxu0 %v159
    %1376 = vmatpush1.msra.mxu0 %v158
    %1377 = vmatprep.subr.mxu0 %v155
    %1378 = vmatpush1.msra.mxu0 %v154
    %1379 = vmatprep.subr.mxu0 %v151
    %1380 = vmatpush1.msra.mxu0 %v150
    %1381 = vmatprep.subr.mxu0 %v147
    %1382 = vmatpush1.msra.mxu0 %v146
    %1383 = vmatprep.subr.mxu0 %v143
    %1384 = vmatpush1.msra.mxu0 %v142
    %1385 = vmatprep.subr.mxu0 %v139
    %1386 = vmatpush1.msra.mxu0 %v138
    %1387 = vmatprep.subr.mxu0 %v135
    %1388 = vmatpush1.msra.mxu0 %v134
    %1389 = vmatprep.subr.mxu0 %v131
    %1390 = vmatpush1.msra.mxu0 %v130
    %1391 = vmatprep.subr.mxu0 %v127
    %1392 = vmatpush1.msra.mxu0 %v126
    %1393 = vmatprep.subr.mxu0 %v123
    %1394 = vmatpush1.msra.mxu0 %v122
    %1395 = vmatprep.subr.mxu0 %v119
    %1396 = vmatpush1.msra.mxu0 %v118
    %1397 = vmatprep.subr.mxu0 %v115
    %1398 = vmatpush1.msra.mxu0 %v114
    %1399 = vmatprep.subr.mxu0 %v111
    %1400 = vmatpush1.msra.mxu0 %v110
    %1401 = vmatprep.subr.mxu0 %v107
    %1402 = vmatpush1.msra.mxu0 %v106
    %1403 = vmatprep.subr.mxu0 0.0
    %1404 = vmatpush2.msra.mxu0 0.0
    %1405 = vmatprep.subr.mxu0 0.0
    %1406 = vmatpush2.msra.mxu0 0.0
    %1407 = vmatprep.subr.mxu0 0.0
    %1408 = vmatpush2.msra.mxu0 0.0
    %1409 = vmatprep.subr.mxu0 0.0
    %1410 = vmatpush2.msra.mxu0 0.0
    %1411 = vmatprep.subr.mxu0 0.0
    %1412 = vmatpush2.msra.mxu0 0.0
    %1413 = vmatprep.subr.mxu0 0.0
    %1414 = vmatpush2.msra.mxu0 0.0
    %1415 = vmatprep.subr.mxu0 0.0
    %1416 = vmatpush2.msra.mxu0 0.0
    %1417 = vmatprep.subr.mxu0 0.0
    %1418 = vmatpush2.msra.mxu0 0.0
    %1419 = vmatprep.subr.mxu0 0.0
    %1420 = vmatpush2.msra.mxu0 0.0
    %1421 = vmatprep.subr.mxu0 0.0
    %1422 = vmatpush2.msra.mxu0 0.0
    %1423 = vmatprep.subr.mxu0 0.0
    %1424 = vmatpush2.msra.mxu0 0.0
    %1425 = vmatprep.subr.mxu0 0.0
    %1426 = vmatpush2.msra.mxu0 0.0
    %1427 = vmatprep.subr.mxu0 0.0
    %1428 = vmatpush2.msra.mxu0 0.0
    %1429 = vmatprep.subr.mxu0 0.0
    %1430 = vmatpush2.msra.mxu0 0.0
    %1431 = vmatprep.subr.mxu0 0.0
    %1432 = vmatpush2.msra.mxu0 0.0
    %1433 = vmatprep.subr.mxu0 0.0
    %1434 = vmatpush2.msra.mxu0 0.0
    %1435 = vmatprep.mubr.f32.mxu0 0.0
    %1436 = vmatmul.mubr.f32.gmra.mxu0 %v1291
    %v1437 = vpop.f32.mrf.mxu0
    %v1438 = vadd.f32 %v1298, %v1437
    %v1439 = vpop.f32.mrf.mxu0
    %v1440 = vadd.f32 %v1299, %v1439
    %1441 = vdwg.mxu0
    %v1442 = vadd.f32 %v1367, %v348
    %v1443 = vadd.f32 %v1369, %v352
    %v1444 = vadd.f32 %v1438, %v356
    %v1445 = vadd.f32 %v1440, %v360
    %v1446 = vxor.u32 %v1442, 2147483648
    %v1447 = vmul.f32 %v1446, 1.442695
    %v1448 = vpow.pop %v1447
    %v1449 = vadd.f32 %v1448, 1.0
    %v1450 = vrcp.pop %v1449
    %v1451 = vmul.f32 1.0, %v1450
    %v1452 = vxor.u32 %v1443, 2147483648
    %v1453 = vmul.f32 %v1452, 1.442695
    %v1454 = vpow.pop %v1453
    %v1455 = vadd.f32 %v1454, 1.0
    %v1456 = vrcp.pop %v1455
    %v1457 = vmul.f32 1.0, %v1456
    %v1458 = vxor.u32 %v1444, 2147483648
    %v1459 = vmul.f32 %v1458, 1.442695
    %v1460 = vpow.pop %v1459
    %v1461 = vadd.f32 %v1460, 1.0
    %v1462 = vrcp.pop %v1461
    %v1463 = vmul.f32 1.0, %v1462
    %v1464 = vtanh.pop %v1445
    %v1465 = vmul.f32 %v1457, %v1289
    %v1466 = vmul.f32 %v1451, %v1464
    %v1467 = vadd.f32 %v1465, %v1466
    %v1468 = vtanh.pop %v1467
    %v1469 = vmul.f32 %v1463, %v1468
    %1470 = vset.pattern.permute.xlu0 7
    %1471 = vperm.xlu0 %1470, %v103
    %v1472 = vpop.permute.xlu0 %1471
    %v1474 = vmul.f32 %v1472, %v181
    %v1475 = vmul.f32 %v1472, %v185
    %v1476 = vmul.f32 %v1472, %v189
    %v1477 = vmul.f32 %v1472, %v193
    %1478 = vmatprep.subr.mxu0 %v165
    %1479 = vmatpush1.msra.mxu0 %v164
    %1480 = vmatprep.subr.mxu0 %v161
    %1481 = vmatpush1.msra.mxu0 %v160
    %1482 = vmatprep.subr.mxu0 %v157
    %1483 = vmatpush1.msra.mxu0 %v156
    %1484 = vmatprep.subr.mxu0 %v153
    %1485 = vmatpush1.msra.mxu0 %v152
    %1486 = vmatprep.subr.mxu0 %v149
    %1487 = vmatpush1.msra.mxu0 %v148
    %1488 = vmatprep.subr.mxu0 %v145
    %1489 = vmatpush1.msra.mxu0 %v144
    %1490 = vmatprep.subr.mxu0 %v141
    %1491 = vmatpush1.msra.mxu0 %v140
    %1492 = vmatprep.subr.mxu0 %v137
    %1493 = vmatpush1.msra.mxu0 %v136
    %1494 = vmatprep.subr.mxu0 %v133
    %1495 = vmatpush1.msra.mxu0 %v132
    %1496 = vmatprep.subr.mxu0 %v129
    %1497 = vmatpush1.msra.mxu0 %v128
    %1498 = vmatprep.subr.mxu0 %v125
    %1499 = vmatpush1.msra.mxu0 %v124
    %1500 = vmatprep.subr.mxu0 %v121
    %1501 = vmatpush1.msra.mxu0 %v120
    %1502 = vmatprep.subr.mxu0 %v117
    %1503 = vmatpush1.msra.mxu0 %v116
    %1504 = vmatprep.subr.mxu0 %v113
    %1505 = vmatpush1.msra.mxu0 %v112
    %1506 = vmatprep.subr.mxu0 %v109
    %1507 = vmatpush1.msra.mxu0 %v108
    %1508 = vmatprep.subr.mxu0 %v105
    %1509 = vmatpush1.msra.mxu0 %v104
    %1510 = vmatprep.subr.mxu0 0.0
    %1511 = vmatpush2.msra.mxu0 0.0
    %1512 = vmatprep.subr.mxu0 0.0
    %1513 = vmatpush2.msra.mxu0 0.0
    %1514 = vmatprep.subr.mxu0 0.0
    %1515 = vmatpush2.msra.mxu0 0.0
    %1516 = vmatprep.subr.mxu0 0.0
    %1517 = vmatpush2.msra.mxu0 0.0
    %1518 = vmatprep.subr.mxu0 0.0
    %1519 = vmatpush2.msra.mxu0 0.0
    %1520 = vmatprep.subr.mxu0 0.0
    %1521 = vmatpush2.msra.mxu0 0.0
    %1522 = vmatprep.subr.mxu0 0.0
    %1523 = vmatpush2.msra.mxu0 0.0
    %1524 = vmatprep.subr.mxu0 0.0
    %1525 = vmatpush2.msra.mxu0 0.0
    %1526 = vmatprep.subr.mxu0 0.0
    %1527 = vmatpush2.msra.mxu0 0.0
    %1528 = vmatprep.subr.mxu0 0.0
    %1529 = vmatpush2.msra.mxu0 0.0
    %1530 = vmatprep.subr.mxu0 0.0
    %1531 = vmatpush2.msra.mxu0 0.0
    %1532 = vmatprep.subr.mxu0 0.0
    %1533 = vmatpush2.msra.mxu0 0.0
    %1534 = vmatprep.subr.mxu0 0.0
    %1535 = vmatpush2.msra.mxu0 0.0
    %1536 = vmatprep.subr.mxu0 0.0
    %1537 = vmatpush2.msra.mxu0 0.0
    %1538 = vmatprep.subr.mxu0 0.0
    %1539 = vmatpush2.msra.mxu0 0.0
    %1540 = vmatprep.subr.mxu0 0.0
    %1541 = vmatpush2.msra.mxu0 0.0
    %1542 = vmatprep.mubr.f32.mxu0 0.0
    %1543 = vmatmul.mubr.f32.gmra.mxu0 %v1469
    %v1544 = vpop.f32.mrf.mxu0
    %v1545 = vadd.f32 %v1474, %v1544
    %v1546 = vpop.f32.mrf.mxu0
    %v1547 = vadd.f32 %v1475, %v1546
    %1548 = vdwg.mxu0
    %1549 = vmatprep.subr.mxu0 %v167
    %1550 = vmatpush1.msra.mxu0 %v166
    %1551 = vmatprep.subr.mxu0 %v163
    %1552 = vmatpush1.msra.mxu0 %v162
    %1553 = vmatprep.subr.mxu0 %v159
    %1554 = vmatpush1.msra.mxu0 %v158
    %1555 = vmatprep.subr.mxu0 %v155
    %1556 = vmatpush1.msra.mxu0 %v154
    %1557 = vmatprep.subr.mxu0 %v151
    %1558 = vmatpush1.msra.mxu0 %v150
    %1559 = vmatprep.subr.mxu0 %v147
    %1560 = vmatpush1.msra.mxu0 %v146
    %1561 = vmatprep.subr.mxu0 %v143
    %1562 = vmatpush1.msra.mxu0 %v142
    %1563 = vmatprep.subr.mxu0 %v139
    %1564 = vmatpush1.msra.mxu0 %v138
    %1565 = vmatprep.subr.mxu0 %v135
    %1566 = vmatpush1.msra.mxu0 %v134
    %1567 = vmatprep.subr.mxu0 %v131
    %1568 = vmatpush1.msra.mxu0 %v130
    %1569 = vmatprep.subr.mxu0 %v127
    %1570 = vmatpush1.msra.mxu0 %v126
    %1571 = vmatprep.subr.mxu0 %v123
    %1572 = vmatpush1.msra.mxu0 %v122
    %1573 = vmatprep.subr.mxu0 %v119
    %1574 = vmatpush1.msra.mxu0 %v118
    %1575 = vmatprep.subr.mxu0 %v115
    %1576 = vmatpush1.msra.mxu0 %v114
    %1577 = vmatprep.subr.mxu0 %v111
    %1578 = vmatpush1.msra.mxu0 %v110
    %1579 = vmatprep.subr.mxu0 %v107
    %1580 = vmatpush1.msra.mxu0 %v106
    %1581 = vmatprep.subr.mxu0 0.0
    %1582 = vmatpush2.msra.mxu0 0.0
    %1583 = vmatprep.subr.mxu0 0.0
    %1584 = vmatpush2.msra.mxu0 0.0
    %1585 = vmatprep.subr.mxu0 0.0
    %1586 = vmatpush2.msra.mxu0 0.0
    %1587 = vmatprep.subr.mxu0 0.0
    %1588 = vmatpush2.msra.mxu0 0.0
    %1589 = vmatprep.subr.mxu0 0.0
    %1590 = vmatpush2.msra.mxu0 0.0
    %1591 = vmatprep.subr.mxu0 0.0
    %1592 = vmatpush2.msra.mxu0 0.0
    %1593 = vmatprep.subr.mxu0 0.0
    %1594 = vmatpush2.msra.mxu0 0.0
    %1595 = vmatprep.subr.mxu0 0.0
    %1596 = vmatpush2.msra.mxu0 0.0
    %1597 = vmatprep.subr.mxu0 0.0
    %1598 = vmatpush2.msra.mxu0 0.0
    %1599 = vmatprep.subr.mxu0 0.0
    %1600 = vmatpush2.msra.mxu0 0.0
    %1601 = vmatprep.subr.mxu0 0.0
    %1602 = vmatpush2.msra.mxu0 0.0
    %1603 = vmatprep.subr.mxu0 0.0
    %1604 = vmatpush2.msra.mxu0 0.0
    %1605 = vmatprep.subr.mxu0 0.0
    %1606 = vmatpush2.msra.mxu0 0.0
    %1607 = vmatprep.subr.mxu0 0.0
    %1608 = vmatpush2.msra.mxu0 0.0
    %1609 = vmatprep.subr.mxu0 0.0
    %1610 = vmatpush2.msra.mxu0 0.0
    %1611 = vmatprep.subr.mxu0 0.0
    %1612 = vmatpush2.msra.mxu0 0.0
    %1613 = vmatprep.mubr.f32.mxu0 0.0
    %1614 = vmatmul.mubr.f32.gmra.mxu0 %v1469
    %v1615 = vpop.f32.mrf.mxu0
    %v1616 = vadd.f32 %v1476, %v1615
    %v1617 = vpop.f32.mrf.mxu0
    %v1618 = vadd.f32 %v1477, %v1617
    %1619 = vdwg.mxu0
    %v1620 = vadd.f32 %v1545, %v348
    %v1621 = vadd.f32 %v1547, %v352
    %v1622 = vadd.f32 %v1616, %v356
    %v1623 = vadd.f32 %v1618, %v360
    %v1624 = vxor.u32 %v1620, 2147483648
    %v1625 = vmul.f32 %v1624, 1.442695
    %v1626 = vpow.pop %v1625
    %v1627 = vadd.f32 %v1626, 1.0
    %v1628 = vrcp.pop %v1627
    %v1629 = vmul.f32 1.0, %v1628
    %v1630 = vxor.u32 %v1621, 2147483648
    %v1631 = vmul.f32 %v1630, 1.442695
    %v1632 = vpow.pop %v1631
    %v1633 = vadd.f32 %v1632, 1.0
    %v1634 = vrcp.pop %v1633
    %v1635 = vmul.f32 1.0, %v1634
    %v1636 = vxor.u32 %v1622, 2147483648
    %v1637 = vmul.f32 %v1636, 1.442695
    %v1638 = vpow.pop %v1637
    %v1639 = vadd.f32 %v1638, 1.0
    %v1640 = vrcp.pop %v1639
    %v1641 = vmul.f32 1.0, %v1640
    %v1642 = vtanh.pop %v1623
    %v1643 = vmul.f32 %v1635, %v1467
    %v1644 = vmul.f32 %v1629, %v1642
    %v1645 = vadd.f32 %v1643, %v1644
    %v1646 = vtanh.pop %v1645
    %v1647 = vmul.f32 %v1641, %v1646
    %1648 = vmatprep.subr.mxu0 %v165
    %1649 = vmatpush1.msra.mxu0 %v164
    %1650 = vmatprep.subr.mxu0 %v161
    %1651 = vmatpush1.msra.mxu0 %v160
    %1652 = vmatprep.subr.mxu0 %v157
    %1653 = vmatpush1.msra.mxu0 %v156
    %1654 = vmatprep.subr.mxu0 %v153
    %1655 = vmatpush1.msra.mxu0 %v152
    %1656 = vmatprep.subr.mxu0 %v149
    %1657 = vmatpush1.msra.mxu0 %v148
    %1658 = vmatprep.subr.mxu0 %v145
    %1659 = vmatpush1.msra.mxu0 %v144
    %1660 = vmatprep.subr.mxu0 %v141
    %1661 = vmatpush1.msra.mxu0 %v140
    %1662 = vmatprep.subr.mxu0 %v137
    %1663 = vmatpush1.msra.mxu0 %v136
    %1664 = vmatprep.subr.mxu0 %v133
    %1665 = vmatpush1.msra.mxu0 %v132
    %1666 = vmatprep.subr.mxu0 %v129
    %1667 = vmatpush1.msra.mxu0 %v128
    %1668 = vmatprep.subr.mxu0 %v125
    %1669 = vmatpush1.msra.mxu0 %v124
    %1670 = vmatprep.subr.mxu0 %v121
    %1671 = vmatpush1.msra.mxu0 %v120
    %1672 = vmatprep.subr.mxu0 %v117
    %1673 = vmatpush1.msra.mxu0 %v116
    %1674 = vmatprep.subr.mxu0 %v113
    %1675 = vmatpush1.msra.mxu0 %v112
    %1676 = vmatprep.subr.mxu0 %v109
    %1677 = vmatpush1.msra.mxu0 %v108
    %1678 = vmatprep.subr.mxu0 %v105
    %1679 = vmatpush1.msra.mxu0 %v104
    %1680 = vmatprep.subr.mxu0 0.0
    %1681 = vmatpush2.msra.mxu0 0.0
    %1682 = vmatprep.subr.mxu0 0.0
    %1683 = vmatpush2.msra.mxu0 0.0
    %1684 = vmatprep.subr.mxu0 0.0
    %1685 = vmatpush2.msra.mxu0 0.0
    %1686 = vmatprep.subr.mxu0 0.0
    %1687 = vmatpush2.msra.mxu0 0.0
    %1688 = vmatprep.subr.mxu0 0.0
    %1689 = vmatpush2.msra.mxu0 0.0
    %1690 = vmatprep.subr.mxu0 0.0
    %1691 = vmatpush2.msra.mxu0 0.0
    %1692 = vmatprep.subr.mxu0 0.0
    %1693 = vmatpush2.msra.mxu0 0.0
    %1694 = vmatprep.subr.mxu0 0.0
    %1695 = vmatpush2.msra.mxu0 0.0
    %1696 = vmatprep.subr.mxu0 0.0
    %1697 = vmatpush2.msra.mxu0 0.0
    %1698 = vmatprep.subr.mxu0 0.0
    %1699 = vmatpush2.msra.mxu0 0.0
    %1700 = vmatprep.subr.mxu0 0.0
    %1701 = vmatpush2.msra.mxu0 0.0
    %1702 = vmatprep.subr.mxu0 0.0
    %1703 = vmatpush2.msra.mxu0 0.0
    %1704 = vmatprep.subr.mxu0 0.0
    %1705 = vmatpush2.msra.mxu0 0.0
    %1706 = vmatprep.subr.mxu0 0.0
    %1707 = vmatpush2.msra.mxu0 0.0
    %1708 = vmatprep.subr.mxu0 0.0
    %1709 = vmatpush2.msra.mxu0 0.0
    %1710 = vmatprep.subr.mxu0 0.0
    %1711 = vmatpush2.msra.mxu0 0.0
    %1712 = vmatprep.mubr.f32.mxu0 0.0
    %1713 = vmatmul.mubr.f32.gmra.mxu0 %v1647
    %v1714 = vpop.f32.mrf.mxu0
    %v1715 = vadd.f32 %v1474, %v1714
    %v1716 = vpop.f32.mrf.mxu0
    %v1717 = vadd.f32 %v1475, %v1716
    %1718 = vdwg.mxu0
    %1719 = vmatprep.subr.mxu0 %v167
    %1720 = vmatpush1.msra.mxu0 %v166
    %1721 = vmatprep.subr.mxu0 %v163
    %1722 = vmatpush1.msra.mxu0 %v162
    %1723 = vmatprep.subr.mxu0 %v159
    %1724 = vmatpush1.msra.mxu0 %v158
    %1725 = vmatprep.subr.mxu0 %v155
    %1726 = vmatpush1.msra.mxu0 %v154
    %1727 = vmatprep.subr.mxu0 %v151
    %1728 = vmatpush1.msra.mxu0 %v150
    %1729 = vmatprep.subr.mxu0 %v147
    %1730 = vmatpush1.msra.mxu0 %v146
    %1731 = vmatprep.subr.mxu0 %v143
    %1732 = vmatpush1.msra.mxu0 %v142
    %1733 = vmatprep.subr.mxu0 %v139
    %1734 = vmatpush1.msra.mxu0 %v138
    %1735 = vmatprep.subr.mxu0 %v135
    %1736 = vmatpush1.msra.mxu0 %v134
    %1737 = vmatprep.subr.mxu0 %v131
    %1738 = vmatpush1.msra.mxu0 %v130
    %1739 = vmatprep.subr.mxu0 %v127
    %1740 = vmatpush1.msra.mxu0 %v126
    %1741 = vmatprep.subr.mxu0 %v123
    %1742 = vmatpush1.msra.mxu0 %v122
    %1743 = vmatprep.subr.mxu0 %v119
    %1744 = vmatpush1.msra.mxu0 %v118
    %1745 = vmatprep.subr.mxu0 %v115
    %1746 = vmatpush1.msra.mxu0 %v114
    %1747 = vmatprep.subr.mxu0 %v111
    %1748 = vmatpush1.msra.mxu0 %v110
    %1749 = vmatprep.subr.mxu0 %v107
    %1750 = vmatpush1.msra.mxu0 %v106
    %1751 = vmatprep.subr.mxu0 0.0
    %1752 = vmatpush2.msra.mxu0 0.0
    %1753 = vmatprep.subr.mxu0 0.0
    %1754 = vmatpush2.msra.mxu0 0.0
    %1755 = vmatprep.subr.mxu0 0.0
    %1756 = vmatpush2.msra.mxu0 0.0
    %1757 = vmatprep.subr.mxu0 0.0
    %1758 = vmatpush2.msra.mxu0 0.0
    %1759 = vmatprep.subr.mxu0 0.0
    %1760 = vmatpush2.msra.mxu0 0.0
    %1761 = vmatprep.subr.mxu0 0.0
    %1762 = vmatpush2.msra.mxu0 0.0
    %1763 = vmatprep.subr.mxu0 0.0
    %1764 = vmatpush2.msra.mxu0 0.0
    %1765 = vmatprep.subr.mxu0 0.0
    %1766 = vmatpush2.msra.mxu0 0.0
    %1767 = vmatprep.subr.mxu0 0.0
    %1768 = vmatpush2.msra.mxu0 0.0
    %1769 = vmatprep.subr.mxu0 0.0
    %1770 = vmatpush2.msra.mxu0 0.0
    %1771 = vmatprep.subr.mxu0 0.0
    %1772 = vmatpush2.msra.mxu0 0.0
    %1773 = vmatprep.subr.mxu0 0.0
    %1774 = vmatpush2.msra.mxu0 0.0
    %1775 = vmatprep.subr.mxu0 0.0
    %1776 = vmatpush2.msra.mxu0 0.0
    %1777 = vmatprep.subr.mxu0 0.0
    %1778 = vmatpush2.msra.mxu0 0.0
    %1779 = vmatprep.subr.mxu0 0.0
    %1780 = vmatpush2.msra.mxu0 0.0
    %1781 = vmatprep.subr.mxu0 0.0
    %1782 = vmatpush2.msra.mxu0 0.0
    %1783 = vmatprep.mubr.f32.mxu0 0.0
    %1784 = vmatmul.mubr.f32.gmra.mxu0 %v1647
    %v1785 = vpop.f32.mrf.mxu0
    %v1786 = vadd.f32 %v1476, %v1785
    %v1787 = vpop.f32.mrf.mxu0
    %v1788 = vadd.f32 %v1477, %v1787
    %1789 = vdwg.mxu0
    %v1790 = vadd.f32 %v1715, %v348
    %v1791 = vadd.f32 %v1717, %v352
    %v1792 = vadd.f32 %v1786, %v356
    %v1793 = vadd.f32 %v1788, %v360
    %v1794 = vxor.u32 %v1790, 2147483648
    %v1795 = vmul.f32 %v1794, 1.442695
    %v1796 = vpow.pop %v1795
    %v1797 = vadd.f32 %v1796, 1.0
    %v1798 = vrcp.pop %v1797
    %v1799 = vmul.f32 1.0, %v1798
    %v1800 = vxor.u32 %v1791, 2147483648
    %v1801 = vmul.f32 %v1800, 1.442695
    %v1802 = vpow.pop %v1801
    %v1803 = vadd.f32 %v1802, 1.0
    %v1804 = vrcp.pop %v1803
    %v1805 = vmul.f32 1.0, %v1804
    %v1806 = vxor.u32 %v1792, 2147483648
    %v1807 = vmul.f32 %v1806, 1.442695
    %v1808 = vpow.pop %v1807
    %v1809 = vadd.f32 %v1808, 1.0
    %v1810 = vrcp.pop %v1809
    %v1811 = vmul.f32 1.0, %v1810
    %v1812 = vtanh.pop %v1793
    %v1813 = vmul.f32 %v1805, %v1645
    %v1814 = vmul.f32 %v1799, %v1812
    %v1815 = vadd.f32 %v1813, %v1814
    %v1816 = vtanh.pop %v1815
    %v1817 = vmul.f32 %v1811, %v1816
    %1818 = vmatprep.subr.mxu0 %v165
    %1819 = vmatpush1.msra.mxu0 %v164
    %1820 = vmatprep.subr.mxu0 %v161
    %1821 = vmatpush1.msra.mxu0 %v160
    %1822 = vmatprep.subr.mxu0 %v157
    %1823 = vmatpush1.msra.mxu0 %v156
    %1824 = vmatprep.subr.mxu0 %v153
    %1825 = vmatpush1.msra.mxu0 %v152
    %1826 = vmatprep.subr.mxu0 %v149
    %1827 = vmatpush1.msra.mxu0 %v148
    %1828 = vmatprep.subr.mxu0 %v145
    %1829 = vmatpush1.msra.mxu0 %v144
    %1830 = vmatprep.subr.mxu0 %v141
    %1831 = vmatpush1.msra.mxu0 %v140
    %1832 = vmatprep.subr.mxu0 %v137
    %1833 = vmatpush1.msra.mxu0 %v136
    %1834 = vmatprep.subr.mxu0 %v133
    %1835 = vmatpush1.msra.mxu0 %v132
    %1836 = vmatprep.subr.mxu0 %v129
    %1837 = vmatpush1.msra.mxu0 %v128
    %1838 = vmatprep.subr.mxu0 %v125
    %1839 = vmatpush1.msra.mxu0 %v124
    %1840 = vmatprep.subr.mxu0 %v121
    %1841 = vmatpush1.msra.mxu0 %v120
    %1842 = vmatprep.subr.mxu0 %v117
    %1843 = vmatpush1.msra.mxu0 %v116
    %1844 = vmatprep.subr.mxu0 %v113
    %1845 = vmatpush1.msra.mxu0 %v112
    %1846 = vmatprep.subr.mxu0 %v109
    %1847 = vmatpush1.msra.mxu0 %v108
    %1848 = vmatprep.subr.mxu0 %v105
    %1849 = vmatpush1.msra.mxu0 %v104
    %1850 = vmatprep.subr.mxu0 0.0
    %1851 = vmatpush2.msra.mxu0 0.0
    %1852 = vmatprep.subr.mxu0 0.0
    %1853 = vmatpush2.msra.mxu0 0.0
    %1854 = vmatprep.subr.mxu0 0.0
    %1855 = vmatpush2.msra.mxu0 0.0
    %1856 = vmatprep.subr.mxu0 0.0
    %1857 = vmatpush2.msra.mxu0 0.0
    %1858 = vmatprep.subr.mxu0 0.0
    %1859 = vmatpush2.msra.mxu0 0.0
    %1860 = vmatprep.subr.mxu0 0.0
    %1861 = vmatpush2.msra.mxu0 0.0
    %1862 = vmatprep.subr.mxu0 0.0
    %1863 = vmatpush2.msra.mxu0 0.0
    %1864 = vmatprep.subr.mxu0 0.0
    %1865 = vmatpush2.msra.mxu0 0.0
    %1866 = vmatprep.subr.mxu0 0.0
    %1867 = vmatpush2.msra.mxu0 0.0
    %1868 = vmatprep.subr.mxu0 0.0
    %1869 = vmatpush2.msra.mxu0 0.0
    %1870 = vmatprep.subr.mxu0 0.0
    %1871 = vmatpush2.msra.mxu0 0.0
    %1872 = vmatprep.subr.mxu0 0.0
    %1873 = vmatpush2.msra.mxu0 0.0
    %1874 = vmatprep.subr.mxu0 0.0
    %1875 = vmatpush2.msra.mxu0 0.0
    %1876 = vmatprep.subr.mxu0 0.0
    %1877 = vmatpush2.msra.mxu0 0.0
    %1878 = vmatprep.subr.mxu0 0.0
    %1879 = vmatpush2.msra.mxu0 0.0
    %1880 = vmatprep.subr.mxu0 0.0
    %1881 = vmatpush2.msra.mxu0 0.0
    %1882 = vmatprep.mubr.f32.mxu0 0.0
    %1883 = vmatmul.mubr.f32.gmra.mxu0 %v1817
    %v1884 = vpop.f32.mrf.mxu0
    %v1885 = vadd.f32 %v1474, %v1884
    %v1886 = vpop.f32.mrf.mxu0
    %v1887 = vadd.f32 %v1475, %v1886
    %1888 = vdwg.mxu0
    %1889 = vmatprep.subr.mxu0 %v167
    %1890 = vmatpush1.msra.mxu0 %v166
    %1891 = vmatprep.subr.mxu0 %v163
    %1892 = vmatpush1.msra.mxu0 %v162
    %1893 = vmatprep.subr.mxu0 %v159
    %1894 = vmatpush1.msra.mxu0 %v158
    %1895 = vmatprep.subr.mxu0 %v155
    %1896 = vmatpush1.msra.mxu0 %v154
    %1897 = vmatprep.subr.mxu0 %v151
    %1898 = vmatpush1.msra.mxu0 %v150
    %1899 = vmatprep.subr.mxu0 %v147
    %1900 = vmatpush1.msra.mxu0 %v146
    %1901 = vmatprep.subr.mxu0 %v143
    %1902 = vmatpush1.msra.mxu0 %v142
    %1903 = vmatprep.subr.mxu0 %v139
    %1904 = vmatpush1.msra.mxu0 %v138
    %1905 = vmatprep.subr.mxu0 %v135
    %1906 = vmatpush1.msra.mxu0 %v134
    %1907 = vmatprep.subr.mxu0 %v131
    %1908 = vmatpush1.msra.mxu0 %v130
    %1909 = vmatprep.subr.mxu0 %v127
    %1910 = vmatpush1.msra.mxu0 %v126
    %1911 = vmatprep.subr.mxu0 %v123
    %1912 = vmatpush1.msra.mxu0 %v122
    %1913 = vmatprep.subr.mxu0 %v119
    %1914 = vmatpush1.msra.mxu0 %v118
    %1915 = vmatprep.subr.mxu0 %v115
    %1916 = vmatpush1.msra.mxu0 %v114
    %1917 = vmatprep.subr.mxu0 %v111
    %1918 = vmatpush1.msra.mxu0 %v110
    %1919 = vmatprep.subr.mxu0 %v107
    %1920 = vmatpush1.msra.mxu0 %v106
    %1921 = vmatprep.subr.mxu0 0.0
    %1922 = vmatpush2.msra.mxu0 0.0
    %1923 = vmatprep.subr.mxu0 0.0
    %1924 = vmatpush2.msra.mxu0 0.0
    %1925 = vmatprep.subr.mxu0 0.0
    %1926 = vmatpush2.msra.mxu0 0.0
    %1927 = vmatprep.subr.mxu0 0.0
    %1928 = vmatpush2.msra.mxu0 0.0
    %1929 = vmatprep.subr.mxu0 0.0
    %1930 = vmatpush2.msra.mxu0 0.0
    %1931 = vmatprep.subr.mxu0 0.0
    %1932 = vmatpush2.msra.mxu0 0.0
    %1933 = vmatprep.subr.mxu0 0.0
    %1934 = vmatpush2.msra.mxu0 0.0
    %1935 = vmatprep.subr.mxu0 0.0
    %1936 = vmatpush2.msra.mxu0 0.0
    %1937 = vmatprep.subr.mxu0 0.0
    %1938 = vmatpush2.msra.mxu0 0.0
    %1939 = vmatprep.subr.mxu0 0.0
    %1940 = vmatpush2.msra.mxu0 0.0
    %1941 = vmatprep.subr.mxu0 0.0
    %1942 = vmatpush2.msra.mxu0 0.0
    %1943 = vmatprep.subr.mxu0 0.0
    %1944 = vmatpush2.msra.mxu0 0.0
    %1945 = vmatprep.subr.mxu0 0.0
    %1946 = vmatpush2.msra.mxu0 0.0
    %1947 = vmatprep.subr.mxu0 0.0
    %1948 = vmatpush2.msra.mxu0 0.0
    %1949 = vmatprep.subr.mxu0 0.0
    %1950 = vmatpush2.msra.mxu0 0.0
    %1951 = vmatprep.subr.mxu0 0.0
    %1952 = vmatpush2.msra.mxu0 0.0
    %1953 = vmatprep.mubr.f32.mxu0 0.0
    %1954 = vmatmul.mubr.f32.gmra.mxu0 %v1817
    %v1955 = vpop.f32.mrf.mxu0
    %v1956 = vadd.f32 %v1476, %v1955
    %v1957 = vpop.f32.mrf.mxu0
    %v1958 = vadd.f32 %v1477, %v1957
    %1959 = vdwg.mxu0
    %v1960 = vadd.f32 %v1885, %v348
    %v1961 = vadd.f32 %v1887, %v352
    %v1962 = vadd.f32 %v1956, %v356
    %v1963 = vadd.f32 %v1958, %v360
    %v1964 = vxor.u32 %v1960, 2147483648
    %v1965 = vmul.f32 %v1964, 1.442695
    %v1966 = vpow.pop %v1965
    %v1967 = vadd.f32 %v1966, 1.0
    %v1968 = vrcp.pop %v1967
    %v1969 = vmul.f32 1.0, %v1968
    %v1970 = vxor.u32 %v1961, 2147483648
    %v1971 = vmul.f32 %v1970, 1.442695
    %v1972 = vpow.pop %v1971
    %v1973 = vadd.f32 %v1972, 1.0
    %v1974 = vrcp.pop %v1973
    %v1975 = vmul.f32 1.0, %v1974
    %v1976 = vxor.u32 %v1962, 2147483648
    %v1977 = vmul.f32 %v1976, 1.442695
    %v1978 = vpow.pop %v1977
    %v1979 = vadd.f32 %v1978, 1.0
    %v1980 = vrcp.pop %v1979
    %v1981 = vmul.f32 1.0, %v1980
    %v1982 = vtanh.pop %v1963
    %v1983 = vmul.f32 %v1975, %v1815
    %v1984 = vmul.f32 %v1969, %v1982
    %v1985 = vadd.f32 %v1983, %v1984
    %v1986 = vtanh.pop %v1985
    %v1987 = vmul.f32 %v1981, %v1986
    %1988 = vmatprep.subr.mxu0 %v165
    %1989 = vmatpush1.msra.mxu0 %v164
    %1990 = vmatprep.subr.mxu0 %v161
    %1991 = vmatpush1.msra.mxu0 %v160
    %1992 = vmatprep.subr.mxu0 %v157
    %1993 = vmatpush1.msra.mxu0 %v156
    %1994 = vmatprep.subr.mxu0 %v153
    %1995 = vmatpush1.msra.mxu0 %v152
    %1996 = vmatprep.subr.mxu0 %v149
    %1997 = vmatpush1.msra.mxu0 %v148
    %1998 = vmatprep.subr.mxu0 %v145
    %1999 = vmatpush1.msra.mxu0 %v144
    %2000 = vmatprep.subr.mxu0 %v141
    %2001 = vmatpush1.msra.mxu0 %v140
    %2002 = vmatprep.subr.mxu0 %v137
    %2003 = vmatpush1.msra.mxu0 %v136
    %2004 = vmatprep.subr.mxu0 %v133
    %2005 = vmatpush1.msra.mxu0 %v132
    %2006 = vmatprep.subr.mxu0 %v129
    %2007 = vmatpush1.msra.mxu0 %v128
    %2008 = vmatprep.subr.mxu0 %v125
    %2009 = vmatpush1.msra.mxu0 %v124
    %2010 = vmatprep.subr.mxu0 %v121
    %2011 = vmatpush1.msra.mxu0 %v120
    %2012 = vmatprep.subr.mxu0 %v117
    %2013 = vmatpush1.msra.mxu0 %v116
    %2014 = vmatprep.subr.mxu0 %v113
    %2015 = vmatpush1.msra.mxu0 %v112
    %2016 = vmatprep.subr.mxu0 %v109
    %2017 = vmatpush1.msra.mxu0 %v108
    %2018 = vmatprep.subr.mxu0 %v105
    %2019 = vmatpush1.msra.mxu0 %v104
    %2020 = vmatprep.subr.mxu0 0.0
    %2021 = vmatpush2.msra.mxu0 0.0
    %2022 = vmatprep.subr.mxu0 0.0
    %2023 = vmatpush2.msra.mxu0 0.0
    %2024 = vmatprep.subr.mxu0 0.0
    %2025 = vmatpush2.msra.mxu0 0.0
    %2026 = vmatprep.subr.mxu0 0.0
    %2027 = vmatpush2.msra.mxu0 0.0
    %2028 = vmatprep.subr.mxu0 0.0
    %2029 = vmatpush2.msra.mxu0 0.0
    %2030 = vmatprep.subr.mxu0 0.0
    %2031 = vmatpush2.msra.mxu0 0.0
    %2032 = vmatprep.subr.mxu0 0.0
    %2033 = vmatpush2.msra.mxu0 0.0
    %2034 = vmatprep.subr.mxu0 0.0
    %2035 = vmatpush2.msra.mxu0 0.0
    %2036 = vmatprep.subr.mxu0 0.0
    %2037 = vmatpush2.msra.mxu0 0.0
    %2038 = vmatprep.subr.mxu0 0.0
    %2039 = vmatpush2.msra.mxu0 0.0
    %2040 = vmatprep.subr.mxu0 0.0
    %2041 = vmatpush2.msra.mxu0 0.0
    %2042 = vmatprep.subr.mxu0 0.0
    %2043 = vmatpush2.msra.mxu0 0.0
    %2044 = vmatprep.subr.mxu0 0.0
    %2045 = vmatpush2.msra.mxu0 0.0
    %2046 = vmatprep.subr.mxu0 0.0
    %2047 = vmatpush2.msra.mxu0 0.0
    %2048 = vmatprep.subr.mxu0 0.0
    %2049 = vmatpush2.msra.mxu0 0.0
    %2050 = vmatprep.subr.mxu0 0.0
    %2051 = vmatpush2.msra.mxu0 0.0
    %2052 = vmatprep.mubr.f32.mxu0 0.0
    %2053 = vmatmul.mubr.f32.gmra.mxu0 %v1987
    %v2054 = vpop.f32.mrf.mxu0
    %v2055 = vadd.f32 %v1474, %v2054
    %v2056 = vpop.f32.mrf.mxu0
    %v2057 = vadd.f32 %v1475, %v2056
    %2058 = vdwg.mxu0
    %2059 = vmatprep.subr.mxu0 %v167
    %2060 = vmatpush1.msra.mxu0 %v166
    %2061 = vmatprep.subr.mxu0 %v163
    %2062 = vmatpush1.msra.mxu0 %v162
    %2063 = vmatprep.subr.mxu0 %v159
    %2064 = vmatpush1.msra.mxu0 %v158
    %2065 = vmatprep.subr.mxu0 %v155
    %2066 = vmatpush1.msra.mxu0 %v154
    %2067 = vmatprep.subr.mxu0 %v151
    %2068 = vmatpush1.msra.mxu0 %v150
    %2069 = vmatprep.subr.mxu0 %v147
    %2070 = vmatpush1.msra.mxu0 %v146
    %2071 = vmatprep.subr.mxu0 %v143
    %2072 = vmatpush1.msra.mxu0 %v142
    %2073 = vmatprep.subr.mxu0 %v139
    %2074 = vmatpush1.msra.mxu0 %v138
    %2075 = vmatprep.subr.mxu0 %v135
    %2076 = vmatpush1.msra.mxu0 %v134
    %2077 = vmatprep.subr.mxu0 %v131
    %2078 = vmatpush1.msra.mxu0 %v130
    %2079 = vmatprep.subr.mxu0 %v127
    %2080 = vmatpush1.msra.mxu0 %v126
    %2081 = vmatprep.subr.mxu0 %v123
    %2082 = vmatpush1.msra.mxu0 %v122
    %2083 = vmatprep.subr.mxu0 %v119
    %2084 = vmatpush1.msra.mxu0 %v118
    %2085 = vmatprep.subr.mxu0 %v115
    %2086 = vmatpush1.msra.mxu0 %v114
    %2087 = vmatprep.subr.mxu0 %v111
    %2088 = vmatpush1.msra.mxu0 %v110
    %2089 = vmatprep.subr.mxu0 %v107
    %2090 = vmatpush1.msra.mxu0 %v106
    %2091 = vmatprep.subr.mxu0 0.0
    %2092 = vmatpush2.msra.mxu0 0.0
    %2093 = vmatprep.subr.mxu0 0.0
    %2094 = vmatpush2.msra.mxu0 0.0
    %2095 = vmatprep.subr.mxu0 0.0
    %2096 = vmatpush2.msra.mxu0 0.0
    %2097 = vmatprep.subr.mxu0 0.0
    %2098 = vmatpush2.msra.mxu0 0.0
    %2099 = vmatprep.subr.mxu0 0.0
    %2100 = vmatpush2.msra.mxu0 0.0
    %2101 = vmatprep.subr.mxu0 0.0
    %2102 = vmatpush2.msra.mxu0 0.0
    %2103 = vmatprep.subr.mxu0 0.0
    %2104 = vmatpush2.msra.mxu0 0.0
    %2105 = vmatprep.subr.mxu0 0.0
    %2106 = vmatpush2.msra.mxu0 0.0
    %2107 = vmatprep.subr.mxu0 0.0
    %2108 = vmatpush2.msra.mxu0 0.0
    %2109 = vmatprep.subr.mxu0 0.0
    %2110 = vmatpush2.msra.mxu0 0.0
    %2111 = vmatprep.subr.mxu0 0.0
    %2112 = vmatpush2.msra.mxu0 0.0
    %2113 = vmatprep.subr.mxu0 0.0
    %2114 = vmatpush2.msra.mxu0 0.0
    %2115 = vmatprep.subr.mxu0 0.0
    %2116 = vmatpush2.msra.mxu0 0.0
    %2117 = vmatprep.subr.mxu0 0.0
    %2118 = vmatpush2.msra.mxu0 0.0
    %2119 = vmatprep.subr.mxu0 0.0
    %2120 = vmatpush2.msra.mxu0 0.0
    %2121 = vmatprep.subr.mxu0 0.0
    %2122 = vmatpush2.msra.mxu0 0.0
    %2123 = vmatprep.mubr.f32.mxu0 0.0
    %2124 = vmatmul.mubr.f32.gmra.mxu0 %v1987
    %v2125 = vpop.f32.mrf.mxu0
    %v2126 = vadd.f32 %v1476, %v2125
    %v2127 = vpop.f32.mrf.mxu0
    %v2128 = vadd.f32 %v1477, %v2127
    %2129 = vdwg.mxu0
    %v2130 = vadd.f32 %v2055, %v348
    %v2131 = vadd.f32 %v2057, %v352
    %v2132 = vadd.f32 %v2126, %v356
    %v2133 = vadd.f32 %v2128, %v360
    %v2134 = vxor.u32 %v2130, 2147483648
    %v2135 = vmul.f32 %v2134, 1.442695
    %v2136 = vpow.pop %v2135
    %v2137 = vadd.f32 %v2136, 1.0
    %v2138 = vrcp.pop %v2137
    %v2139 = vmul.f32 1.0, %v2138
    %v2140 = vxor.u32 %v2131, 2147483648
    %v2141 = vmul.f32 %v2140, 1.442695
    %v2142 = vpow.pop %v2141
    %v2143 = vadd.f32 %v2142, 1.0
    %v2144 = vrcp.pop %v2143
    %v2145 = vmul.f32 1.0, %v2144
    %v2146 = vxor.u32 %v2132, 2147483648
    %v2147 = vmul.f32 %v2146, 1.442695
    %v2148 = vpow.pop %v2147
    %v2149 = vadd.f32 %v2148, 1.0
    %v2150 = vrcp.pop %v2149
    %v2151 = vmul.f32 1.0, %v2150
    %v2152 = vtanh.pop %v2133
    %v2153 = vmul.f32 %v2145, %v1985
    %v2154 = vmul.f32 %v2139, %v2152
    %v2155 = vadd.f32 %v2153, %v2154
    %v2156 = vtanh.pop %v2155
    %v2157 = vmul.f32 %v2151, %v2156
    %2159 = vrot.lane.b32.xlu0 %v935, 32
    %v2160 = vpop.permute.xlu0 %2159
    %2163 = vrot.lane.b32.xlu0 %v1113, 64
    %v2164 = vpop.permute.xlu0 %2163
    %2167 = vrot.lane.b32.xlu0 %v1291, 96
    %v2168 = vpop.permute.xlu0 %2167
    %2171 = vrot.lane.b32.xlu0 %v1647, 32
    %v2172 = vpop.permute.xlu0 %2171
    %2175 = vrot.lane.b32.xlu0 %v1817, 64
    %v2176 = vpop.permute.xlu0 %2175
    %2179 = vrot.lane.b32.xlu0 %v1987, 96
    %v2180 = vpop.permute.xlu0 %2179
    %vm2182 = vcmask 261120
    %v2183 = vsel %vm2182, %v2160, %v2164
    %vm2184 = vcmask 523264
    %v2185 = vsel %vm2184, %v2183, %v2168
    %vm2186 = vcmask 785408
    %v2187 = vsel %vm2186, %v2185, %v1469
    %v2188 = vsel %vm2182, %v2172, %v2176
    %v2189 = vsel %vm2184, %v2188, %v2180
    %v2190 = vsel %vm2186, %v2189, %v2157
    %v2191 = vld [vmem:[%s4] sm:$0xff]
    %v2192 = vld [vmem:[%s4 + $0x8] sm:$0xff]
    %v2193 = vld [vmem:[%s4 + $0x10] sm:$0xff]
    %v2194 = vld [vmem:[%s4 + $0x18] sm:$0xff]
    %v2195 = vld [vmem:[%s4 + $0x20] sm:$0xff]
    %v2196 = vld [vmem:[%s4 + $0x28] sm:$0xff]
    %v2197 = vld [vmem:[%s4 + $0x30] sm:$0xff]
    %v2198 = vld [vmem:[%s4 + $0x38] sm:$0xff]
    %v2199 = vld [vmem:[%s4 + $0x40] sm:$0xff]
    %v2200 = vld [vmem:[%s4 + $0x48] sm:$0xff]
    %v2201 = vld [vmem:[%s4 + $0x50] sm:$0xff]
    %v2202 = vld [vmem:[%s4 + $0x58] sm:$0xff]
    %v2203 = vld [vmem:[%s4 + $0x60] sm:$0xff]
    %v2204 = vld [vmem:[%s4 + $0x68] sm:$0xff]
    %v2205 = vld [vmem:[%s4 + $0x70] sm:$0xff]
    %v2206 = vld [vmem:[%s4 + $0x78] sm:$0xff]
    %v2207 = vld [vmem:[%s4 + $0x80] sm:$0xff]
    %v2208 = vld [vmem:[%s4 + $0x88] sm:$0xff]
    %v2209 = vld [vmem:[%s4 + $0x90] sm:$0xff]
    %v2210 = vld [vmem:[%s4 + $0x98] sm:$0xff]
    %v2211 = vld [vmem:[%s4 + $0xa0] sm:$0xff]
    %v2212 = vld [vmem:[%s4 + $0xa8] sm:$0xff]
    %v2213 = vld [vmem:[%s4 + $0xb0] sm:$0xff]
    %v2214 = vld [vmem:[%s4 + $0xb8] sm:$0xff]
    %v2215 = vld [vmem:[%s4 + $0xc0] sm:$0xff]
    %v2216 = vld [vmem:[%s4 + $0xc8] sm:$0xff]
    %v2217 = vld [vmem:[%s4 + $0xd0] sm:$0xff]
    %v2218 = vld [vmem:[%s4 + $0xd8] sm:$0xff]
    %v2219 = vld [vmem:[%s4 + $0xe0] sm:$0xff]
    %v2220 = vld [vmem:[%s4 + $0xe8] sm:$0xff]
    %v2221 = vld [vmem:[%s4 + $0xf0] sm:$0xff]
    %v2222 = vld [vmem:[%s4 + $0xf8] sm:$0xff]
    %v2223 = vld [vmem:[%s5] sm:$0x1]
    %v2225 = vlaneseq
    %v2226 = vshrl.u32 %v2225, 7
    %v2227 = vsub.s32 0, %v2226
    %v2228 = vrot.slane %v2223, %v2227
    %2230 = vmatprep.subr.mxu0 0.0
    %2231 = vmatpush1.msra.mxu0 %v2206
    %2232 = vmatprep.subr.mxu0 0.0
    %2233 = vmatpush1.msra.mxu0 %v2205
    %2234 = vmatprep.subr.mxu0 0.0
    %2235 = vmatpush1.msra.mxu0 %v2204
    %2236 = vmatprep.subr.mxu0 0.0
    %2237 = vmatpush1.msra.mxu0 %v2203
    %2238 = vmatprep.subr.mxu0 0.0
    %2239 = vmatpush1.msra.mxu0 %v2202
    %2240 = vmatprep.subr.mxu0 0.0
    %2241 = vmatpush1.msra.mxu0 %v2201
    %2242 = vmatprep.subr.mxu0 0.0
    %2243 = vmatpush1.msra.mxu0 %v2200
    %2244 = vmatprep.subr.mxu0 0.0
    %2245 = vmatpush1.msra.mxu0 %v2199
    %2246 = vmatprep.subr.mxu0 0.0
    %2247 = vmatpush1.msra.mxu0 %v2198
    %2248 = vmatprep.subr.mxu0 0.0
    %2249 = vmatpush1.msra.mxu0 %v2197
    %2250 = vmatprep.subr.mxu0 0.0
    %2251 = vmatpush1.msra.mxu0 %v2196
    %2252 = vmatprep.subr.mxu0 0.0
    %2253 = vmatpush1.msra.mxu0 %v2195
    %2254 = vmatprep.subr.mxu0 0.0
    %2255 = vmatpush1.msra.mxu0 %v2194
    %2256 = vmatprep.subr.mxu0 0.0
    %2257 = vmatpush1.msra.mxu0 %v2193
    %2258 = vmatprep.subr.mxu0 0.0
    %2259 = vmatpush1.msra.mxu0 %v2192
    %2260 = vmatprep.subr.mxu0 0.0
    %2261 = vmatpush1.msra.mxu0 %v2191
    %2262 = vmatprep.subr.mxu0 0.0
    %2263 = vmatpush2.msra.mxu0 %v2222
    %2264 = vmatprep.subr.mxu0 0.0
    %2265 = vmatpush2.msra.mxu0 %v2221
    %2266 = vmatprep.subr.mxu0 0.0
    %2267 = vmatpush2.msra.mxu0 %v2220
    %2268 = vmatprep.subr.mxu0 0.0
    %2269 = vmatpush2.msra.mxu0 %v2219
    %2270 = vmatprep.subr.mxu0 0.0
    %2271 = vmatpush2.msra.mxu0 %v2218
    %2272 = vmatprep.subr.mxu0 0.0
    %2273 = vmatpush2.msra.mxu0 %v2217
    %2274 = vmatprep.subr.mxu0 0.0
    %2275 = vmatpush2.msra.mxu0 %v2216
    %2276 = vmatprep.subr.mxu0 0.0
    %2277 = vmatpush2.msra.mxu0 %v2215
    %2278 = vmatprep.subr.mxu0 0.0
    %2279 = vmatpush2.msra.mxu0 %v2214
    %2280 = vmatprep.subr.mxu0 0.0
    %2281 = vmatpush2.msra.mxu0 %v2213
    %2282 = vmatprep.subr.mxu0 0.0
    %2283 = vmatpush2.msra.mxu0 %v2212
    %2284 = vmatprep.subr.mxu0 0.0
    %2285 = vmatpush2.msra.mxu0 %v2211
    %2286 = vmatprep.subr.mxu0 0.0
    %2287 = vmatpush2.msra.mxu0 %v2210
    %2288 = vmatprep.subr.mxu0 0.0
    %2289 = vmatpush2.msra.mxu0 %v2209
    %2290 = vmatprep.subr.mxu0 0.0
    %2291 = vmatpush2.msra.mxu0 %v2208
    %2292 = vmatprep.subr.mxu0 0.0
    %2293 = vmatpush2.msra.mxu0 %v2207
    %2294 = vmatprep.mubr.f32.mxu0 %v2190
    %2295 = vmatmul.mubr.f32.gmra.mxu0 %v2187
    %v2296 = vpop.f32.mrf.mxu0
    %v2297 = vadd.f32 %v2228, %v2296
    %v2298 = vpop.f32.mrf.mxu0
    %2299 = vdwg.mxu0
    %v2300 = vtanh.pop %v2297
    %v2301 = vld [vmem:[#allocation6] sm:$0xff]
    %v2302 = vld [vmem:[#allocation6 + $0x8] sm:$0xff]
    %v2303 = vld [vmem:[#allocation6 + $0x10] sm:$0xff]
    %v2304 = vld [vmem:[#allocation6 + $0x18] sm:$0xff]
    %v2305 = vld [vmem:[#allocation6 + $0x20] sm:$0xff]
    %v2306 = vld [vmem:[#allocation6 + $0x28] sm:$0xff]
    %v2307 = vld [vmem:[#allocation6 + $0x30] sm:$0xff]
    %v2308 = vld [vmem:[#allocation6 + $0x38] sm:$0xff]
    %v2309 = vld [vmem:[#allocation6 + $0x40] sm:$0xff]
    %v2310 = vld [vmem:[#allocation6 + $0x48] sm:$0xff]
    %v2311 = vld [vmem:[#allocation6 + $0x50] sm:$0xff]
    %v2312 = vld [vmem:[#allocation6 + $0x58] sm:$0xff]
    %v2313 = vld [vmem:[#allocation6 + $0x60] sm:$0xff]
    %v2314 = vld [vmem:[#allocation6 + $0x68] sm:$0xff]
    %v2315 = vld [vmem:[#allocation6 + $0x70] sm:$0xff]
    %v2316 = vld [vmem:[#allocation6 + $0x78] sm:$0xff]
    %v2317 = vld [vmem:[%s7] sm:$0x1]
    %v2319 = vlaneseq
    %v2320 = vshrl.u32 %v2319, 7
    %v2321 = vsub.s32 0, %v2320
    %v2322 = vrot.slane %v2317, %v2321
    %2324 = vmatprep.subr.mxu0 0.0
    %2325 = vmatpush1.msra.mxu0 %v2316
    %2326 = vmatprep.subr.mxu0 0.0
    %2327 = vmatpush1.msra.mxu0 %v2315
    %2328 = vmatprep.subr.mxu0 0.0
    %2329 = vmatpush1.msra.mxu0 %v2314
    %2330 = vmatprep.subr.mxu0 0.0
    %2331 = vmatpush1.msra.mxu0 %v2313
    %2332 = vmatprep.subr.mxu0 0.0
    %2333 = vmatpush1.msra.mxu0 %v2312
    %2334 = vmatprep.subr.mxu0 0.0
    %2335 = vmatpush1.msra.mxu0 %v2311
    %2336 = vmatprep.subr.mxu0 0.0
    %2337 = vmatpush1.msra.mxu0 %v2310
    %2338 = vmatprep.subr.mxu0 0.0
    %2339 = vmatpush1.msra.mxu0 %v2309
    %2340 = vmatprep.subr.mxu0 0.0
    %2341 = vmatpush1.msra.mxu0 %v2308
    %2342 = vmatprep.subr.mxu0 0.0
    %2343 = vmatpush1.msra.mxu0 %v2307
    %2344 = vmatprep.subr.mxu0 0.0
    %2345 = vmatpush1.msra.mxu0 %v2306
    %2346 = vmatprep.subr.mxu0 0.0
    %2347 = vmatpush1.msra.mxu0 %v2305
    %2348 = vmatprep.subr.mxu0 0.0
    %2349 = vmatpush1.msra.mxu0 %v2304
    %2350 = vmatprep.subr.mxu0 0.0
    %2351 = vmatpush1.msra.mxu0 %v2303
    %2352 = vmatprep.subr.mxu0 0.0
    %2353 = vmatpush1.msra.mxu0 %v2302
    %2354 = vmatprep.subr.mxu0 0.0
    %2355 = vmatpush1.msra.mxu0 %v2301
    %2356 = vmatprep.subr.mxu0 0.0
    %2357 = vmatpush2.msra.mxu0 0.0
    %2358 = vmatprep.subr.mxu0 0.0
    %2359 = vmatpush2.msra.mxu0 0.0
    %2360 = vmatprep.subr.mxu0 0.0
    %2361 = vmatpush2.msra.mxu0 0.0
    %2362 = vmatprep.subr.mxu0 0.0
    %2363 = vmatpush2.msra.mxu0 0.0
    %2364 = vmatprep.subr.mxu0 0.0
    %2365 = vmatpush2.msra.mxu0 0.0
    %2366 = vmatprep.subr.mxu0 0.0
    %2367 = vmatpush2.msra.mxu0 0.0
    %2368 = vmatprep.subr.mxu0 0.0
    %2369 = vmatpush2.msra.mxu0 0.0
    %2370 = vmatprep.subr.mxu0 0.0
    %2371 = vmatpush2.msra.mxu0 0.0
    %2372 = vmatprep.subr.mxu0 0.0
    %2373 = vmatpush2.msra.mxu0 0.0
    %2374 = vmatprep.subr.mxu0 0.0
    %2375 = vmatpush2.msra.mxu0 0.0
    %2376 = vmatprep.subr.mxu0 0.0
    %2377 = vmatpush2.msra.mxu0 0.0
    %2378 = vmatprep.subr.mxu0 0.0
    %2379 = vmatpush2.msra.mxu0 0.0
    %2380 = vmatprep.subr.mxu0 0.0
    %2381 = vmatpush2.msra.mxu0 0.0
    %2382 = vmatprep.subr.mxu0 0.0
    %2383 = vmatpush2.msra.mxu0 0.0
    %2384 = vmatprep.subr.mxu0 0.0
    %2385 = vmatpush2.msra.mxu0 0.0
    %2386 = vmatprep.subr.mxu0 0.0
    %2387 = vmatpush2.msra.mxu0 0.0
    %2388 = vmatprep.mubr.f32.mxu0 0.0
    %2389 = vmatmul.mubr.f32.gmra.mxu0 %v2300
    %v2390 = vpop.f32.mrf.mxu0
    %v2391 = vadd.f32 %v2322, %v2390
    %v2392 = vpop.f32.mrf.mxu0
    %2393 = vdwg.mxu0
    %v2394 = vtanh.pop %v2391
    %v2395 = vld [vmem:[%s8] sm:$0xff]
    %v2396 = vld [vmem:[%s8 + $0x8] sm:$0xff]
    %v2397 = vld [vmem:[%s8 + $0x10] sm:$0xff]
    %v2398 = vld [vmem:[%s8 + $0x18] sm:$0xff]
    %v2399 = vld [vmem:[%s8 + $0x20] sm:$0xff]
    %v2400 = vld [vmem:[%s8 + $0x28] sm:$0xff]
    %v2401 = vld [vmem:[%s8 + $0x30] sm:$0xff]
    %v2402 = vld [vmem:[%s8 + $0x38] sm:$0xff]
    %v2403 = vld [vmem:[%s8 + $0x40] sm:$0xff]
    %v2404 = vld [vmem:[%s8 + $0x48] sm:$0xff]
    %v2405 = vld [vmem:[%s8 + $0x50] sm:$0xff]
    %v2406 = vld [vmem:[%s8 + $0x58] sm:$0xff]
    %v2407 = vld [vmem:[%s8 + $0x60] sm:$0xff]
    %v2408 = vld [vmem:[%s8 + $0x68] sm:$0xff]
    %v2409 = vld [vmem:[%s8 + $0x70] sm:$0xff]
    %v2410 = vld [vmem:[%s8 + $0x78] sm:$0xff]
    %v2411 = vld [vmem:[#allocation7] sm:$0x1]
    %v2413 = vlaneseq
    %v2414 = vshrl.u32 %v2413, 7
    %v2415 = vsub.s32 0, %v2414
    %v2416 = vrot.slane %v2411, %v2415
    %2418 = vmatprep.subr.mxu0 0.0
    %2419 = vmatpush1.msra.mxu0 %v2410
    %2420 = vmatprep.subr.mxu0 0.0
    %2421 = vmatpush1.msra.mxu0 %v2409
    %2422 = vmatprep.subr.mxu0 0.0
    %2423 = vmatpush1.msra.mxu0 %v2408
    %2424 = vmatprep.subr.mxu0 0.0
    %2425 = vmatpush1.msra.mxu0 %v2407
    %2426 = vmatprep.subr.mxu0 0.0
    %2427 = vmatpush1.msra.mxu0 %v2406
    %2428 = vmatprep.subr.mxu0 0.0
    %2429 = vmatpush1.msra.mxu0 %v2405
    %2430 = vmatprep.subr.mxu0 0.0
    %2431 = vmatpush1.msra.mxu0 %v2404
    %2432 = vmatprep.subr.mxu0 0.0
    %2433 = vmatpush1.msra.mxu0 %v2403
    %2434 = vmatprep.subr.mxu0 0.0
    %2435 = vmatpush1.msra.mxu0 %v2402
    %2436 = vmatprep.subr.mxu0 0.0
    %2437 = vmatpush1.msra.mxu0 %v2401
    %2438 = vmatprep.subr.mxu0 0.0
    %2439 = vmatpush1.msra.mxu0 %v2400
    %2440 = vmatprep.subr.mxu0 0.0
    %2441 = vmatpush1.msra.mxu0 %v2399
    %2442 = vmatprep.subr.mxu0 0.0
    %2443 = vmatpush1.msra.mxu0 %v2398
    %2444 = vmatprep.subr.mxu0 0.0
    %2445 = vmatpush1.msra.mxu0 %v2397
    %2446 = vmatprep.subr.mxu0 0.0
    %2447 = vmatpush1.msra.mxu0 %v2396
    %2448 = vmatprep.subr.mxu0 0.0
    %2449 = vmatpush1.msra.mxu0 %v2395
    %2450 = vmatprep.subr.mxu0 0.0
    %2451 = vmatpush2.msra.mxu0 0.0
    %2452 = vmatprep.subr.mxu0 0.0
    %2453 = vmatpush2.msra.mxu0 0.0
    %2454 = vmatprep.subr.mxu0 0.0
    %2455 = vmatpush2.msra.mxu0 0.0
    %2456 = vmatprep.subr.mxu0 0.0
    %2457 = vmatpush2.msra.mxu0 0.0
    %2458 = vmatprep.subr.mxu0 0.0
    %2459 = vmatpush2.msra.mxu0 0.0
    %2460 = vmatprep.subr.mxu0 0.0
    %2461 = vmatpush2.msra.mxu0 0.0
    %2462 = vmatprep.subr.mxu0 0.0
    %2463 = vmatpush2.msra.mxu0 0.0
    %2464 = vmatprep.subr.mxu0 0.0
    %2465 = vmatpush2.msra.mxu0 0.0
    %2466 = vmatprep.subr.mxu0 0.0
    %2467 = vmatpush2.msra.mxu0 0.0
    %2468 = vmatprep.subr.mxu0 0.0
    %2469 = vmatpush2.msra.mxu0 0.0
    %2470 = vmatprep.subr.mxu0 0.0
    %2471 = vmatpush2.msra.mxu0 0.0
    %2472 = vmatprep.subr.mxu0 0.0
    %2473 = vmatpush2.msra.mxu0 0.0
    %2474 = vmatprep.subr.mxu0 0.0
    %2475 = vmatpush2.msra.mxu0 0.0
    %2476 = vmatprep.subr.mxu0 0.0
    %2477 = vmatpush2.msra.mxu0 0.0
    %2478 = vmatprep.subr.mxu0 0.0
    %2479 = vmatpush2.msra.mxu0 0.0
    %2480 = vmatprep.subr.mxu0 0.0
    %2481 = vmatpush2.msra.mxu0 0.0
    %2482 = vmatprep.mubr.f32.mxu0 0.0
    %2483 = vmatmul.mubr.f32.gmra.mxu0 %v2394
    %v2484 = vpop.f32.mrf.mxu0
    %v2485 = vadd.f32 %v2416, %v2484
    %v2486 = vpop.f32.mrf.mxu0
    %2487 = vdwg.mxu0
    %v2488 = vtanh.pop %v2485
    %v2489 = vld [vmem:[%s10] sm:$0xff]
    %v2490 = vld [vmem:[%s10 + $0x8] sm:$0xff]
    %v2491 = vld [vmem:[%s10 + $0x10] sm:$0xff]
    %v2492 = vld [vmem:[%s10 + $0x18] sm:$0xff]
    %v2493 = vld [vmem:[%s10 + $0x20] sm:$0xff]
    %v2494 = vld [vmem:[%s10 + $0x28] sm:$0xff]
    %v2495 = vld [vmem:[%s10 + $0x30] sm:$0xff]
    %v2496 = vld [vmem:[%s10 + $0x38] sm:$0xff]
    %v2497 = vld [vmem:[#allocation9] sm:$0x1]
    %v2499 = vlaneseq
    %v2500 = vshrl.u32 %v2499, 7
    %v2501 = vsub.s32 0, %v2500
    %v2502 = vrot.slane %v2497, %v2501
    %v2505 = vsel %vm2184, %v2488, 0
    %2507 = vmatprep.subr.mxu0 0.0
    %2508 = vmatpush1.msra.mxu0 0.0
    %2509 = vmatprep.subr.mxu0 0.0
    %2510 = vmatpush1.msra.mxu0 0.0
    %2511 = vmatprep.subr.mxu0 0.0
    %2512 = vmatpush1.msra.mxu0 0.0
    %2513 = vmatprep.subr.mxu0 0.0
    %2514 = vmatpush1.msra.mxu0 0.0
    %2515 = vmatprep.subr.mxu0 0.0
    %2516 = vmatpush1.msra.mxu0 0.0
    %2517 = vmatprep.subr.mxu0 0.0
    %2518 = vmatpush1.msra.mxu0 0.0
    %2519 = vmatprep.subr.mxu0 0.0
    %2520 = vmatpush1.msra.mxu0 0.0
    %2521 = vmatprep.subr.mxu0 0.0
    %2522 = vmatpush1.msra.mxu0 0.0
    %2523 = vmatprep.subr.mxu0 0.0
    %2524 = vmatpush1.msra.mxu0 %v2496
    %2525 = vmatprep.subr.mxu0 0.0
    %2526 = vmatpush1.msra.mxu0 %v2495
    %2527 = vmatprep.subr.mxu0 0.0
    %2528 = vmatpush1.msra.mxu0 %v2494
    %2529 = vmatprep.subr.mxu0 0.0
    %2530 = vmatpush1.msra.mxu0 %v2493
    %2531 = vmatprep.subr.mxu0 0.0
    %2532 = vmatpush1.msra.mxu0 %v2492
    %2533 = vmatprep.subr.mxu0 0.0
    %2534 = vmatpush1.msra.mxu0 %v2491
    %2535 = vmatprep.subr.mxu0 0.0
    %2536 = vmatpush1.msra.mxu0 %v2490
    %2537 = vmatprep.subr.mxu0 0.0
    %2538 = vmatpush1.msra.mxu0 %v2489
    %2539 = vmatprep.subr.mxu0 0.0
    %2540 = vmatpush2.msra.mxu0 0.0
    %2541 = vmatprep.subr.mxu0 0.0
    %2542 = vmatpush2.msra.mxu0 0.0
    %2543 = vmatprep.subr.mxu0 0.0
    %2544 = vmatpush2.msra.mxu0 0.0
    %2545 = vmatprep.subr.mxu0 0.0
    %2546 = vmatpush2.msra.mxu0 0.0
    %2547 = vmatprep.subr.mxu0 0.0
    %2548 = vmatpush2.msra.mxu0 0.0
    %2549 = vmatprep.subr.mxu0 0.0
    %2550 = vmatpush2.msra.mxu0 0.0
    %2551 = vmatprep.subr.mxu0 0.0
    %2552 = vmatpush2.msra.mxu0 0.0
    %2553 = vmatprep.subr.mxu0 0.0
    %2554 = vmatpush2.msra.mxu0 0.0
    %2555 = vmatprep.subr.mxu0 0.0
    %2556 = vmatpush2.msra.mxu0 0.0
    %2557 = vmatprep.subr.mxu0 0.0
    %2558 = vmatpush2.msra.mxu0 0.0
    %2559 = vmatprep.subr.mxu0 0.0
    %2560 = vmatpush2.msra.mxu0 0.0
    %2561 = vmatprep.subr.mxu0 0.0
    %2562 = vmatpush2.msra.mxu0 0.0
    %2563 = vmatprep.subr.mxu0 0.0
    %2564 = vmatpush2.msra.mxu0 0.0
    %2565 = vmatprep.subr.mxu0 0.0
    %2566 = vmatpush2.msra.mxu0 0.0
    %2567 = vmatprep.subr.mxu0 0.0
    %2568 = vmatpush2.msra.mxu0 0.0
    %2569 = vmatprep.subr.mxu0 0.0
    %2570 = vmatpush2.msra.mxu0 0.0
    %2571 = vmatprep.mubr.f32.mxu0 0.0
    %2572 = vmatmul.mubr.f32.gmra.mxu0 %v2505
    %v2573 = vpop.f32.mrf.mxu0
    %v2574 = vadd.f32 %v2502, %v2573
    %v2575 = vpop.f32.mrf.mxu0
    %2576 = vdwg.mxu0
    %vm2577 = vcmask 31744
    %v2578 = vsel %vm2577, %v2574, -inf
    %2579 = vmax.xlane.f32.xlu0 %v2578
    %v2580 = vpop.xlane.xlu0 %2579
    %v2581 = vsub.f32 %v2574, %v2580
    %v2582 = vmul.f32 %v2581, 1.442695
    %v2583 = vpow.pop %v2582
    %v2584 = vsel %vm2577, %v2583, 0.0
    %2585 = vadd.xlane.f32.xlu0 %v2584
    %v2586 = vpop.xlane.xlu0 %2585
    %v2587 = vrcp.pop %v2586
    %v2588 = vmul.f32 %v2583, %v2587
    %2589 = vst.msk [vmem:[%s12] sm:$0xff] %vm2577, %v2588
    // Predicated region
    $region70: #{lstm_q_forward.1} parent=1 // pred_check
      _
    $region71: #{lstm_q_forward.1} parent=1 // pred_check_branch
      %2591 = sbr.rel (0) target = $region73
    $region72: #{lstm_q_forward.1} parent=1 // pred_region
      _
    $region73: #{lstm_q_forward.1} parent=1 // pred_fallthru
      _
    // Predicated region
    $region74: #{lstm_q_forward.1} parent=1 // pred_check
      _
    $region75: #{lstm_q_forward.1} parent=1 // pred_check_branch
      %2593 = sbr.rel (0) target = $region77
    $region76: #{lstm_q_forward.1} parent=1 // pred_region
      _
    $region77: #{lstm_q_forward.1} parent=1 // pred_fallthru
      _
    %2594 = vsyncpa [#allocation3], 1
    %2595 = vsyncpa [#allocation5], 1
    %2596 = vsyncpa [#allocation8], 1

</llo_original>
